<compile_context>
chip_gen: v7x
topology: tpu7x:2x2x1
jax: 0.10.0
libtpu: 0.0.40
codegen_flags: <defaults>
</compile_context>

<pallas_src>
import jax
import jax.numpy as jnp
from jax.experimental import pallas as pl
from jax.experimental.pallas import tpu as pltpu


# ----------------------------------------------------------------------------
# Kernel
# ----------------------------------------------------------------------------
def _drrnn_kernel(xp_ref, w_in_ref, b_in_ref, w1_ref, b1_ref, w2_ref, b2_ref,
                  w_out_ref, b_out_ref, op_ref):
    """Packed forward pass.  Shapes (sb = packed batch columns, km = k*m):

      xp_ref    (k*in_N, sb)    f32   packed input tile, batch on lanes
      w_in_ref  (km, k*in_N)    bf16  block-diagonal input projection
      b_in_ref  (km, 1)         f32
      w1_ref    (depth, km, km) bf16  block-diagonal Block L1 weights
      b1_ref    (depth, km, 1)  f32
      w2_ref    (depth, km, km) bf16  block-diagonal Block L2 weights
      b2_ref    (depth, km, 1)  f32
      w_out_ref (k*out_N, km)   bf16  block-diagonal output projection
      b_out_ref (k*out_N, 1)    f32
      op_ref    (k*out_N, sb)   f32   packed output tile (lane-dense store)
    """
    bf16 = jnp.bfloat16

    x = xp_ref[...].astype(bf16)
    # Input Linear: single MXU pass, f32 accumulation.
    h = jnp.dot(w_in_ref[...], x, preferred_element_type=jnp.float32)
    h = h + b_in_ref[...]                               # (km, sb) residual stream, f32

    # Hoist block biases once (JAX does not CSE repeated loads/broadcasts).
    b1_all = b1_ref[...]
    b2_all = b2_ref[...]

    depth = w1_ref.shape[0]
    # depth is small (4) and static -> full unroll.
    # TODO(synk): switch to lax.fori_loop(..., unroll=True) with dynamic
    # w1_ref[d]/w2_ref[d] indexing if depth is ever scaled beyond ~8.
    for d in range(depth):
        t = jnp.dot(w1_ref[d], h.astype(bf16), preferred_element_type=jnp.float32)
        t = jnp.tanh(t + b1_all[d]).astype(bf16)        # f32 tanh (v5e-safe), bf16 for MXU
        t = jnp.dot(w2_ref[d], t, preferred_element_type=jnp.float32)
        t = jnp.tanh(t + b2_all[d])
        h = t + h                                       # residual add in f32

    y = jnp.dot(w_out_ref[...], h.astype(bf16), preferred_element_type=jnp.float32)
    op_ref[...] = (y + b_out_ref[...]).astype(op_ref.dtype)


# ----------------------------------------------------------------------------
# Host-side helpers
# ----------------------------------------------------------------------------
def _chip_config():
    """Per-generation MXU width / tile & VMEM budgets (host-side heuristic)."""
    try:
        kind = jax.devices()[0].device_kind.lower()
    except Exception:
        kind = ""
    if "v7" in kind or "tpu7" in kind:
        # 2 TensorCores/chip, 64 MiB VMEM per TC, 256-wide MXU.
        return dict(mxu=256, max_points=8192, vmem_cap=48 << 20, cores=2)
    if "v6" in kind or "trillium" in kind:
        # 1 TC, 128 MiB VMEM, 256-wide MXU.
        return dict(mxu=256, max_points=16384, vmem_cap=96 << 20, cores=1)
    # v5e (and other 128-wide-MXU chips): 1 TC, 128 MiB VMEM.
    return dict(mxu=128, max_points=16384, vmem_cap=96 << 20, cores=1)


def _pick_tile_cols(total_cols, max_cols, n_cores):
    """Packed-column tile width: divides total_cols and is a multiple of 128
    (lane-dense) unless it covers the whole array.  Single-TC chips take the
    largest fitting tile even if that means one grid step; 2-TC v7x prefers an
    even number of equal steps so both cores get balanced work."""
    if total_cols % 128 != 0 or total_cols <= 128:
        return total_cols
    n = total_cols // 128
    cands = [128 * d for d in range(1, n + 1) if n % d == 0 and 128 * d <= max_cols]
    if not cands:
        return 128
    if n_cores > 1:
        even = [c for c in cands if (total_cols // c) % 2 == 0]
        if even:
            return max(even)
    return max(cands)


def _block_diag(w, k):
    """(..., out, in) -> (..., k*out, k*in) block-diagonal replication of w."""
    out_f, in_f = w.shape[-2], w.shape[-1]
    eye = jnp.eye(k, dtype=w.dtype)
    bd = jnp.einsum("ab,...oi->...aobi", eye, w)
    return bd.reshape(*w.shape[:-2], k * out_f, k * in_f)


def _tile_bias(b, k):
    """(..., n) -> (..., k*n, 1): bias replicated for each packed sub-tile."""
    reps = (1,) * (b.ndim - 1) + (k,)
    return jnp.tile(b, reps)[..., None]


# ----------------------------------------------------------------------------
# Forward pass
# ----------------------------------------------------------------------------
def drrnn_forward(x, params, *, k=None, tile_b=None):
    """x: (B, in_N) float32.  params: PyTorch-convention (out, in) weights."""
    B, in_N = x.shape
    m = params["w_in"].shape[0]
    depth = params["w1"].shape[0]
    out_N = params["w_out"].shape[0]

    cfg = _chip_config()

    # ---- batch-packing factor k: fill the MXU contraction/output width -----
    if k is None:
        k_max = max(1, cfg["mxu"] // m)
        k = next(kk for kk in range(k_max, 0, -1) if B % kk == 0)
    assert B % k == 0, "batch must be divisible by the packing factor k"
    cols = B // k                       # packed batch columns (lane axis)
    km = k * m

    # ---- tile selection (in packed columns) ---------------------------------
    if tile_b is not None:
        assert B % tile_b == 0 and tile_b % k == 0
        sb = tile_b // k
        assert sb == cols or sb % 128 == 0, "tile_b/k must be lane-dense"
    else:
        max_cols = max(128, (cfg["max_points"] // k) // 128 * 128)
        sb = _pick_tile_cols(cols, max_cols, cfg["cores"])
    grid_steps = cols // sb
    assert grid_steps * sb == cols

    # ---- host-side packing ---------------------------------------------------
    # x (B, in_N) -> x_p (k*in_N, cols):
    #   x_p[j*in_N + i, g*sb + c] = x[g*(k*sb) + j*sb + c, i]
    x_p = (x.reshape(grid_steps, k, sb, in_N)
             .transpose(1, 3, 0, 2)
             .reshape(k * in_N, cols))

    bf16, f32 = jnp.bfloat16, jnp.float32
    w_in_bd = _block_diag(params["w_in"], k).astype(bf16)       # (km, k*in_N)
    w1_bd = _block_diag(params["w1"], k).astype(bf16)           # (depth, km, km)
    w2_bd = _block_diag(params["w2"], k).astype(bf16)
    w_out_bd = _block_diag(params["w_out"], k).astype(bf16)     # (k*out_N, km)
    b_in_t = _tile_bias(params["b_in"], k).astype(f32)          # (km, 1)
    b1_t = _tile_bias(params["b1"], k).astype(f32)              # (depth, km, 1)
    b2_t = _tile_bias(params["b2"], k).astype(f32)
    b_out_t = _tile_bias(params["b_out"], k).astype(f32)        # (k*out_N, 1)

    # ---- VMEM budget -> vmem_limit_bytes -------------------------------------
    act_bytes = 8 * km * sb * 4                                 # live activation temporaries
    wt_bytes = 2 * 2 * (w_in_bd.size + w1_bd.size + w2_bd.size + w_out_bd.size)
    io_bytes = 2 * 2 * 4 * sb * (k * in_N + k * out_N)          # double-buffered x / out tiles
    vmem_limit = int(min(cfg["vmem_cap"],
                         max(32 << 20, act_bytes + wt_bytes + io_bytes + (8 << 20))))

    io_dtype = x.dtype

    def build(single_buffer_consts):
        def const_spec(shape):
            idx = lambda i, n=len(shape): (0,) * n
            if single_buffer_consts:
                # Constant block index never changes -> no 2nd DMA buffer needed.
                return pl.BlockSpec(shape, idx, pipeline_mode=pl.Buffered(1))
            return pl.BlockSpec(shape, idx)

        return pl.pallas_call(
            _drrnn_kernel,
            out_shape=jax.ShapeDtypeStruct((k * out_N, cols), io_dtype),
            grid_spec=pltpu.PrefetchScalarGridSpec(
                num_scalar_prefetch=0,
                grid=(grid_steps,),
                in_specs=[
                    pl.BlockSpec((k * in_N, sb), lambda i: (0, i)),   # packed x
                    const_spec((km, k * in_N)),                       # w_in  (block-diag)
                    const_spec((km, 1)),                              # b_in
                    const_spec((depth, km, km)),                      # block L1 weights
                    const_spec((depth, km, 1)),                       # block L1 biases
                    const_spec((depth, km, km)),                      # block L2 weights
                    const_spec((depth, km, 1)),                       # block L2 biases
                    const_spec((k * out_N, km)),                      # w_out (block-diag)
                    const_spec((k * out_N, 1)),                       # b_out
                ],
                out_specs=pl.BlockSpec((k * out_N, sb), lambda i: (0, i)),
            ),
            compiler_params=pltpu.CompilerParams(
                dimension_semantics=("parallel",),
                vmem_limit_bytes=vmem_limit),
        )

    args = (x_p, w_in_bd, b_in_t, w1_bd, b1_t, w2_bd, b2_t, w_out_bd, b_out_t)
    try:
        y_p = build(True)(*args)
    except Exception:
        # Some JAX versions reject pipeline_mode=pl.Buffered(1); fall back to the
        # default (still-resident, just double-buffered) constant specs.
        y_p = build(False)(*args)

    # ---- unpack (k*out_N, cols) -> (B, out_N) --------------------------------
    y = (y_p.reshape(k, out_N, grid_steps, sb)
            .transpose(2, 0, 3, 1)
            .reshape(B, out_N))
    # TODO(synk): callers that generate collocation points on-device can keep the
    # packed layouts end-to-end and skip the pack/unpack passes (~12 B/point HBM).
    return y


# ----------------------------------------------------------------------------
# Reference + demo
# ----------------------------------------------------------------------------
def init_params(key, in_N, m, out_N, depth):
    """Deterministic synthetic parameters in PyTorch (out, in) convention."""
    ks = jax.random.split(key, 8)
    s = 0.1
    return {
        "w_in":  s * jax.random.normal(ks[0], (m, in_N), jnp.float32),
        "b_in":  s * jax.random.normal(ks[1], (m,), jnp.float32),
        "w1":    s * jax.random.normal(ks[2], (depth, m, m), jnp.float32),
        "b1":    s * jax.random.normal(ks[3], (depth, m), jnp.float32),
        "w2":    s * jax.random.normal(ks[4], (depth, m, m), jnp.float32),
        "b2":    s * jax.random.normal(ks[5], (depth, m), jnp.float32),
        "w_out": s * jax.random.normal(ks[6], (out_N, m), jnp.float32),
        "b_out": s * jax.random.normal(ks[7], (out_N,), jnp.float32),
    }


def drrnn_reference(x, params):
    """Pure-JAX f32 reference of the same forward pass (PyTorch semantics)."""
    depth = params["w1"].shape[0]
    h = x @ params["w_in"].T + params["b_in"]
    for d in range(depth):
        t = jnp.tanh(h @ params["w1"][d].T + params["b1"][d])
        t = jnp.tanh(t @ params["w2"][d].T + params["b2"][d])
        h = t + h
    return h @ params["w_out"].T + params["b_out"]


if __name__ == "__main__":
    in_N, m, out_N, depth = 2, 32, 1, 4       # Deep Ritz: 2-D input, scalar output
    B = 1024                                  # batch of collocation points

    key = jax.random.PRNGKey(0)
    kx, kp = jax.random.split(key)
    x = jax.random.normal(kx, (B, in_N), jnp.float32)
    params = init_params(kp, in_N, m, out_N, depth)

    y = drrnn_forward(x, params)
    y = jax.block_until_ready(y)

    y_ref = drrnn_reference(x, params)
    assert y.shape == (B, out_N)
    # bf16 MXU operands with f32 accumulation + f32 residual stream -> ~1e-3 error.
    assert jnp.allclose(y, y_ref, atol=2e-2, rtol=2e-2), \
        f"max abs err {float(jnp.max(jnp.abs(y - y_ref)))}"

    print("KERNEL_OK")
</pallas_src>

<mosaic_0001>
module attributes {stable_mosaic.version = 11 : i64} {
  func.func @_drrnn_kernel(%arg0: i32, %arg1: memref<8x256xf32, #tpu.memory_space<vmem>>, %arg2: memref<128x8xbf16, #tpu.memory_space<vmem>>, %arg3: memref<128x1xf32, #tpu.memory_space<vmem>>, %arg4: memref<4x128x128xbf16, #tpu.memory_space<vmem>>, %arg5: memref<4x128x1xf32, #tpu.memory_space<vmem>>, %arg6: memref<4x128x128xbf16, #tpu.memory_space<vmem>>, %arg7: memref<4x128x1xf32, #tpu.memory_space<vmem>>, %arg8: memref<4x128xbf16, #tpu.memory_space<vmem>>, %arg9: memref<4x1xf32, #tpu.memory_space<vmem>>, %arg10: memref<4x256xf32, #tpu.memory_space<vmem>>) attributes {dimension_semantics = [#tpu.dimension_semantics<parallel>], iteration_bounds = array<i64: 1>, scalar_prefetch = 0 : i64, scratch_operands = 0 : i64, tpu.core_type = #tpu.core_type<tc>, window_params = [{transform_indices = @transform_0, window_bounds = array<i64: 8, 256>}, {pipeline_mode = #tpu.pipeline_mode<synchronous>, transform_indices = @transform_1, window_bounds = array<i64: 128, 8>}, {pipeline_mode = #tpu.pipeline_mode<synchronous>, transform_indices = @transform_2, window_bounds = array<i64: 128, 1>}, {pipeline_mode = #tpu.pipeline_mode<synchronous>, transform_indices = @transform_3, window_bounds = array<i64: 4, 128, 128>}, {pipeline_mode = #tpu.pipeline_mode<synchronous>, transform_indices = @transform_4, window_bounds = array<i64: 4, 128, 1>}, {pipeline_mode = #tpu.pipeline_mode<synchronous>, transform_indices = @transform_5, window_bounds = array<i64: 4, 128, 128>}, {pipeline_mode = #tpu.pipeline_mode<synchronous>, transform_indices = @transform_6, window_bounds = array<i64: 4, 128, 1>}, {pipeline_mode = #tpu.pipeline_mode<synchronous>, transform_indices = @transform_7, window_bounds = array<i64: 4, 128>}, {pipeline_mode = #tpu.pipeline_mode<synchronous>, transform_indices = @transform_8, window_bounds = array<i64: 4, 1>}, {transform_indices = @transform_9, window_bounds = array<i64: 4, 256>}]} {
    %c0 = arith.constant 0 : index
    %c0_0 = arith.constant 0 : index
    %0 = vector.load %arg1[%c0, %c0_0] : memref<8x256xf32, #tpu.memory_space<vmem>>, vector<8x256xf32>
    %1 = arith.truncf %0 : vector<8x256xf32> to vector<8x256xbf16>
    %c0_1 = arith.constant 0 : index
    %c0_2 = arith.constant 0 : index
    %2 = vector.load %arg2[%c0_1, %c0_2] : memref<128x8xbf16, #tpu.memory_space<vmem>>, vector<128x8xbf16>
    %cst = arith.constant dense<0.000000e+00> : vector<128x256xf32>
    %3 = tpu.matmul %2, %1, %cst {dimension_numbers = #tpu.dot_dimension_numbers<[1], [0], [0], [1], [0, 0, 1, 1], [], []>} : vector<128x8xbf16>, vector<8x256xbf16>, vector<128x256xf32> -> vector<128x256xf32>
    %c0_3 = arith.constant 0 : index
    %c0_4 = arith.constant 0 : index
    %4 = vector.load %arg3[%c0_3, %c0_4] : memref<128x1xf32, #tpu.memory_space<vmem>>, vector<128x1xf32>
    %5 = vector.broadcast %4 : vector<128x1xf32> to vector<128x256xf32>
    %6 = arith.addf %3, %5 : vector<128x256xf32>
    %c0_5 = arith.constant 0 : index
    %c0_6 = arith.constant 0 : index
    %c0_7 = arith.constant 0 : index
    %7 = vector.load %arg5[%c0_5, %c0_6, %c0_7] : memref<4x128x1xf32, #tpu.memory_space<vmem>>, vector<4x128x1xf32>
    %c0_8 = arith.constant 0 : index
    %c0_9 = arith.constant 0 : index
    %c0_10 = arith.constant 0 : index
    %8 = vector.load %arg7[%c0_8, %c0_9, %c0_10] : memref<4x128x1xf32, #tpu.memory_space<vmem>>, vector<4x128x1xf32>
    %c0_11 = arith.constant 0 : index
    %c0_12 = arith.constant 0 : index
    %c0_13 = arith.constant 0 : index
    %9 = vector.load %arg4[%c0_11, %c0_12, %c0_13] : memref<4x128x128xbf16, #tpu.memory_space<vmem>>, vector<1x128x128xbf16>
    %10 = vector.shape_cast %9 : vector<1x128x128xbf16> to vector<128x128xbf16>
    %11 = arith.truncf %6 : vector<128x256xf32> to vector<128x256xbf16>
    %cst_14 = arith.constant dense<0.000000e+00> : vector<128x256xf32>
    %12 = tpu.matmul %10, %11, %cst_14 {dimension_numbers = #tpu.dot_dimension_numbers<[1], [0], [0], [1], [0, 0, 1, 1], [], []>} : vector<128x128xbf16>, vector<128x256xbf16>, vector<128x256xf32> -> vector<128x256xf32>
    %13 = vector.extract_strided_slice %7 {offsets = [0, 0, 0], sizes = [1, 128, 1], strides = [1, 1, 1]} : vector<4x128x1xf32> to vector<1x128x1xf32>
    %14 = vector.shape_cast %13 : vector<1x128x1xf32> to vector<128x1xf32>
    %15 = vector.broadcast %14 : vector<128x1xf32> to vector<128x256xf32>
    %16 = arith.addf %12, %15 : vector<128x256xf32>
    %17 = math.tanh %16 : vector<128x256xf32>
    %18 = arith.truncf %17 : vector<128x256xf32> to vector<128x256xbf16>
    %c0_15 = arith.constant 0 : index
    %c0_16 = arith.constant 0 : index
    %c0_17 = arith.constant 0 : index
    %19 = vector.load %arg6[%c0_15, %c0_16, %c0_17] : memref<4x128x128xbf16, #tpu.memory_space<vmem>>, vector<1x128x128xbf16>
    %20 = vector.shape_cast %19 : vector<1x128x128xbf16> to vector<128x128xbf16>
    %cst_18 = arith.constant dense<0.000000e+00> : vector<128x256xf32>
    %21 = tpu.matmul %20, %18, %cst_18 {dimension_numbers = #tpu.dot_dimension_numbers<[1], [0], [0], [1], [0, 0, 1, 1], [], []>} : vector<128x128xbf16>, vector<128x256xbf16>, vector<128x256xf32> -> vector<128x256xf32>
    %22 = vector.extract_strided_slice %8 {offsets = [0, 0, 0], sizes = [1, 128, 1], strides = [1, 1, 1]} : vector<4x128x1xf32> to vector<1x128x1xf32>
    %23 = vector.shape_cast %22 : vector<1x128x1xf32> to vector<128x1xf32>
    %24 = vector.broadcast %23 : vector<128x1xf32> to vector<128x256xf32>
    %25 = arith.addf %21, %24 : vector<128x256xf32>
    %26 = math.tanh %25 : vector<128x256xf32>
    %27 = arith.addf %26, %6 : vector<128x256xf32>
    %c1 = arith.constant 1 : index
    %c0_19 = arith.constant 0 : index
    %c0_20 = arith.constant 0 : index
    %28 = vector.load %arg4[%c1, %c0_19, %c0_20] : memref<4x128x128xbf16, #tpu.memory_space<vmem>>, vector<1x128x128xbf16>
    %29 = vector.shape_cast %28 : vector<1x128x128xbf16> to vector<128x128xbf16>
    %30 = arith.truncf %27 : vector<128x256xf32> to vector<128x256xbf16>
    %cst_21 = arith.constant dense<0.000000e+00> : vector<128x256xf32>
    %31 = tpu.matmul %29, %30, %cst_21 {dimension_numbers = #tpu.dot_dimension_numbers<[1], [0], [0], [1], [0, 0, 1, 1], [], []>} : vector<128x128xbf16>, vector<128x256xbf16>, vector<128x256xf32> -> vector<128x256xf32>
    %32 = vector.extract_strided_slice %7 {offsets = [1, 0, 0], sizes = [1, 128, 1], strides = [1, 1, 1]} : vector<4x128x1xf32> to vector<1x128x1xf32>
    %33 = vector.shape_cast %32 : vector<1x128x1xf32> to vector<128x1xf32>
    %34 = vector.broadcast %33 : vector<128x1xf32> to vector<128x256xf32>
    %35 = arith.addf %31, %34 : vector<128x256xf32>
    %36 = math.tanh %35 : vector<128x256xf32>
    %37 = arith.truncf %36 : vector<128x256xf32> to vector<128x256xbf16>
    %c1_22 = arith.constant 1 : index
    %c0_23 = arith.constant 0 : index
    %c0_24 = arith.constant 0 : index
    %38 = vector.load %arg6[%c1_22, %c0_23, %c0_24] : memref<4x128x128xbf16, #tpu.memory_space<vmem>>, vector<1x128x128xbf16>
    %39 = vector.shape_cast %38 : vector<1x128x128xbf16> to vector<128x128xbf16>
    %cst_25 = arith.constant dense<0.000000e+00> : vector<128x256xf32>
    %40 = tpu.matmul %39, %37, %cst_25 {dimension_numbers = #tpu.dot_dimension_numbers<[1], [0], [0], [1], [0, 0, 1, 1], [], []>} : vector<128x128xbf16>, vector<128x256xbf16>, vector<128x256xf32> -> vector<128x256xf32>
    %41 = vector.extract_strided_slice %8 {offsets = [1, 0, 0], sizes = [1, 128, 1], strides = [1, 1, 1]} : vector<4x128x1xf32> to vector<1x128x1xf32>
    %42 = vector.shape_cast %41 : vector<1x128x1xf32> to vector<128x1xf32>
    %43 = vector.broadcast %42 : vector<128x1xf32> to vector<128x256xf32>
    %44 = arith.addf %40, %43 : vector<128x256xf32>
    %45 = math.tanh %44 : vector<128x256xf32>
    %46 = arith.addf %45, %27 : vector<128x256xf32>
    %c2 = arith.constant 2 : index
    %c0_26 = arith.constant 0 : index
    %c0_27 = arith.constant 0 : index
    %47 = vector.load %arg4[%c2, %c0_26, %c0_27] : memref<4x128x128xbf16, #tpu.memory_space<vmem>>, vector<1x128x128xbf16>
    %48 = vector.shape_cast %47 : vector<1x128x128xbf16> to vector<128x128xbf16>
    %49 = arith.truncf %46 : vector<128x256xf32> to vector<128x256xbf16>
    %cst_28 = arith.constant dense<0.000000e+00> : vector<128x256xf32>
    %50 = tpu.matmul %48, %49, %cst_28 {dimension_numbers = #tpu.dot_dimension_numbers<[1], [0], [0], [1], [0, 0, 1, 1], [], []>} : vector<128x128xbf16>, vector<128x256xbf16>, vector<128x256xf32> -> vector<128x256xf32>
    %51 = vector.extract_strided_slice %7 {offsets = [2, 0, 0], sizes = [1, 128, 1], strides = [1, 1, 1]} : vector<4x128x1xf32> to vector<1x128x1xf32>
    %52 = vector.shape_cast %51 : vector<1x128x1xf32> to vector<128x1xf32>
    %53 = vector.broadcast %52 : vector<128x1xf32> to vector<128x256xf32>
    %54 = arith.addf %50, %53 : vector<128x256xf32>
    %55 = math.tanh %54 : vector<128x256xf32>
    %56 = arith.truncf %55 : vector<128x256xf32> to vector<128x256xbf16>
    %c2_29 = arith.constant 2 : index
    %c0_30 = arith.constant 0 : index
    %c0_31 = arith.constant 0 : index
    %57 = vector.load %arg6[%c2_29, %c0_30, %c0_31] : memref<4x128x128xbf16, #tpu.memory_space<vmem>>, vector<1x128x128xbf16>
    %58 = vector.shape_cast %57 : vector<1x128x128xbf16> to vector<128x128xbf16>
    %cst_32 = arith.constant dense<0.000000e+00> : vector<128x256xf32>
    %59 = tpu.matmul %58, %56, %cst_32 {dimension_numbers = #tpu.dot_dimension_numbers<[1], [0], [0], [1], [0, 0, 1, 1], [], []>} : vector<128x128xbf16>, vector<128x256xbf16>, vector<128x256xf32> -> vector<128x256xf32>
    %60 = vector.extract_strided_slice %8 {offsets = [2, 0, 0], sizes = [1, 128, 1], strides = [1, 1, 1]} : vector<4x128x1xf32> to vector<1x128x1xf32>
    %61 = vector.shape_cast %60 : vector<1x128x1xf32> to vector<128x1xf32>
    %62 = vector.broadcast %61 : vector<128x1xf32> to vector<128x256xf32>
    %63 = arith.addf %59, %62 : vector<128x256xf32>
    %64 = math.tanh %63 : vector<128x256xf32>
    %65 = arith.addf %64, %46 : vector<128x256xf32>
    %c3 = arith.constant 3 : index
    %c0_33 = arith.constant 0 : index
    %c0_34 = arith.constant 0 : index
    %66 = vector.load %arg4[%c3, %c0_33, %c0_34] : memref<4x128x128xbf16, #tpu.memory_space<vmem>>, vector<1x128x128xbf16>
    %67 = vector.shape_cast %66 : vector<1x128x128xbf16> to vector<128x128xbf16>
    %68 = arith.truncf %65 : vector<128x256xf32> to vector<128x256xbf16>
    %cst_35 = arith.constant dense<0.000000e+00> : vector<128x256xf32>
    %69 = tpu.matmul %67, %68, %cst_35 {dimension_numbers = #tpu.dot_dimension_numbers<[1], [0], [0], [1], [0, 0, 1, 1], [], []>} : vector<128x128xbf16>, vector<128x256xbf16>, vector<128x256xf32> -> vector<128x256xf32>
    %70 = vector.extract_strided_slice %7 {offsets = [3, 0, 0], sizes = [1, 128, 1], strides = [1, 1, 1]} : vector<4x128x1xf32> to vector<1x128x1xf32>
    %71 = vector.shape_cast %70 : vector<1x128x1xf32> to vector<128x1xf32>
    %72 = vector.broadcast %71 : vector<128x1xf32> to vector<128x256xf32>
    %73 = arith.addf %69, %72 : vector<128x256xf32>
    %74 = math.tanh %73 : vector<128x256xf32>
    %75 = arith.truncf %74 : vector<128x256xf32> to vector<128x256xbf16>
    %c3_36 = arith.constant 3 : index
    %c0_37 = arith.constant 0 : index
    %c0_38 = arith.constant 0 : index
    %76 = vector.load %arg6[%c3_36, %c0_37, %c0_38] : memref<4x128x128xbf16, #tpu.memory_space<vmem>>, vector<1x128x128xbf16>
    %77 = vector.shape_cast %76 : vector<1x128x128xbf16> to vector<128x128xbf16>
    %cst_39 = arith.constant dense<0.000000e+00> : vector<128x256xf32>
    %78 = tpu.matmul %77, %75, %cst_39 {dimension_numbers = #tpu.dot_dimension_numbers<[1], [0], [0], [1], [0, 0, 1, 1], [], []>} : vector<128x128xbf16>, vector<128x256xbf16>, vector<128x256xf32> -> vector<128x256xf32>
    %79 = vector.extract_strided_slice %8 {offsets = [3, 0, 0], sizes = [1, 128, 1], strides = [1, 1, 1]} : vector<4x128x1xf32> to vector<1x128x1xf32>
    %80 = vector.shape_cast %79 : vector<1x128x1xf32> to vector<128x1xf32>
    %81 = vector.broadcast %80 : vector<128x1xf32> to vector<128x256xf32>
    %82 = arith.addf %78, %81 : vector<128x256xf32>
    %83 = math.tanh %82 : vector<128x256xf32>
    %84 = arith.addf %83, %65 : vector<128x256xf32>
    %c0_40 = arith.constant 0 : index
    %c0_41 = arith.constant 0 : index
    %85 = vector.load %arg8[%c0_40, %c0_41] : memref<4x128xbf16, #tpu.memory_space<vmem>>, vector<4x128xbf16>
    %86 = arith.truncf %84 : vector<128x256xf32> to vector<128x256xbf16>
    %cst_42 = arith.constant dense<0.000000e+00> : vector<4x256xf32>
    %87 = tpu.matmul %85, %86, %cst_42 {dimension_numbers = #tpu.dot_dimension_numbers<[1], [0], [0], [1], [0, 0, 1, 1], [], []>} : vector<4x128xbf16>, vector<128x256xbf16>, vector<4x256xf32> -> vector<4x256xf32>
    %c0_43 = arith.constant 0 : index
    %c0_44 = arith.constant 0 : index
    %88 = vector.load %arg9[%c0_43, %c0_44] : memref<4x1xf32, #tpu.memory_space<vmem>>, vector<4x1xf32>
    %89 = vector.broadcast %88 : vector<4x1xf32> to vector<4x256xf32>
    %90 = arith.addf %87, %89 : vector<4x256xf32>
    %c0_45 = arith.constant 0 : index
    %c0_46 = arith.constant 0 : index
    %91 = vector.load %arg10[%c0_45, %c0_46] : memref<4x256xf32, #tpu.memory_space<vmem>>, vector<4x256xf32>
    tpu.vector_store %arg10[%c0_45, %c0_46], %90 {strides = array<i32>} : memref<4x256xf32, #tpu.memory_space<vmem>>, vector<4x256xf32>,
    return
  }
  func.func @transform_0(%arg0: i32) -> (i32, i32) {
    %c0_i32 = arith.constant 0 : i32
    %c0_i32_0 = arith.constant 0 : i32
    return %c0_i32, %arg0 : i32, i32
  }
  func.func @transform_1(%arg0: i32) -> (i32, i32) {
    %c0_i32 = arith.constant 0 : i32
    %c0_i32_0 = arith.constant 0 : i32
    %c0_i32_1 = arith.constant 0 : i32
    return %c0_i32, %c0_i32_0 : i32, i32
  }
  func.func @transform_2(%arg0: i32) -> (i32, i32) {
    %c0_i32 = arith.constant 0 : i32
    %c0_i32_0 = arith.constant 0 : i32
    %c0_i32_1 = arith.constant 0 : i32
    return %c0_i32, %c0_i32_0 : i32, i32
  }
  func.func @transform_3(%arg0: i32) -> (i32, i32, i32) {
    %c0_i32 = arith.constant 0 : i32
    %c0_i32_0 = arith.constant 0 : i32
    %c0_i32_1 = arith.constant 0 : i32
    %c0_i32_2 = arith.constant 0 : i32
    return %c0_i32, %c0_i32_0, %c0_i32_1 : i32, i32, i32
  }
  func.func @transform_4(%arg0: i32) -> (i32, i32, i32) {
    %c0_i32 = arith.constant 0 : i32
    %c0_i32_0 = arith.constant 0 : i32
    %c0_i32_1 = arith.constant 0 : i32
    %c0_i32_2 = arith.constant 0 : i32
    return %c0_i32, %c0_i32_0, %c0_i32_1 : i32, i32, i32
  }
  func.func @transform_5(%arg0: i32) -> (i32, i32, i32) {
    %c0_i32 = arith.constant 0 : i32
    %c0_i32_0 = arith.constant 0 : i32
    %c0_i32_1 = arith.constant 0 : i32
    %c0_i32_2 = arith.constant 0 : i32
    return %c0_i32, %c0_i32_0, %c0_i32_1 : i32, i32, i32
  }
  func.func @transform_6(%arg0: i32) -> (i32, i32, i32) {
    %c0_i32 = arith.constant 0 : i32
    %c0_i32_0 = arith.constant 0 : i32
    %c0_i32_1 = arith.constant 0 : i32
    %c0_i32_2 = arith.constant 0 : i32
    return %c0_i32, %c0_i32_0, %c0_i32_1 : i32, i32, i32
  }
  func.func @transform_7(%arg0: i32) -> (i32, i32) {
    %c0_i32 = arith.constant 0 : i32
    %c0_i32_0 = arith.constant 0 : i32
    %c0_i32_1 = arith.constant 0 : i32
    return %c0_i32, %c0_i32_0 : i32, i32
  }
  func.func @transform_8(%arg0: i32) -> (i32, i32) {
    %c0_i32 = arith.constant 0 : i32
    %c0_i32_0 = arith.constant 0 : i32
    %c0_i32_1 = arith.constant 0 : i32
    return %c0_i32, %c0_i32_0 : i32, i32
  }
  func.func @transform_9(%arg0: i32) -> (i32, i32) {
    %c0_i32 = arith.constant 0 : i32
    %c0_i32_0 = arith.constant 0 : i32
    return %c0_i32, %arg0 : i32, i32
  }
}

module attributes {stable_mosaic.version = 11 : i64} {
  func.func @_drrnn_kernel(%arg0: i32, %arg1: memref<8x256xf32, #tpu.memory_space<vmem>>, %arg2: memref<128x8xbf16, #tpu.memory_space<vmem>>, %arg3: memref<128x1xf32, #tpu.memory_space<vmem>>, %arg4: memref<4x128x128xbf16, #tpu.memory_space<vmem>>, %arg5: memref<4x128x1xf32, #tpu.memory_space<vmem>>, %arg6: memref<4x128x128xbf16, #tpu.memory_space<vmem>>, %arg7: memref<4x128x1xf32, #tpu.memory_space<vmem>>, %arg8: memref<4x128xbf16, #tpu.memory_space<vmem>>, %arg9: memref<4x1xf32, #tpu.memory_space<vmem>>, %arg10: memref<4x256xf32, #tpu.memory_space<vmem>>) attributes {dimension_semantics = [#tpu.dimension_semantics<parallel>], iteration_bounds = array<i64: 1>, scalar_prefetch = 0 : i64, scratch_operands = 0 : i64, tpu.core_type = #tpu.core_type<tc>, window_params = [{transform_indices = @transform_0, window_bounds = array<i64: 8, 256>}, {pipeline_mode = #tpu.pipeline_mode<synchronous>, transform_indices = @transform_1, window_bounds = array<i64: 128, 8>}, {pipeline_mode = #tpu.pipeline_mode<synchronous>, transform_indices = @transform_2, window_bounds = array<i64: 128, 1>}, {pipeline_mode = #tpu.pipeline_mode<synchronous>, transform_indices = @transform_3, window_bounds = array<i64: 4, 128, 128>}, {pipeline_mode = #tpu.pipeline_mode<synchronous>, transform_indices = @transform_4, window_bounds = array<i64: 4, 128, 1>}, {pipeline_mode = #tpu.pipeline_mode<synchronous>, transform_indices = @transform_5, window_bounds = array<i64: 4, 128, 128>}, {pipeline_mode = #tpu.pipeline_mode<synchronous>, transform_indices = @transform_6, window_bounds = array<i64: 4, 128, 1>}, {pipeline_mode = #tpu.pipeline_mode<synchronous>, transform_indices = @transform_7, window_bounds = array<i64: 4, 128>}, {pipeline_mode = #tpu.pipeline_mode<synchronous>, transform_indices = @transform_8, window_bounds = array<i64: 4, 1>}, {transform_indices = @transform_9, window_bounds = array<i64: 4, 256>}]} {
    %c0 = arith.constant 0 : index
    %c0_0 = arith.constant 0 : index
    %0 = vector.load %arg1[%c0, %c0_0] : memref<8x256xf32, #tpu.memory_space<vmem>>, vector<8x256xf32>
    %1 = arith.truncf %0 : vector<8x256xf32> to vector<8x256xbf16>
    %c0_1 = arith.constant 0 : index
    %c0_2 = arith.constant 0 : index
    %2 = vector.load %arg2[%c0_1, %c0_2] : memref<128x8xbf16, #tpu.memory_space<vmem>>, vector<128x8xbf16>
    %cst = arith.constant dense<0.000000e+00> : vector<128x256xf32>
    %3 = tpu.matmul %2, %1, %cst {dimension_numbers = #tpu.dot_dimension_numbers<[1], [0], [0], [1], [0, 0, 1, 1], [], []>} : vector<128x8xbf16>, vector<8x256xbf16>, vector<128x256xf32> -> vector<128x256xf32>
    %c0_3 = arith.constant 0 : index
    %c0_4 = arith.constant 0 : index
    %4 = vector.load %arg3[%c0_3, %c0_4] : memref<128x1xf32, #tpu.memory_space<vmem>>, vector<128x1xf32>
    %5 = vector.broadcast %4 : vector<128x1xf32> to vector<128x256xf32>
    %6 = arith.addf %3, %5 : vector<128x256xf32>
    %c0_5 = arith.constant 0 : index
    %c0_6 = arith.constant 0 : index
    %c0_7 = arith.constant 0 : index
    %7 = vector.load %arg5[%c0_5, %c0_6, %c0_7] : memref<4x128x1xf32, #tpu.memory_space<vmem>>, vector<4x128x1xf32>
    %c0_8 = arith.constant 0 : index
    %c0_9 = arith.constant 0 : index
    %c0_10 = arith.constant 0 : index
    %8 = vector.load %arg7[%c0_8, %c0_9, %c0_10] : memref<4x128x1xf32, #tpu.memory_space<vmem>>, vector<4x128x1xf32>
    %c0_11 = arith.constant 0 : index
    %c0_12 = arith.constant 0 : index
    %c0_13 = arith.constant 0 : index
    %9 = vector.load %arg4[%c0_11, %c0_12, %c0_13] : memref<4x128x128xbf16, #tpu.memory_space<vmem>>, vector<1x128x128xbf16>
    %10 = vector.shape_cast %9 : vector<1x128x128xbf16> to vector<128x128xbf16>
    %11 = arith.truncf %6 : vector<128x256xf32> to vector<128x256xbf16>
    %cst_14 = arith.constant dense<0.000000e+00> : vector<128x256xf32>
    %12 = tpu.matmul %10, %11, %cst_14 {dimension_numbers = #tpu.dot_dimension_numbers<[1], [0], [0], [1], [0, 0, 1, 1], [], []>} : vector<128x128xbf16>, vector<128x256xbf16>, vector<128x256xf32> -> vector<128x256xf32>
    %13 = vector.extract_strided_slice %7 {offsets = [0, 0, 0], sizes = [1, 128, 1], strides = [1, 1, 1]} : vector<4x128x1xf32> to vector<1x128x1xf32>
    %14 = vector.shape_cast %13 : vector<1x128x1xf32> to vector<128x1xf32>
    %15 = vector.broadcast %14 : vector<128x1xf32> to vector<128x256xf32>
    %16 = arith.addf %12, %15 : vector<128x256xf32>
    %17 = math.tanh %16 : vector<128x256xf32>
    %18 = arith.truncf %17 : vector<128x256xf32> to vector<128x256xbf16>
    %c0_15 = arith.constant 0 : index
    %c0_16 = arith.constant 0 : index
    %c0_17 = arith.constant 0 : index
    %19 = vector.load %arg6[%c0_15, %c0_16, %c0_17] : memref<4x128x128xbf16, #tpu.memory_space<vmem>>, vector<1x128x128xbf16>
    %20 = vector.shape_cast %19 : vector<1x128x128xbf16> to vector<128x128xbf16>
    %cst_18 = arith.constant dense<0.000000e+00> : vector<128x256xf32>
    %21 = tpu.matmul %20, %18, %cst_18 {dimension_numbers = #tpu.dot_dimension_numbers<[1], [0], [0], [1], [0, 0, 1, 1], [], []>} : vector<128x128xbf16>, vector<128x256xbf16>, vector<128x256xf32> -> vector<128x256xf32>
    %22 = vector.extract_strided_slice %8 {offsets = [0, 0, 0], sizes = [1, 128, 1], strides = [1, 1, 1]} : vector<4x128x1xf32> to vector<1x128x1xf32>
    %23 = vector.shape_cast %22 : vector<1x128x1xf32> to vector<128x1xf32>
    %24 = vector.broadcast %23 : vector<128x1xf32> to vector<128x256xf32>
    %25 = arith.addf %21, %24 : vector<128x256xf32>
    %26 = math.tanh %25 : vector<128x256xf32>
    %27 = arith.addf %26, %6 : vector<128x256xf32>
    %c1 = arith.constant 1 : index
    %c0_19 = arith.constant 0 : index
    %c0_20 = arith.constant 0 : index
    %28 = vector.load %arg4[%c1, %c0_19, %c0_20] : memref<4x128x128xbf16, #tpu.memory_space<vmem>>, vector<1x128x128xbf16>
    %29 = vector.shape_cast %28 : vector<1x128x128xbf16> to vector<128x128xbf16>
    %30 = arith.truncf %27 : vector<128x256xf32> to vector<128x256xbf16>
    %cst_21 = arith.constant dense<0.000000e+00> : vector<128x256xf32>
    %31 = tpu.matmul %29, %30, %cst_21 {dimension_numbers = #tpu.dot_dimension_numbers<[1], [0], [0], [1], [0, 0, 1, 1], [], []>} : vector<128x128xbf16>, vector<128x256xbf16>, vector<128x256xf32> -> vector<128x256xf32>
    %32 = vector.extract_strided_slice %7 {offsets = [1, 0, 0], sizes = [1, 128, 1], strides = [1, 1, 1]} : vector<4x128x1xf32> to vector<1x128x1xf32>
    %33 = vector.shape_cast %32 : vector<1x128x1xf32> to vector<128x1xf32>
    %34 = vector.broadcast %33 : vector<128x1xf32> to vector<128x256xf32>
    %35 = arith.addf %31, %34 : vector<128x256xf32>
    %36 = math.tanh %35 : vector<128x256xf32>
    %37 = arith.truncf %36 : vector<128x256xf32> to vector<128x256xbf16>
    %c1_22 = arith.constant 1 : index
    %c0_23 = arith.constant 0 : index
    %c0_24 = arith.constant 0 : index
    %38 = vector.load %arg6[%c1_22, %c0_23, %c0_24] : memref<4x128x128xbf16, #tpu.memory_space<vmem>>, vector<1x128x128xbf16>
    %39 = vector.shape_cast %38 : vector<1x128x128xbf16> to vector<128x128xbf16>
    %cst_25 = arith.constant dense<0.000000e+00> : vector<128x256xf32>
    %40 = tpu.matmul %39, %37, %cst_25 {dimension_numbers = #tpu.dot_dimension_numbers<[1], [0], [0], [1], [0, 0, 1, 1], [], []>} : vector<128x128xbf16>, vector<128x256xbf16>, vector<128x256xf32> -> vector<128x256xf32>
    %41 = vector.extract_strided_slice %8 {offsets = [1, 0, 0], sizes = [1, 128, 1], strides = [1, 1, 1]} : vector<4x128x1xf32> to vector<1x128x1xf32>
    %42 = vector.shape_cast %41 : vector<1x128x1xf32> to vector<128x1xf32>
    %43 = vector.broadcast %42 : vector<128x1xf32> to vector<128x256xf32>
    %44 = arith.addf %40, %43 : vector<128x256xf32>
    %45 = math.tanh %44 : vector<128x256xf32>
    %46 = arith.addf %45, %27 : vector<128x256xf32>
    %c2 = arith.constant 2 : index
    %c0_26 = arith.constant 0 : index
    %c0_27 = arith.constant 0 : index
    %47 = vector.load %arg4[%c2, %c0_26, %c0_27] : memref<4x128x128xbf16, #tpu.memory_space<vmem>>, vector<1x128x128xbf16>
    %48 = vector.shape_cast %47 : vector<1x128x128xbf16> to vector<128x128xbf16>
    %49 = arith.truncf %46 : vector<128x256xf32> to vector<128x256xbf16>
    %cst_28 = arith.constant dense<0.000000e+00> : vector<128x256xf32>
    %50 = tpu.matmul %48, %49, %cst_28 {dimension_numbers = #tpu.dot_dimension_numbers<[1], [0], [0], [1], [0, 0, 1, 1], [], []>} : vector<128x128xbf16>, vector<128x256xbf16>, vector<128x256xf32> -> vector<128x256xf32>
    %51 = vector.extract_strided_slice %7 {offsets = [2, 0, 0], sizes = [1, 128, 1], strides = [1, 1, 1]} : vector<4x128x1xf32> to vector<1x128x1xf32>
    %52 = vector.shape_cast %51 : vector<1x128x1xf32> to vector<128x1xf32>
    %53 = vector.broadcast %52 : vector<128x1xf32> to vector<128x256xf32>
    %54 = arith.addf %50, %53 : vector<128x256xf32>
    %55 = math.tanh %54 : vector<128x256xf32>
    %56 = arith.truncf %55 : vector<128x256xf32> to vector<128x256xbf16>
    %c2_29 = arith.constant 2 : index
    %c0_30 = arith.constant 0 : index
    %c0_31 = arith.constant 0 : index
    %57 = vector.load %arg6[%c2_29, %c0_30, %c0_31] : memref<4x128x128xbf16, #tpu.memory_space<vmem>>, vector<1x128x128xbf16>
    %58 = vector.shape_cast %57 : vector<1x128x128xbf16> to vector<128x128xbf16>
    %cst_32 = arith.constant dense<0.000000e+00> : vector<128x256xf32>
    %59 = tpu.matmul %58, %56, %cst_32 {dimension_numbers = #tpu.dot_dimension_numbers<[1], [0], [0], [1], [0, 0, 1, 1], [], []>} : vector<128x128xbf16>, vector<128x256xbf16>, vector<128x256xf32> -> vector<128x256xf32>
    %60 = vector.extract_strided_slice %8 {offsets = [2, 0, 0], sizes = [1, 128, 1], strides = [1, 1, 1]} : vector<4x128x1xf32> to vector<1x128x1xf32>
    %61 = vector.shape_cast %60 : vector<1x128x1xf32> to vector<128x1xf32>
    %62 = vector.broadcast %61 : vector<128x1xf32> to vector<128x256xf32>
    %63 = arith.addf %59, %62 : vector<128x256xf32>
    %64 = math.tanh %63 : vector<128x256xf32>
    %65 = arith.addf %64, %46 : vector<128x256xf32>
    %c3 = arith.constant 3 : index
    %c0_33 = arith.constant 0 : index
    %c0_34 = arith.constant 0 : index
    %66 = vector.load %arg4[%c3, %c0_33, %c0_34] : memref<4x128x128xbf16, #tpu.memory_space<vmem>>, vector<1x128x128xbf16>
    %67 = vector.shape_cast %66 : vector<1x128x128xbf16> to vector<128x128xbf16>
    %68 = arith.truncf %65 : vector<128x256xf32> to vector<128x256xbf16>
    %cst_35 = arith.constant dense<0.000000e+00> : vector<128x256xf32>
    %69 = tpu.matmul %67, %68, %cst_35 {dimension_numbers = #tpu.dot_dimension_numbers<[1], [0], [0], [1], [0, 0, 1, 1], [], []>} : vector<128x128xbf16>, vector<128x256xbf16>, vector<128x256xf32> -> vector<128x256xf32>
    %70 = vector.extract_strided_slice %7 {offsets = [3, 0, 0], sizes = [1, 128, 1], strides = [1, 1, 1]} : vector<4x128x1xf32> to vector<1x128x1xf32>
    %71 = vector.shape_cast %70 : vector<1x128x1xf32> to vector<128x1xf32>
    %72 = vector.broadcast %71 : vector<128x1xf32> to vector<128x256xf32>
    %73 = arith.addf %69, %72 : vector<128x256xf32>
    %74 = math.tanh %73 : vector<128x256xf32>
    %75 = arith.truncf %74 : vector<128x256xf32> to vector<128x256xbf16>
    %c3_36 = arith.constant 3 : index
    %c0_37 = arith.constant 0 : index
    %c0_38 = arith.constant 0 : index
    %76 = vector.load %arg6[%c3_36, %c0_37, %c0_38] : memref<4x128x128xbf16, #tpu.memory_space<vmem>>, vector<1x128x128xbf16>
    %77 = vector.shape_cast %76 : vector<1x128x128xbf16> to vector<128x128xbf16>
    %cst_39 = arith.constant dense<0.000000e+00> : vector<128x256xf32>
    %78 = tpu.matmul %77, %75, %cst_39 {dimension_numbers = #tpu.dot_dimension_numbers<[1], [0], [0], [1], [0, 0, 1, 1], [], []>} : vector<128x128xbf16>, vector<128x256xbf16>, vector<128x256xf32> -> vector<128x256xf32>
    %79 = vector.extract_strided_slice %8 {offsets = [3, 0, 0], sizes = [1, 128, 1], strides = [1, 1, 1]} : vector<4x128x1xf32> to vector<1x128x1xf32>
    %80 = vector.shape_cast %79 : vector<1x128x1xf32> to vector<128x1xf32>
    %81 = vector.broadcast %80 : vector<128x1xf32> to vector<128x256xf32>
    %82 = arith.addf %78, %81 : vector<128x256xf32>
    %83 = math.tanh %82 : vector<128x256xf32>
    %84 = arith.addf %83, %65 : vector<128x256xf32>
    %c0_40 = arith.constant 0 : index
    %c0_41 = arith.constant 0 : index
    %85 = vector.load %arg8[%c0_40, %c0_41] : memref<4x128xbf16, #tpu.memory_space<vmem>>, vector<4x128xbf16>
    %86 = arith.truncf %84 : vector<128x256xf32> to vector<128x256xbf16>
    %cst_42 = arith.constant dense<0.000000e+00> : vector<4x256xf32>
    %87 = tpu.matmul %85, %86, %cst_42 {dimension_numbers = #tpu.dot_dimension_numbers<[1], [0], [0], [1], [0, 0, 1, 1], [], []>} : vector<4x128xbf16>, vector<128x256xbf16>, vector<4x256xf32> -> vector<4x256xf32>
    %c0_43 = arith.constant 0 : index
    %c0_44 = arith.constant 0 : index
    %88 = vector.load %arg9[%c0_43, %c0_44] : memref<4x1xf32, #tpu.memory_space<vmem>>, vector<4x1xf32>
    %89 = vector.broadcast %88 : vector<4x1xf32> to vector<4x256xf32>
    %90 = arith.addf %87, %89 : vector<4x256xf32>
    %c0_45 = arith.constant 0 : index
    %c0_46 = arith.constant 0 : index
    %91 = vector.load %arg10[%c0_45, %c0_46] : memref<4x256xf32, #tpu.memory_space<vmem>>, vector<4x256xf32>
    tpu.vector_store %arg10[%c0_45, %c0_46], %90 {strides = array<i32>} : memref<4x256xf32, #tpu.memory_space<vmem>>, vector<4x256xf32>,
    return
  }
  func.func @transform_0(%arg0: i32) -> (i32, i32) {
    %c0_i32 = arith.constant 0 : i32
    %c0_i32_0 = arith.constant 0 : i32
    return %c0_i32, %arg0 : i32, i32
  }
  func.func @transform_1(%arg0: i32) -> (i32, i32) {
    %c0_i32 = arith.constant 0 : i32
    %c0_i32_0 = arith.constant 0 : i32
    %c0_i32_1 = arith.constant 0 : i32
    return %c0_i32, %c0_i32_0 : i32, i32
  }
  func.func @transform_2(%arg0: i32) -> (i32, i32) {
    %c0_i32 = arith.constant 0 : i32
    %c0_i32_0 = arith.constant 0 : i32
    %c0_i32_1 = arith.constant 0 : i32
    return %c0_i32, %c0_i32_0 : i32, i32
  }
  func.func @transform_3(%arg0: i32) -> (i32, i32, i32) {
    %c0_i32 = arith.constant 0 : i32
    %c0_i32_0 = arith.constant 0 : i32
    %c0_i32_1 = arith.constant 0 : i32
    %c0_i32_2 = arith.constant 0 : i32
    return %c0_i32, %c0_i32_0, %c0_i32_1 : i32, i32, i32
  }
  func.func @transform_4(%arg0: i32) -> (i32, i32, i32) {
    %c0_i32 = arith.constant 0 : i32
    %c0_i32_0 = arith.constant 0 : i32
    %c0_i32_1 = arith.constant 0 : i32
    %c0_i32_2 = arith.constant 0 : i32
    return %c0_i32, %c0_i32_0, %c0_i32_1 : i32, i32, i32
  }
  func.func @transform_5(%arg0: i32) -> (i32, i32, i32) {
    %c0_i32 = arith.constant 0 : i32
    %c0_i32_0 = arith.constant 0 : i32
    %c0_i32_1 = arith.constant 0 : i32
    %c0_i32_2 = arith.constant 0 : i32
    return %c0_i32, %c0_i32_0, %c0_i32_1 : i32, i32, i32
  }
  func.func @transform_6(%arg0: i32) -> (i32, i32, i32) {
    %c0_i32 = arith.constant 0 : i32
    %c0_i32_0 = arith.constant 0 : i32
    %c0_i32_1 = arith.constant 0 : i32
    %c0_i32_2 = arith.constant 0 : i32
    return %c0_i32, %c0_i32_0, %c0_i32_1 : i32, i32, i32
  }
  func.func @transform_7(%arg0: i32) -> (i32, i32) {
    %c0_i32 = arith.constant 0 : i32
    %c0_i32_0 = arith.constant 0 : i32
    %c0_i32_1 = arith.constant 0 : i32
    return %c0_i32, %c0_i32_0 : i32, i32
  }
  func.func @transform_8(%arg0: i32) -> (i32, i32) {
    %c0_i32 = arith.constant 0 : i32
    %c0_i32_0 = arith.constant 0 : i32
    %c0_i32_1 = arith.constant 0 : i32
    return %c0_i32, %c0_i32_0 : i32, i32
  }
  func.func @transform_9(%arg0: i32) -> (i32, i32) {
    %c0_i32 = arith.constant 0 : i32
    %c0_i32_0 = arith.constant 0 : i32
    return %c0_i32, %arg0 : i32, i32
  }
}

</mosaic_0001>

<llo_original>
// kernel: tpu_custom_call.1
$region0: #{tpu_custom_call.1}
  #allocation0 [shape = 'u32[]', space=smem, size = 0x4, offset = 0x4, fixed_abs, tag = 'smem constant byte address 0x4 - core index']
  #allocation1 [shape = 'u32[144,128]{1,0:T(1,128)}', space=vmem, size = 0x12000, scoped, tag = 'internal scratch']
  %s0 = inlined_call_operand.vmem [shape: f32[8,256], index: 0, kind: input, shape index: {}]
  %s1 = inlined_call_operand.vmem [shape: bf16[128,8], index: 1, kind: input, shape index: {}]
  %s2 = inlined_call_operand.vmem [shape: f32[128,1], index: 2, kind: input, shape index: {}]
  %s3 = inlined_call_operand.vmem [shape: bf16[4,128,128], index: 3, kind: input, shape index: {}]
  %s4 = inlined_call_operand.vmem [shape: f32[4,128,1], index: 4, kind: input, shape index: {}]
  %s5 = inlined_call_operand.vmem [shape: bf16[4,128,128], index: 5, kind: input, shape index: {}]
  %s6 = inlined_call_operand.vmem [shape: f32[4,128,1], index: 6, kind: input, shape index: {}]
  %s7 = inlined_call_operand.vmem [shape: bf16[4,128], index: 7, kind: input, shape index: {}]
  %s8 = inlined_call_operand.vmem [shape: f32[4,1], index: 8, kind: input, shape index: {}]
  %s9 = inlined_call_operand.hbm [shape: f32[4,256], index: 9, kind: output, shape index: {}]
  %s10 = sld [smem:[#allocation0]]
  $region46: #{tpu_custom_call.1} parent=0
    _
  %s12 = ssub.s32 1, %s10
  %s13 = scalar_select 0, %s12, %s10
  $region1: #{tpu_custom_call.1} parent=0
    #allocation2 [shape = 'u8[4096]{0}', space=vmem, size = 0x1000, scoped, tag = 'output window, operand 0, single buffered']
    #allocation3 [shape = 's32[1]{0}', space=sflag, size = 0x4, scoped, tag = 'scoped memory for tpu_custom_call.1']
    %14 = vsyncpa [#allocation3], 0
    // Predicated region
    $region2: #{tpu_custom_call.1} parent=1 // pred_check
      _
    $region3: #{tpu_custom_call.1} parent=1 // pred_check_branch
      %16 = sbr.rel (0) target = $region5
    $region4: #{tpu_custom_call.1} parent=1 // pred_region
      _
    $region5: #{tpu_custom_call.1} parent=1 // pred_fallthru
      _
    // Predicated region
    $region6: #{tpu_custom_call.1} parent=1 // pred_check
      _
    $region7: #{tpu_custom_call.1} parent=1 // pred_check_branch
      %18 = sbr.rel (0) target = $region9
    $region8: #{tpu_custom_call.1} parent=1 // pred_region
      _
    $region9: #{tpu_custom_call.1} parent=1 // pred_fallthru
      _
    // Predicated region
    $region10: #{tpu_custom_call.1} parent=1 // pred_check
      _
    $region11: #{tpu_custom_call.1} parent=1 // pred_check_branch
      %20 = sbr.rel (0) target = $region13
    $region12: #{tpu_custom_call.1} parent=1 // pred_region
      _
    $region13: #{tpu_custom_call.1} parent=1 // pred_fallthru
      _
    // Predicated region
    $region14: #{tpu_custom_call.1} parent=1 // pred_check
      _
    $region15: #{tpu_custom_call.1} parent=1 // pred_check_branch
      %22 = sbr.rel (0) target = $region17
    $region16: #{tpu_custom_call.1} parent=1 // pred_region
      _
    $region17: #{tpu_custom_call.1} parent=1 // pred_fallthru
      _
    // Predicated region
    $region18: #{tpu_custom_call.1} parent=1 // pred_check
      _
    $region19: #{tpu_custom_call.1} parent=1 // pred_check_branch
      %24 = sbr.rel (0) target = $region21
    $region20: #{tpu_custom_call.1} parent=1 // pred_region
      _
    $region21: #{tpu_custom_call.1} parent=1 // pred_fallthru
      _
    // Predicated region
    $region22: #{tpu_custom_call.1} parent=1 // pred_check
      _
    $region23: #{tpu_custom_call.1} parent=1 // pred_check_branch
      %26 = sbr.rel (0) target = $region25
    $region24: #{tpu_custom_call.1} parent=1 // pred_region
      _
    $region25: #{tpu_custom_call.1} parent=1 // pred_fallthru
      _
    // Predicated region
    $region26: #{tpu_custom_call.1} parent=1 // pred_check
      _
    $region27: #{tpu_custom_call.1} parent=1 // pred_check_branch
      %28 = sbr.rel (0) target = $region29
    $region28: #{tpu_custom_call.1} parent=1 // pred_region
      _
    $region29: #{tpu_custom_call.1} parent=1 // pred_fallthru
      _
    // Predicated region
    $region30: #{tpu_custom_call.1} parent=1 // pred_check
      _
    $region31: #{tpu_custom_call.1} parent=1 // pred_check_branch
      %30 = sbr.rel (0) target = $region33
    $region32: #{tpu_custom_call.1} parent=1 // pred_region
      _
    $region33: #{tpu_custom_call.1} parent=1 // pred_fallthru
      _
    // Predicated region
    $region34: #{tpu_custom_call.1} parent=1 // pred_check
      _
    $region35: #{tpu_custom_call.1} parent=1 // pred_check_branch
      %32 = sbr.rel (0) target = $region37
    $region36: #{tpu_custom_call.1} parent=1 // pred_region
      _
    $region37: #{tpu_custom_call.1} parent=1 // pred_fallthru
      _
    %v34 = vld [vmem:[%s0] sm:$0xff]
    %v35 = vld [vmem:[%s0 + $0x8] sm:$0xff]
    %v36 = vpack.c.bf16 %v34, %v34
    %v37 = vpack.c.bf16 %v35, %v35
    %v38 = vld [vmem:[%s1] sm:$0xf]
    %v39 = vld [vmem:[%s1 + $0x4] sm:$0xf]
    %v40 = vld [vmem:[%s1 + $0x8] sm:$0xf]
    %v41 = vld [vmem:[%s1 + $0xc] sm:$0xf]
    %v42 = vld [vmem:[%s1 + $0x10] sm:$0xf]
    %v43 = vld [vmem:[%s1 + $0x14] sm:$0xf]
    %v44 = vld [vmem:[%s1 + $0x18] sm:$0xf]
    %v45 = vld [vmem:[%s1 + $0x1c] sm:$0xf]
    %v46 = vld [vmem:[%s1 + $0x20] sm:$0xf]
    %v47 = vld [vmem:[%s1 + $0x24] sm:$0xf]
    %v48 = vld [vmem:[%s1 + $0x28] sm:$0xf]
    %v49 = vld [vmem:[%s1 + $0x2c] sm:$0xf]
    %v50 = vld [vmem:[%s1 + $0x30] sm:$0xf]
    %v51 = vld [vmem:[%s1 + $0x34] sm:$0xf]
    %v52 = vld [vmem:[%s1 + $0x38] sm:$0xf]
    %v53 = vld [vmem:[%s1 + $0x3c] sm:$0xf]
    %v54 = vld [vmem:[%s2] sm:$0xff]
    %v55 = vld [vmem:[%s2 + $0x8] sm:$0xff]
    %v56 = vld [vmem:[%s2 + $0x10] sm:$0xff]
    %v57 = vld [vmem:[%s2 + $0x18] sm:$0xff]
    %v58 = vld [vmem:[%s2 + $0x20] sm:$0xff]
    %v59 = vld [vmem:[%s2 + $0x28] sm:$0xff]
    %v60 = vld [vmem:[%s2 + $0x30] sm:$0xff]
    %v61 = vld [vmem:[%s2 + $0x38] sm:$0xff]
    %v62 = vld [vmem:[%s2 + $0x40] sm:$0xff]
    %v63 = vld [vmem:[%s2 + $0x48] sm:$0xff]
    %v64 = vld [vmem:[%s2 + $0x50] sm:$0xff]
    %v65 = vld [vmem:[%s2 + $0x58] sm:$0xff]
    %v66 = vld [vmem:[%s2 + $0x60] sm:$0xff]
    %v67 = vld [vmem:[%s2 + $0x68] sm:$0xff]
    %v68 = vld [vmem:[%s2 + $0x70] sm:$0xff]
    %v69 = vld [vmem:[%s2 + $0x78] sm:$0xff]
    %71 = vset.pattern.permute.xlu0 0
    %72 = vperm.xlu0 %71, %v54
    %v73 = vpop.permute.xlu0 %72
    %76 = vset.pattern.permute.xlu0 0
    %77 = vperm.xlu0 %76, %v55
    %v78 = vpop.permute.xlu0 %77
    %81 = vset.pattern.permute.xlu0 0
    %82 = vperm.xlu0 %81, %v56
    %v83 = vpop.permute.xlu0 %82
    %86 = vset.pattern.permute.xlu0 0
    %87 = vperm.xlu0 %86, %v57
    %v88 = vpop.permute.xlu0 %87
    %91 = vset.pattern.permute.xlu0 0
    %92 = vperm.xlu0 %91, %v58
    %v93 = vpop.permute.xlu0 %92
    %96 = vset.pattern.permute.xlu0 0
    %97 = vperm.xlu0 %96, %v59
    %v98 = vpop.permute.xlu0 %97
    %101 = vset.pattern.permute.xlu0 0
    %102 = vperm.xlu0 %101, %v60
    %v103 = vpop.permute.xlu0 %102
    %106 = vset.pattern.permute.xlu0 0
    %107 = vperm.xlu0 %106, %v61
    %v108 = vpop.permute.xlu0 %107
    %111 = vset.pattern.permute.xlu0 0
    %112 = vperm.xlu0 %111, %v62
    %v113 = vpop.permute.xlu0 %112
    %116 = vset.pattern.permute.xlu0 0
    %117 = vperm.xlu0 %116, %v63
    %v118 = vpop.permute.xlu0 %117
    %121 = vset.pattern.permute.xlu0 0
    %122 = vperm.xlu0 %121, %v64
    %v123 = vpop.permute.xlu0 %122
    %126 = vset.pattern.permute.xlu0 0
    %127 = vperm.xlu0 %126, %v65
    %v128 = vpop.permute.xlu0 %127
    %131 = vset.pattern.permute.xlu0 0
    %132 = vperm.xlu0 %131, %v66
    %v133 = vpop.permute.xlu0 %132
    %136 = vset.pattern.permute.xlu0 0
    %137 = vperm.xlu0 %136, %v67
    %v138 = vpop.permute.xlu0 %137
    %141 = vset.pattern.permute.xlu0 0
    %142 = vperm.xlu0 %141, %v68
    %v143 = vpop.permute.xlu0 %142
    %146 = vset.pattern.permute.xlu0 0
    %147 = vperm.xlu0 %146, %v69
    %v148 = vpop.permute.xlu0 %147
    %v166 = vunpack.c.l.b16 %v38
    %v167 = vunpack.c.l.b16 %v39
    %v168 = vunpack.c.l.b16 %v40
    %v169 = vunpack.c.l.b16 %v41
    %v170 = vunpack.c.l.b16 %v42
    %v171 = vunpack.c.l.b16 %v43
    %v172 = vunpack.c.l.b16 %v44
    %v173 = vunpack.c.l.b16 %v45
    %v174 = vunpack.c.l.b16 %v46
    %v175 = vunpack.c.l.b16 %v47
    %v176 = vunpack.c.l.b16 %v48
    %v177 = vunpack.c.l.b16 %v49
    %v178 = vunpack.c.l.b16 %v50
    %v179 = vunpack.c.l.b16 %v51
    %v180 = vunpack.c.l.b16 %v52
    %v181 = vunpack.c.l.b16 %v53
    %v182 = vpack.c.b16 %v167, %v166
    %v183 = vpack.c.b16 %v169, %v168
    %v184 = vpack.c.b16 %v171, %v170
    %v185 = vpack.c.b16 %v173, %v172
    %v186 = vpack.c.b16 %v175, %v174
    %v187 = vpack.c.b16 %v177, %v176
    %v188 = vpack.c.b16 %v179, %v178
    %v189 = vpack.c.b16 %v181, %v180
    %vm190 = vcmask 64512
    %v192 = vsel %vm190, %v182, 0
    %v195 = vsel %vm190, %v183, 0
    %v198 = vsel %vm190, %v184, 0
    %v201 = vsel %vm190, %v185, 0
    %v204 = vsel %vm190, %v186, 0
    %v207 = vsel %vm190, %v187, 0
    %v210 = vsel %vm190, %v188, 0
    %v213 = vsel %vm190, %v189, 0
    %vm215 = vcmask 1043456
    %v217 = vsel %vm215, %v36, 0
    %v220 = vsel %vm215, %v37, 0
    %222 = vmatprep.subr.bf16.mxu0 %v220
    %223 = vmatpush1.bf16.msra.mxu0 %v217
    %224 = vmatprep.subr.bf16.mxu0 0
    %225 = vmatpush1.bf16.msra.mxu0 0
    %226 = vmatprep.subr.bf16.mxu0 0
    %227 = vmatpush1.bf16.msra.mxu0 0
    %228 = vmatprep.subr.bf16.mxu0 0
    %229 = vmatpush1.bf16.msra.mxu0 0
    %230 = vmatprep.subr.bf16.mxu0 0
    %231 = vmatpush1.bf16.msra.mxu0 0
    %232 = vmatprep.subr.bf16.mxu0 0
    %233 = vmatpush1.bf16.msra.mxu0 0
    %234 = vmatprep.subr.bf16.mxu0 0
    %235 = vmatpush1.bf16.msra.mxu0 0
    %236 = vmatprep.subr.bf16.mxu0 0
    %237 = vmatpush1.bf16.msra.mxu0 0
    %238 = vmatprep.subr.bf16.mxu0 0
    %239 = vmatpush1.bf16.msra.mxu0 0
    %240 = vmatprep.subr.bf16.mxu0 0
    %241 = vmatpush1.bf16.msra.mxu0 0
    %242 = vmatprep.subr.bf16.mxu0 0
    %243 = vmatpush1.bf16.msra.mxu0 0
    %244 = vmatprep.subr.bf16.mxu0 0
    %245 = vmatpush1.bf16.msra.mxu0 0
    %246 = vmatprep.subr.bf16.mxu0 0
    %247 = vmatpush1.bf16.msra.mxu0 0
    %248 = vmatprep.subr.bf16.mxu0 0
    %249 = vmatpush1.bf16.msra.mxu0 0
    %250 = vmatprep.subr.bf16.mxu0 0
    %251 = vmatpush1.bf16.msra.mxu0 0
    %252 = vmatprep.subr.bf16.mxu0 0
    %253 = vmatpush1.bf16.msra.mxu0 0
    %254 = vmatprep.mubr.bf16.mxu0 0
    %255 = vmatmul.mubr.bf16.gmra.mrb[0].mxu0 %v192
    %v256 = vpop.f32.mrb[0].mxu0
    %v257 = vadd.f32 %v73, %v256
    %v258 = vpop.f32.mrb[0].mxu0
    %v259 = vadd.f32 %v73, %v258
    %v260 = vpop.f32.mrb[0].mxu0
    %v261 = vadd.f32 %v78, %v260
    %v262 = vpop.f32.mrb[0].mxu0
    %v263 = vadd.f32 %v78, %v262
    %264 = vmatprep.mubr.bf16.mxu0 0
    %265 = vmatmul.mubr.bf16.gmra.mrb[0].mxu0 %v195
    %v266 = vpop.f32.mrb[0].mxu0
    %v267 = vadd.f32 %v83, %v266
    %v268 = vpop.f32.mrb[0].mxu0
    %v269 = vadd.f32 %v83, %v268
    %v270 = vpop.f32.mrb[0].mxu0
    %v271 = vadd.f32 %v88, %v270
    %v272 = vpop.f32.mrb[0].mxu0
    %v273 = vadd.f32 %v88, %v272
    %274 = vmatprep.mubr.bf16.mxu0 0
    %275 = vmatmul.mubr.bf16.gmra.mrb[0].mxu0 %v198
    %v276 = vpop.f32.mrb[0].mxu0
    %v277 = vadd.f32 %v93, %v276
    %v278 = vpop.f32.mrb[0].mxu0
    %v279 = vadd.f32 %v93, %v278
    %v280 = vpop.f32.mrb[0].mxu0
    %v281 = vadd.f32 %v98, %v280
    %v282 = vpop.f32.mrb[0].mxu0
    %v283 = vadd.f32 %v98, %v282
    %284 = vmatprep.mubr.bf16.mxu0 0
    %285 = vmatmul.mubr.bf16.gmra.mrb[0].mxu0 %v201
    %v286 = vpop.f32.mrb[0].mxu0
    %v287 = vadd.f32 %v103, %v286
    %v288 = vpop.f32.mrb[0].mxu0
    %v289 = vadd.f32 %v103, %v288
    %v290 = vpop.f32.mrb[0].mxu0
    %v291 = vadd.f32 %v108, %v290
    %v292 = vpop.f32.mrb[0].mxu0
    %v293 = vadd.f32 %v108, %v292
    %294 = vmatprep.mubr.bf16.mxu0 0
    %295 = vmatmul.mubr.bf16.gmra.mrb[0].mxu0 %v204
    %v296 = vpop.f32.mrb[0].mxu0
    %v297 = vadd.f32 %v113, %v296
    %v298 = vpop.f32.mrb[0].mxu0
    %v299 = vadd.f32 %v113, %v298
    %v300 = vpop.f32.mrb[0].mxu0
    %v301 = vadd.f32 %v118, %v300
    %v302 = vpop.f32.mrb[0].mxu0
    %v303 = vadd.f32 %v118, %v302
    %304 = vmatprep.mubr.bf16.mxu0 0
    %305 = vmatmul.mubr.bf16.gmra.mrb[0].mxu0 %v207
    %v306 = vpop.f32.mrb[0].mxu0
    %v307 = vadd.f32 %v123, %v306
    %v308 = vpop.f32.mrb[0].mxu0
    %v309 = vadd.f32 %v123, %v308
    %v310 = vpop.f32.mrb[0].mxu0
    %v311 = vadd.f32 %v128, %v310
    %v312 = vpop.f32.mrb[0].mxu0
    %v313 = vadd.f32 %v128, %v312
    %314 = vmatprep.mubr.bf16.mxu0 0
    %315 = vmatmul.mubr.bf16.gmra.mrb[0].mxu0 %v210
    %v316 = vpop.f32.mrb[0].mxu0
    %v317 = vadd.f32 %v133, %v316
    %v318 = vpop.f32.mrb[0].mxu0
    %v319 = vadd.f32 %v133, %v318
    %v320 = vpop.f32.mrb[0].mxu0
    %v321 = vadd.f32 %v138, %v320
    %v322 = vpop.f32.mrb[0].mxu0
    %v323 = vadd.f32 %v138, %v322
    %324 = vmatprep.mubr.bf16.mxu0 0
    %325 = vmatmul.mubr.bf16.gmra.mrb[0].mxu0 %v213
    %v326 = vpop.f32.mrb[0].mxu0
    %v327 = vadd.f32 %v143, %v326
    %v328 = vpop.f32.mrb[0].mxu0
    %v329 = vadd.f32 %v143, %v328
    %v330 = vpop.f32.mrb[0].mxu0
    %v331 = vadd.f32 %v148, %v330
    %v332 = vpop.f32.mrb[0].mxu0
    %v333 = vadd.f32 %v148, %v332
    %334 = vdwg.mxu0
    %v335 = vld [vmem:[%s4] sm:$0xff]
    %v336 = vld [vmem:[%s4 + $0x8] sm:$0xff]
    %v337 = vld [vmem:[%s4 + $0x10] sm:$0xff]
    %v338 = vld [vmem:[%s4 + $0x18] sm:$0xff]
    %v339 = vld [vmem:[%s4 + $0x20] sm:$0xff]
    %v340 = vld [vmem:[%s4 + $0x28] sm:$0xff]
    %v341 = vld [vmem:[%s4 + $0x30] sm:$0xff]
    %v342 = vld [vmem:[%s4 + $0x38] sm:$0xff]
    %v343 = vld [vmem:[%s4 + $0x40] sm:$0xff]
    %v344 = vld [vmem:[%s4 + $0x48] sm:$0xff]
    %v345 = vld [vmem:[%s4 + $0x50] sm:$0xff]
    %v346 = vld [vmem:[%s4 + $0x58] sm:$0xff]
    %v347 = vld [vmem:[%s4 + $0x60] sm:$0xff]
    %v348 = vld [vmem:[%s4 + $0x68] sm:$0xff]
    %v349 = vld [vmem:[%s4 + $0x70] sm:$0xff]
    %v350 = vld [vmem:[%s4 + $0x78] sm:$0xff]
    %v351 = vld [vmem:[%s4 + $0x80] sm:$0xff]
    %v352 = vld [vmem:[%s4 + $0x88] sm:$0xff]
    %v353 = vld [vmem:[%s4 + $0x90] sm:$0xff]
    %v354 = vld [vmem:[%s4 + $0x98] sm:$0xff]
    %v355 = vld [vmem:[%s4 + $0xa0] sm:$0xff]
    %v356 = vld [vmem:[%s4 + $0xa8] sm:$0xff]
    %v357 = vld [vmem:[%s4 + $0xb0] sm:$0xff]
    %v358 = vld [vmem:[%s4 + $0xb8] sm:$0xff]
    %v359 = vld [vmem:[%s4 + $0xc0] sm:$0xff]
    %v360 = vld [vmem:[%s4 + $0xc8] sm:$0xff]
    %v361 = vld [vmem:[%s4 + $0xd0] sm:$0xff]
    %v362 = vld [vmem:[%s4 + $0xd8] sm:$0xff]
    %v363 = vld [vmem:[%s4 + $0xe0] sm:$0xff]
    %v364 = vld [vmem:[%s4 + $0xe8] sm:$0xff]
    %v365 = vld [vmem:[%s4 + $0xf0] sm:$0xff]
    %v366 = vld [vmem:[%s4 + $0xf8] sm:$0xff]
    %v367 = vld [vmem:[%s4 + $0x100] sm:$0xff]
    %v368 = vld [vmem:[%s4 + $0x108] sm:$0xff]
    %v369 = vld [vmem:[%s4 + $0x110] sm:$0xff]
    %v370 = vld [vmem:[%s4 + $0x118] sm:$0xff]
    %v371 = vld [vmem:[%s4 + $0x120] sm:$0xff]
    %v372 = vld [vmem:[%s4 + $0x128] sm:$0xff]
    %v373 = vld [vmem:[%s4 + $0x130] sm:$0xff]
    %v374 = vld [vmem:[%s4 + $0x138] sm:$0xff]
    %v375 = vld [vmem:[%s4 + $0x140] sm:$0xff]
    %v376 = vld [vmem:[%s4 + $0x148] sm:$0xff]
    %v377 = vld [vmem:[%s4 + $0x150] sm:$0xff]
    %v378 = vld [vmem:[%s4 + $0x158] sm:$0xff]
    %v379 = vld [vmem:[%s4 + $0x160] sm:$0xff]
    %v380 = vld [vmem:[%s4 + $0x168] sm:$0xff]
    %v381 = vld [vmem:[%s4 + $0x170] sm:$0xff]
    %v382 = vld [vmem:[%s4 + $0x178] sm:$0xff]
    %v383 = vld [vmem:[%s4 + $0x180] sm:$0xff]
    %v384 = vld [vmem:[%s4 + $0x188] sm:$0xff]
    %v385 = vld [vmem:[%s4 + $0x190] sm:$0xff]
    %v386 = vld [vmem:[%s4 + $0x198] sm:$0xff]
    %v387 = vld [vmem:[%s4 + $0x1a0] sm:$0xff]
    %v388 = vld [vmem:[%s4 + $0x1a8] sm:$0xff]
    %v389 = vld [vmem:[%s4 + $0x1b0] sm:$0xff]
    %v390 = vld [vmem:[%s4 + $0x1b8] sm:$0xff]
    %v391 = vld [vmem:[%s4 + $0x1c0] sm:$0xff]
    %v392 = vld [vmem:[%s4 + $0x1c8] sm:$0xff]
    %v393 = vld [vmem:[%s4 + $0x1d0] sm:$0xff]
    %v394 = vld [vmem:[%s4 + $0x1d8] sm:$0xff]
    %v395 = vld [vmem:[%s4 + $0x1e0] sm:$0xff]
    %v396 = vld [vmem:[%s4 + $0x1e8] sm:$0xff]
    %v397 = vld [vmem:[%s4 + $0x1f0] sm:$0xff]
    %v398 = vld [vmem:[%s4 + $0x1f8] sm:$0xff]
    %v399 = vld [vmem:[%s6] sm:$0xff]
    %v400 = vld [vmem:[%s6 + $0x8] sm:$0xff]
    %v401 = vld [vmem:[%s6 + $0x10] sm:$0xff]
    %v402 = vld [vmem:[%s6 + $0x18] sm:$0xff]
    %v403 = vld [vmem:[%s6 + $0x20] sm:$0xff]
    %v404 = vld [vmem:[%s6 + $0x28] sm:$0xff]
    %v405 = vld [vmem:[%s6 + $0x30] sm:$0xff]
    %v406 = vld [vmem:[%s6 + $0x38] sm:$0xff]
    %v407 = vld [vmem:[%s6 + $0x40] sm:$0xff]
    %v408 = vld [vmem:[%s6 + $0x48] sm:$0xff]
    %v409 = vld [vmem:[%s6 + $0x50] sm:$0xff]
    %v410 = vld [vmem:[%s6 + $0x58] sm:$0xff]
    %v411 = vld [vmem:[%s6 + $0x60] sm:$0xff]
    %v412 = vld [vmem:[%s6 + $0x68] sm:$0xff]
    %v413 = vld [vmem:[%s6 + $0x70] sm:$0xff]
    %v414 = vld [vmem:[%s6 + $0x78] sm:$0xff]
    %v415 = vld [vmem:[%s6 + $0x80] sm:$0xff]
    %v416 = vld [vmem:[%s6 + $0x88] sm:$0xff]
    %v417 = vld [vmem:[%s6 + $0x90] sm:$0xff]
    %v418 = vld [vmem:[%s6 + $0x98] sm:$0xff]
    %v419 = vld [vmem:[%s6 + $0xa0] sm:$0xff]
    %v420 = vld [vmem:[%s6 + $0xa8] sm:$0xff]
    %v421 = vld [vmem:[%s6 + $0xb0] sm:$0xff]
    %v422 = vld [vmem:[%s6 + $0xb8] sm:$0xff]
    %v423 = vld [vmem:[%s6 + $0xc0] sm:$0xff]
    %v424 = vld [vmem:[%s6 + $0xc8] sm:$0xff]
    %v425 = vld [vmem:[%s6 + $0xd0] sm:$0xff]
    %v426 = vld [vmem:[%s6 + $0xd8] sm:$0xff]
    %v427 = vld [vmem:[%s6 + $0xe0] sm:$0xff]
    %v428 = vld [vmem:[%s6 + $0xe8] sm:$0xff]
    %v429 = vld [vmem:[%s6 + $0xf0] sm:$0xff]
    %v430 = vld [vmem:[%s6 + $0xf8] sm:$0xff]
    %v431 = vld [vmem:[%s6 + $0x100] sm:$0xff]
    %v432 = vld [vmem:[%s6 + $0x108] sm:$0xff]
    %v433 = vld [vmem:[%s6 + $0x110] sm:$0xff]
    %v434 = vld [vmem:[%s6 + $0x118] sm:$0xff]
    %v435 = vld [vmem:[%s6 + $0x120] sm:$0xff]
    %v436 = vld [vmem:[%s6 + $0x128] sm:$0xff]
    %v437 = vld [vmem:[%s6 + $0x130] sm:$0xff]
    %v438 = vld [vmem:[%s6 + $0x138] sm:$0xff]
    %v439 = vld [vmem:[%s6 + $0x140] sm:$0xff]
    %v440 = vld [vmem:[%s6 + $0x148] sm:$0xff]
    %v441 = vld [vmem:[%s6 + $0x150] sm:$0xff]
    %v442 = vld [vmem:[%s6 + $0x158] sm:$0xff]
    %v443 = vld [vmem:[%s6 + $0x160] sm:$0xff]
    %v444 = vld [vmem:[%s6 + $0x168] sm:$0xff]
    %v445 = vld [vmem:[%s6 + $0x170] sm:$0xff]
    %v446 = vld [vmem:[%s6 + $0x178] sm:$0xff]
    %v447 = vld [vmem:[%s6 + $0x180] sm:$0xff]
    %v448 = vld [vmem:[%s6 + $0x188] sm:$0xff]
    %v449 = vld [vmem:[%s6 + $0x190] sm:$0xff]
    %v450 = vld [vmem:[%s6 + $0x198] sm:$0xff]
    %v451 = vld [vmem:[%s6 + $0x1a0] sm:$0xff]
    %v452 = vld [vmem:[%s6 + $0x1a8] sm:$0xff]
    %v453 = vld [vmem:[%s6 + $0x1b0] sm:$0xff]
    %v454 = vld [vmem:[%s6 + $0x1b8] sm:$0xff]
    %v455 = vld [vmem:[%s6 + $0x1c0] sm:$0xff]
    %v456 = vld [vmem:[%s6 + $0x1c8] sm:$0xff]
    %v457 = vld [vmem:[%s6 + $0x1d0] sm:$0xff]
    %v458 = vld [vmem:[%s6 + $0x1d8] sm:$0xff]
    %v459 = vld [vmem:[%s6 + $0x1e0] sm:$0xff]
    %v460 = vld [vmem:[%s6 + $0x1e8] sm:$0xff]
    %v461 = vld [vmem:[%s6 + $0x1f0] sm:$0xff]
    %v462 = vld [vmem:[%s6 + $0x1f8] sm:$0xff]
    %v463 = vld [vmem:[%s3] sm:$0xf]
    %v464 = vld [vmem:[%s3 + $0x4] sm:$0xf]
    %v465 = vld [vmem:[%s3 + $0x8] sm:$0xf]
    %v466 = vld [vmem:[%s3 + $0xc] sm:$0xf]
    %v467 = vld [vmem:[%s3 + $0x10] sm:$0xf]
    %v468 = vld [vmem:[%s3 + $0x14] sm:$0xf]
    %v469 = vld [vmem:[%s3 + $0x18] sm:$0xf]
    %v470 = vld [vmem:[%s3 + $0x1c] sm:$0xf]
    %v471 = vld [vmem:[%s3 + $0x20] sm:$0xf]
    %v472 = vld [vmem:[%s3 + $0x24] sm:$0xf]
    %v473 = vld [vmem:[%s3 + $0x28] sm:$0xf]
    %v474 = vld [vmem:[%s3 + $0x2c] sm:$0xf]
    %v475 = vld [vmem:[%s3 + $0x30] sm:$0xf]
    %v476 = vld [vmem:[%s3 + $0x34] sm:$0xf]
    %v477 = vld [vmem:[%s3 + $0x38] sm:$0xf]
    %v478 = vld [vmem:[%s3 + $0x3c] sm:$0xf]
    %v479 = vpack.c.bf16 %v261, %v257
    %v480 = vpack.c.bf16 %v263, %v259
    %v481 = vpack.c.bf16 %v271, %v267
    %v482 = vpack.c.bf16 %v273, %v269
    %v483 = vpack.c.bf16 %v281, %v277
    %v484 = vpack.c.bf16 %v283, %v279
    %v485 = vpack.c.bf16 %v291, %v287
    %v486 = vpack.c.bf16 %v293, %v289
    %v487 = vpack.c.bf16 %v301, %v297
    %v488 = vpack.c.bf16 %v303, %v299
    %v489 = vpack.c.bf16 %v311, %v307
    %v490 = vpack.c.bf16 %v313, %v309
    %v491 = vpack.c.bf16 %v321, %v317
    %v492 = vpack.c.bf16 %v323, %v319
    %v493 = vpack.c.bf16 %v331, %v327
    %v494 = vpack.c.bf16 %v333, %v329
    %496 = vset.pattern.permute.xlu0 0
    %497 = vperm.xlu0 %496, %v335
    %v498 = vpop.permute.xlu0 %497
    %501 = vset.pattern.permute.xlu0 0
    %502 = vperm.xlu0 %501, %v336
    %v503 = vpop.permute.xlu0 %502
    %506 = vset.pattern.permute.xlu0 0
    %507 = vperm.xlu0 %506, %v337
    %v508 = vpop.permute.xlu0 %507
    %511 = vset.pattern.permute.xlu0 0
    %512 = vperm.xlu0 %511, %v338
    %v513 = vpop.permute.xlu0 %512
    %516 = vset.pattern.permute.xlu0 0
    %517 = vperm.xlu0 %516, %v339
    %v518 = vpop.permute.xlu0 %517
    %521 = vset.pattern.permute.xlu0 0
    %522 = vperm.xlu0 %521, %v340
    %v523 = vpop.permute.xlu0 %522
    %526 = vset.pattern.permute.xlu0 0
    %527 = vperm.xlu0 %526, %v341
    %v528 = vpop.permute.xlu0 %527
    %531 = vset.pattern.permute.xlu0 0
    %532 = vperm.xlu0 %531, %v342
    %v533 = vpop.permute.xlu0 %532
    %536 = vset.pattern.permute.xlu0 0
    %537 = vperm.xlu0 %536, %v343
    %v538 = vpop.permute.xlu0 %537
    %541 = vset.pattern.permute.xlu0 0
    %542 = vperm.xlu0 %541, %v344
    %v543 = vpop.permute.xlu0 %542
    %546 = vset.pattern.permute.xlu0 0
    %547 = vperm.xlu0 %546, %v345
    %v548 = vpop.permute.xlu0 %547
    %551 = vset.pattern.permute.xlu0 0
    %552 = vperm.xlu0 %551, %v346
    %v553 = vpop.permute.xlu0 %552
    %556 = vset.pattern.permute.xlu0 0
    %557 = vperm.xlu0 %556, %v347
    %v558 = vpop.permute.xlu0 %557
    %561 = vset.pattern.permute.xlu0 0
    %562 = vperm.xlu0 %561, %v348
    %v563 = vpop.permute.xlu0 %562
    %566 = vset.pattern.permute.xlu0 0
    %567 = vperm.xlu0 %566, %v349
    %v568 = vpop.permute.xlu0 %567
    %571 = vset.pattern.permute.xlu0 0
    %572 = vperm.xlu0 %571, %v350
    %v573 = vpop.permute.xlu0 %572
    %v591 = vunpack.c.l.b16 %v463
    %v592 = vunpack.c.l.b16 %v464
    %v593 = vunpack.c.l.b16 %v465
    %v594 = vunpack.c.l.b16 %v466
    %v595 = vunpack.c.l.b16 %v467
    %v596 = vunpack.c.l.b16 %v468
    %v597 = vunpack.c.l.b16 %v469
    %v598 = vunpack.c.l.b16 %v470
    %v599 = vunpack.c.l.b16 %v471
    %v600 = vunpack.c.l.b16 %v472
    %v601 = vunpack.c.l.b16 %v473
    %v602 = vunpack.c.l.b16 %v474
    %v603 = vunpack.c.l.b16 %v475
    %v604 = vunpack.c.l.b16 %v476
    %v605 = vunpack.c.l.b16 %v477
    %v606 = vunpack.c.l.b16 %v478
    %v607 = vpack.c.b16 %v592, %v591
    %v608 = vpack.c.b16 %v594, %v593
    %v609 = vpack.c.b16 %v596, %v595
    %v610 = vpack.c.b16 %v598, %v597
    %v611 = vpack.c.b16 %v600, %v599
    %v612 = vpack.c.b16 %v602, %v601
    %v613 = vpack.c.b16 %v604, %v603
    %v614 = vpack.c.b16 %v606, %v605
    %623 = vmatprep.subr.bf16.mxu0 %v480
    %624 = vmatpush1.bf16.msra.mxu0 %v479
    %625 = vmatprep.subr.bf16.mxu0 %v482
    %626 = vmatpush1.bf16.msra.mxu0 %v481
    %627 = vmatprep.subr.bf16.mxu0 %v484
    %628 = vmatpush1.bf16.msra.mxu0 %v483
    %629 = vmatprep.subr.bf16.mxu0 %v486
    %630 = vmatpush1.bf16.msra.mxu0 %v485
    %631 = vmatprep.subr.bf16.mxu0 %v488
    %632 = vmatpush1.bf16.msra.mxu0 %v487
    %633 = vmatprep.subr.bf16.mxu0 %v490
    %634 = vmatpush1.bf16.msra.mxu0 %v489
    %635 = vmatprep.subr.bf16.mxu0 %v492
    %636 = vmatpush1.bf16.msra.mxu0 %v491
    %637 = vmatprep.subr.bf16.mxu0 %v494
    %638 = vmatpush1.bf16.msra.mxu0 %v493
    %639 = vmatprep.subr.bf16.mxu0 0
    %640 = vmatpush1.bf16.msra.mxu0 0
    %641 = vmatprep.subr.bf16.mxu0 0
    %642 = vmatpush1.bf16.msra.mxu0 0
    %643 = vmatprep.subr.bf16.mxu0 0
    %644 = vmatpush1.bf16.msra.mxu0 0
    %645 = vmatprep.subr.bf16.mxu0 0
    %646 = vmatpush1.bf16.msra.mxu0 0
    %647 = vmatprep.subr.bf16.mxu0 0
    %648 = vmatpush1.bf16.msra.mxu0 0
    %649 = vmatprep.subr.bf16.mxu0 0
    %650 = vmatpush1.bf16.msra.mxu0 0
    %651 = vmatprep.subr.bf16.mxu0 0
    %652 = vmatpush1.bf16.msra.mxu0 0
    %653 = vmatprep.subr.bf16.mxu0 0
    %654 = vmatpush1.bf16.msra.mxu0 0
    %655 = vmatprep.mubr.bf16.mxu0 0
    %656 = vmatmul.mubr.bf16.gmra.mrb[0].mxu0 %v607
    %v657 = vpop.f32.mrb[0].mxu0
    %v658 = vadd.f32 %v498, %v657
    %v659 = vpop.f32.mrb[0].mxu0
    %v660 = vadd.f32 %v498, %v659
    %v661 = vpop.f32.mrb[0].mxu0
    %v662 = vadd.f32 %v503, %v661
    %v663 = vpop.f32.mrb[0].mxu0
    %v664 = vadd.f32 %v503, %v663
    %665 = vmatprep.mubr.bf16.mxu0 0
    %666 = vmatmul.mubr.bf16.gmra.mrb[0].mxu0 %v608
    %v667 = vpop.f32.mrb[0].mxu0
    %v668 = vadd.f32 %v508, %v667
    %v669 = vpop.f32.mrb[0].mxu0
    %v670 = vadd.f32 %v508, %v669
    %v671 = vpop.f32.mrb[0].mxu0
    %v672 = vadd.f32 %v513, %v671
    %v673 = vpop.f32.mrb[0].mxu0
    %v674 = vadd.f32 %v513, %v673
    %675 = vmatprep.mubr.bf16.mxu0 0
    %676 = vmatmul.mubr.bf16.gmra.mrb[0].mxu0 %v609
    %v677 = vpop.f32.mrb[0].mxu0
    %v678 = vadd.f32 %v518, %v677
    %v679 = vpop.f32.mrb[0].mxu0
    %v680 = vadd.f32 %v518, %v679
    %v681 = vpop.f32.mrb[0].mxu0
    %v682 = vadd.f32 %v523, %v681
    %v683 = vpop.f32.mrb[0].mxu0
    %v684 = vadd.f32 %v523, %v683
    %685 = vmatprep.mubr.bf16.mxu0 0
    %686 = vmatmul.mubr.bf16.gmra.mrb[0].mxu0 %v610
    %v687 = vpop.f32.mrb[0].mxu0
    %v688 = vadd.f32 %v528, %v687
    %v689 = vpop.f32.mrb[0].mxu0
    %v690 = vadd.f32 %v528, %v689
    %v691 = vpop.f32.mrb[0].mxu0
    %v692 = vadd.f32 %v533, %v691
    %v693 = vpop.f32.mrb[0].mxu0
    %v694 = vadd.f32 %v533, %v693
    %695 = vmatprep.mubr.bf16.mxu0 0
    %696 = vmatmul.mubr.bf16.gmra.mrb[0].mxu0 %v611
    %v697 = vpop.f32.mrb[0].mxu0
    %v698 = vadd.f32 %v538, %v697
    %v699 = vpop.f32.mrb[0].mxu0
    %v700 = vadd.f32 %v538, %v699
    %v701 = vpop.f32.mrb[0].mxu0
    %v702 = vadd.f32 %v543, %v701
    %v703 = vpop.f32.mrb[0].mxu0
    %v704 = vadd.f32 %v543, %v703
    %705 = vmatprep.mubr.bf16.mxu0 0
    %706 = vmatmul.mubr.bf16.gmra.mrb[0].mxu0 %v612
    %v707 = vpop.f32.mrb[0].mxu0
    %v708 = vadd.f32 %v548, %v707
    %v709 = vpop.f32.mrb[0].mxu0
    %v710 = vadd.f32 %v548, %v709
    %v711 = vpop.f32.mrb[0].mxu0
    %v712 = vadd.f32 %v553, %v711
    %v713 = vpop.f32.mrb[0].mxu0
    %v714 = vadd.f32 %v553, %v713
    %715 = vmatprep.mubr.bf16.mxu0 0
    %716 = vmatmul.mubr.bf16.gmra.mrb[0].mxu0 %v613
    %v717 = vpop.f32.mrb[0].mxu0
    %v718 = vadd.f32 %v558, %v717
    %v719 = vpop.f32.mrb[0].mxu0
    %v720 = vadd.f32 %v558, %v719
    %v721 = vpop.f32.mrb[0].mxu0
    %v722 = vadd.f32 %v563, %v721
    %v723 = vpop.f32.mrb[0].mxu0
    %v724 = vadd.f32 %v563, %v723
    %725 = vmatprep.mubr.bf16.mxu0 0
    %726 = vmatmul.mubr.bf16.gmra.mrb[0].mxu0 %v614
    %v727 = vpop.f32.mrb[0].mxu0
    %v728 = vadd.f32 %v568, %v727
    %v729 = vpop.f32.mrb[0].mxu0
    %v730 = vadd.f32 %v568, %v729
    %v731 = vpop.f32.mrb[0].mxu0
    %v732 = vadd.f32 %v573, %v731
    %v733 = vpop.f32.mrb[0].mxu0
    %v734 = vadd.f32 %v573, %v733
    %735 = vdwg.mxu0
    %v736 = vtanh.pop %v658
    %v737 = vtanh.pop %v660
    %v738 = vtanh.pop %v662
    %v739 = vtanh.pop %v664
    %v740 = vtanh.pop %v668
    %v741 = vtanh.pop %v670
    %v742 = vtanh.pop %v672
    %v743 = vtanh.pop %v674
    %v744 = vtanh.pop %v678
    %v745 = vtanh.pop %v680
    %v746 = vtanh.pop %v682
    %v747 = vtanh.pop %v684
    %v748 = vtanh.pop %v688
    %v749 = vtanh.pop %v690
    %v750 = vtanh.pop %v692
    %v751 = vtanh.pop %v694
    %v752 = vtanh.pop %v698
    %v753 = vtanh.pop %v700
    %v754 = vtanh.pop %v702
    %v755 = vtanh.pop %v704
    %v756 = vtanh.pop %v708
    %v757 = vtanh.pop %v710
    %v758 = vtanh.pop %v712
    %v759 = vtanh.pop %v714
    %v760 = vtanh.pop %v718
    %v761 = vtanh.pop %v720
    %v762 = vtanh.pop %v722
    %v763 = vtanh.pop %v724
    %v764 = vtanh.pop %v728
    %v765 = vtanh.pop %v730
    %v766 = vtanh.pop %v732
    %v767 = vtanh.pop %v734
    %v768 = vpack.c.bf16 %v738, %v736
    %v769 = vpack.c.bf16 %v739, %v737
    %v770 = vpack.c.bf16 %v742, %v740
    %v771 = vpack.c.bf16 %v743, %v741
    %v772 = vpack.c.bf16 %v746, %v744
    %v773 = vpack.c.bf16 %v747, %v745
    %v774 = vpack.c.bf16 %v750, %v748
    %v775 = vpack.c.bf16 %v751, %v749
    %v776 = vpack.c.bf16 %v754, %v752
    %v777 = vpack.c.bf16 %v755, %v753
    %v778 = vpack.c.bf16 %v758, %v756
    %v779 = vpack.c.bf16 %v759, %v757
    %v780 = vpack.c.bf16 %v762, %v760
    %v781 = vpack.c.bf16 %v763, %v761
    %v782 = vpack.c.bf16 %v766, %v764
    %v783 = vpack.c.bf16 %v767, %v765
    %v784 = vld [vmem:[%s5] sm:$0xf]
    %v785 = vld [vmem:[%s5 + $0x4] sm:$0xf]
    %v786 = vld [vmem:[%s5 + $0x8] sm:$0xf]
    %v787 = vld [vmem:[%s5 + $0xc] sm:$0xf]
    %v788 = vld [vmem:[%s5 + $0x10] sm:$0xf]
    %v789 = vld [vmem:[%s5 + $0x14] sm:$0xf]
    %v790 = vld [vmem:[%s5 + $0x18] sm:$0xf]
    %v791 = vld [vmem:[%s5 + $0x1c] sm:$0xf]
    %v792 = vld [vmem:[%s5 + $0x20] sm:$0xf]
    %v793 = vld [vmem:[%s5 + $0x24] sm:$0xf]
    %v794 = vld [vmem:[%s5 + $0x28] sm:$0xf]
    %v795 = vld [vmem:[%s5 + $0x2c] sm:$0xf]
    %v796 = vld [vmem:[%s5 + $0x30] sm:$0xf]
    %v797 = vld [vmem:[%s5 + $0x34] sm:$0xf]
    %v798 = vld [vmem:[%s5 + $0x38] sm:$0xf]
    %v799 = vld [vmem:[%s5 + $0x3c] sm:$0xf]
    %801 = vset.pattern.permute.xlu0 0
    %802 = vperm.xlu0 %801, %v399
    %v803 = vpop.permute.xlu0 %802
    %806 = vset.pattern.permute.xlu0 0
    %807 = vperm.xlu0 %806, %v400
    %v808 = vpop.permute.xlu0 %807
    %811 = vset.pattern.permute.xlu0 0
    %812 = vperm.xlu0 %811, %v401
    %v813 = vpop.permute.xlu0 %812
    %816 = vset.pattern.permute.xlu0 0
    %817 = vperm.xlu0 %816, %v402
    %v818 = vpop.permute.xlu0 %817
    %821 = vset.pattern.permute.xlu0 0
    %822 = vperm.xlu0 %821, %v403
    %v823 = vpop.permute.xlu0 %822
    %826 = vset.pattern.permute.xlu0 0
    %827 = vperm.xlu0 %826, %v404
    %v828 = vpop.permute.xlu0 %827
    %831 = vset.pattern.permute.xlu0 0
    %832 = vperm.xlu0 %831, %v405
    %v833 = vpop.permute.xlu0 %832
    %836 = vset.pattern.permute.xlu0 0
    %837 = vperm.xlu0 %836, %v406
    %v838 = vpop.permute.xlu0 %837
    %841 = vset.pattern.permute.xlu0 0
    %842 = vperm.xlu0 %841, %v407
    %v843 = vpop.permute.xlu0 %842
    %846 = vset.pattern.permute.xlu0 0
    %847 = vperm.xlu0 %846, %v408
    %v848 = vpop.permute.xlu0 %847
    %851 = vset.pattern.permute.xlu0 0
    %852 = vperm.xlu0 %851, %v409
    %v853 = vpop.permute.xlu0 %852
    %856 = vset.pattern.permute.xlu0 0
    %857 = vperm.xlu0 %856, %v410
    %v858 = vpop.permute.xlu0 %857
    %861 = vset.pattern.permute.xlu0 0
    %862 = vperm.xlu0 %861, %v411
    %v863 = vpop.permute.xlu0 %862
    %866 = vset.pattern.permute.xlu0 0
    %867 = vperm.xlu0 %866, %v412
    %v868 = vpop.permute.xlu0 %867
    %871 = vset.pattern.permute.xlu0 0
    %872 = vperm.xlu0 %871, %v413
    %v873 = vpop.permute.xlu0 %872
    %876 = vset.pattern.permute.xlu0 0
    %877 = vperm.xlu0 %876, %v414
    %v878 = vpop.permute.xlu0 %877
    %v896 = vunpack.c.l.b16 %v784
    %v897 = vunpack.c.l.b16 %v785
    %v898 = vunpack.c.l.b16 %v786
    %v899 = vunpack.c.l.b16 %v787
    %v900 = vunpack.c.l.b16 %v788
    %v901 = vunpack.c.l.b16 %v789
    %v902 = vunpack.c.l.b16 %v790
    %v903 = vunpack.c.l.b16 %v791
    %v904 = vunpack.c.l.b16 %v792
    %v905 = vunpack.c.l.b16 %v793
    %v906 = vunpack.c.l.b16 %v794
    %v907 = vunpack.c.l.b16 %v795
    %v908 = vunpack.c.l.b16 %v796
    %v909 = vunpack.c.l.b16 %v797
    %v910 = vunpack.c.l.b16 %v798
    %v911 = vunpack.c.l.b16 %v799
    %v912 = vpack.c.b16 %v897, %v896
    %v913 = vpack.c.b16 %v899, %v898
    %v914 = vpack.c.b16 %v901, %v900
    %v915 = vpack.c.b16 %v903, %v902
    %v916 = vpack.c.b16 %v905, %v904
    %v917 = vpack.c.b16 %v907, %v906
    %v918 = vpack.c.b16 %v909, %v908
    %v919 = vpack.c.b16 %v911, %v910
    %928 = vmatprep.subr.bf16.mxu0 %v769
    %929 = vmatpush1.bf16.msra.mxu0 %v768
    %930 = vmatprep.subr.bf16.mxu0 %v771
    %931 = vmatpush1.bf16.msra.mxu0 %v770
    %932 = vmatprep.subr.bf16.mxu0 %v773
    %933 = vmatpush1.bf16.msra.mxu0 %v772
    %934 = vmatprep.subr.bf16.mxu0 %v775
    %935 = vmatpush1.bf16.msra.mxu0 %v774
    %936 = vmatprep.subr.bf16.mxu0 %v777
    %937 = vmatpush1.bf16.msra.mxu0 %v776
    %938 = vmatprep.subr.bf16.mxu0 %v779
    %939 = vmatpush1.bf16.msra.mxu0 %v778
    %940 = vmatprep.subr.bf16.mxu0 %v781
    %941 = vmatpush1.bf16.msra.mxu0 %v780
    %942 = vmatprep.subr.bf16.mxu0 %v783
    %943 = vmatpush1.bf16.msra.mxu0 %v782
    %944 = vmatprep.subr.bf16.mxu0 0
    %945 = vmatpush1.bf16.msra.mxu0 0
    %946 = vmatprep.subr.bf16.mxu0 0
    %947 = vmatpush1.bf16.msra.mxu0 0
    %948 = vmatprep.subr.bf16.mxu0 0
    %949 = vmatpush1.bf16.msra.mxu0 0
    %950 = vmatprep.subr.bf16.mxu0 0
    %951 = vmatpush1.bf16.msra.mxu0 0
    %952 = vmatprep.subr.bf16.mxu0 0
    %953 = vmatpush1.bf16.msra.mxu0 0
    %954 = vmatprep.subr.bf16.mxu0 0
    %955 = vmatpush1.bf16.msra.mxu0 0
    %956 = vmatprep.subr.bf16.mxu0 0
    %957 = vmatpush1.bf16.msra.mxu0 0
    %958 = vmatprep.subr.bf16.mxu0 0
    %959 = vmatpush1.bf16.msra.mxu0 0
    %960 = vmatprep.mubr.bf16.mxu0 0
    %961 = vmatmul.mubr.bf16.gmra.mrb[0].mxu0 %v912
    %v962 = vpop.f32.mrb[0].mxu0
    %v963 = vadd.f32 %v803, %v962
    %v964 = vpop.f32.mrb[0].mxu0
    %v965 = vadd.f32 %v803, %v964
    %v966 = vpop.f32.mrb[0].mxu0
    %v967 = vadd.f32 %v808, %v966
    %v968 = vpop.f32.mrb[0].mxu0
    %v969 = vadd.f32 %v808, %v968
    %970 = vmatprep.mubr.bf16.mxu0 0
    %971 = vmatmul.mubr.bf16.gmra.mrb[0].mxu0 %v913
    %v972 = vpop.f32.mrb[0].mxu0
    %v973 = vadd.f32 %v813, %v972
    %v974 = vpop.f32.mrb[0].mxu0
    %v975 = vadd.f32 %v813, %v974
    %v976 = vpop.f32.mrb[0].mxu0
    %v977 = vadd.f32 %v818, %v976
    %v978 = vpop.f32.mrb[0].mxu0
    %v979 = vadd.f32 %v818, %v978
    %980 = vmatprep.mubr.bf16.mxu0 0
    %981 = vmatmul.mubr.bf16.gmra.mrb[0].mxu0 %v914
    %v982 = vpop.f32.mrb[0].mxu0
    %v983 = vadd.f32 %v823, %v982
    %v984 = vpop.f32.mrb[0].mxu0
    %v985 = vadd.f32 %v823, %v984
    %v986 = vpop.f32.mrb[0].mxu0
    %v987 = vadd.f32 %v828, %v986
    %v988 = vpop.f32.mrb[0].mxu0
    %v989 = vadd.f32 %v828, %v988
    %990 = vmatprep.mubr.bf16.mxu0 0
    %991 = vmatmul.mubr.bf16.gmra.mrb[0].mxu0 %v915
    %v992 = vpop.f32.mrb[0].mxu0
    %v993 = vadd.f32 %v833, %v992
    %v994 = vpop.f32.mrb[0].mxu0
    %v995 = vadd.f32 %v833, %v994
    %v996 = vpop.f32.mrb[0].mxu0
    %v997 = vadd.f32 %v838, %v996
    %v998 = vpop.f32.mrb[0].mxu0
    %v999 = vadd.f32 %v838, %v998
    %1000 = vmatprep.mubr.bf16.mxu0 0
    %1001 = vmatmul.mubr.bf16.gmra.mrb[0].mxu0 %v916
    %v1002 = vpop.f32.mrb[0].mxu0
    %v1003 = vadd.f32 %v843, %v1002
    %v1004 = vpop.f32.mrb[0].mxu0
    %v1005 = vadd.f32 %v843, %v1004
    %v1006 = vpop.f32.mrb[0].mxu0
    %v1007 = vadd.f32 %v848, %v1006
    %v1008 = vpop.f32.mrb[0].mxu0
    %v1009 = vadd.f32 %v848, %v1008
    %1010 = vmatprep.mubr.bf16.mxu0 0
    %1011 = vmatmul.mubr.bf16.gmra.mrb[0].mxu0 %v917
    %v1012 = vpop.f32.mrb[0].mxu0
    %v1013 = vadd.f32 %v853, %v1012
    %v1014 = vpop.f32.mrb[0].mxu0
    %v1015 = vadd.f32 %v853, %v1014
    %v1016 = vpop.f32.mrb[0].mxu0
    %v1017 = vadd.f32 %v858, %v1016
    %v1018 = vpop.f32.mrb[0].mxu0
    %v1019 = vadd.f32 %v858, %v1018
    %1020 = vmatprep.mubr.bf16.mxu0 0
    %1021 = vmatmul.mubr.bf16.gmra.mrb[0].mxu0 %v918
    %v1022 = vpop.f32.mrb[0].mxu0
    %v1023 = vadd.f32 %v863, %v1022
    %v1024 = vpop.f32.mrb[0].mxu0
    %v1025 = vadd.f32 %v863, %v1024
    %v1026 = vpop.f32.mrb[0].mxu0
    %v1027 = vadd.f32 %v868, %v1026
    %v1028 = vpop.f32.mrb[0].mxu0
    %v1029 = vadd.f32 %v868, %v1028
    %1030 = vmatprep.mubr.bf16.mxu0 0
    %1031 = vmatmul.mubr.bf16.gmra.mrb[0].mxu0 %v919
    %v1032 = vpop.f32.mrb[0].mxu0
    %v1033 = vadd.f32 %v873, %v1032
    %v1034 = vpop.f32.mrb[0].mxu0
    %v1035 = vadd.f32 %v873, %v1034
    %v1036 = vpop.f32.mrb[0].mxu0
    %v1037 = vadd.f32 %v878, %v1036
    %v1038 = vpop.f32.mrb[0].mxu0
    %v1039 = vadd.f32 %v878, %v1038
    %1040 = vdwg.mxu0
    %v1041 = vtanh.pop %v963
    %v1042 = vtanh.pop %v965
    %v1043 = vtanh.pop %v967
    %v1044 = vtanh.pop %v969
    %v1045 = vtanh.pop %v973
    %v1046 = vtanh.pop %v975
    %v1047 = vtanh.pop %v977
    %v1048 = vtanh.pop %v979
    %v1049 = vtanh.pop %v983
    %v1050 = vtanh.pop %v985
    %v1051 = vtanh.pop %v987
    %v1052 = vtanh.pop %v989
    %v1053 = vtanh.pop %v993
    %v1054 = vtanh.pop %v995
    %v1055 = vtanh.pop %v997
    %v1056 = vtanh.pop %v999
    %v1057 = vtanh.pop %v1003
    %v1058 = vtanh.pop %v1005
    %v1059 = vtanh.pop %v1007
    %v1060 = vtanh.pop %v1009
    %v1061 = vtanh.pop %v1013
    %v1062 = vtanh.pop %v1015
    %v1063 = vtanh.pop %v1017
    %v1064 = vtanh.pop %v1019
    %v1065 = vtanh.pop %v1023
    %v1066 = vtanh.pop %v1025
    %v1067 = vtanh.pop %v1027
    %v1068 = vtanh.pop %v1029
    %v1069 = vtanh.pop %v1033
    %v1070 = vtanh.pop %v1035
    %v1071 = vtanh.pop %v1037
    %v1072 = vtanh.pop %v1039
    %v1073 = vadd.f32 %v1041, %v257
    %v1074 = vadd.f32 %v1042, %v259
    %v1075 = vadd.f32 %v1043, %v261
    %v1076 = vadd.f32 %v1044, %v263
    %v1077 = vadd.f32 %v1045, %v267
    %v1078 = vadd.f32 %v1046, %v269
    %v1079 = vadd.f32 %v1047, %v271
    %v1080 = vadd.f32 %v1048, %v273
    %v1081 = vadd.f32 %v1049, %v277
    %v1082 = vadd.f32 %v1050, %v279
    %v1083 = vadd.f32 %v1051, %v281
    %v1084 = vadd.f32 %v1052, %v283
    %v1085 = vadd.f32 %v1053, %v287
    %v1086 = vadd.f32 %v1054, %v289
    %v1087 = vadd.f32 %v1055, %v291
    %v1088 = vadd.f32 %v1056, %v293
    %v1089 = vadd.f32 %v1057, %v297
    %v1090 = vadd.f32 %v1058, %v299
    %v1091 = vadd.f32 %v1059, %v301
    %v1092 = vadd.f32 %v1060, %v303
    %v1093 = vadd.f32 %v1061, %v307
    %v1094 = vadd.f32 %v1062, %v309
    %v1095 = vadd.f32 %v1063, %v311
    %v1096 = vadd.f32 %v1064, %v313
    %v1097 = vadd.f32 %v1065, %v317
    %v1098 = vadd.f32 %v1066, %v319
    %v1099 = vadd.f32 %v1067, %v321
    %v1100 = vadd.f32 %v1068, %v323
    %v1101 = vadd.f32 %v1069, %v327
    %v1102 = vadd.f32 %v1070, %v329
    %v1103 = vadd.f32 %v1071, %v331
    %v1104 = vadd.f32 %v1072, %v333
    %s1105 = scalar_lea.vmem %s3, 64
    %v1106 = vld [vmem:[%s1105] sm:$0xf]
    %v1107 = vld [vmem:[%s1105 + $0x4] sm:$0xf]
    %v1108 = vld [vmem:[%s1105 + $0x8] sm:$0xf]
    %v1109 = vld [vmem:[%s1105 + $0xc] sm:$0xf]
    %v1110 = vld [vmem:[%s1105 + $0x10] sm:$0xf]
    %v1111 = vld [vmem:[%s1105 + $0x14] sm:$0xf]
    %v1112 = vld [vmem:[%s1105 + $0x18] sm:$0xf]
    %v1113 = vld [vmem:[%s1105 + $0x1c] sm:$0xf]
    %v1114 = vld [vmem:[%s1105 + $0x20] sm:$0xf]
    %v1115 = vld [vmem:[%s1105 + $0x24] sm:$0xf]
    %v1116 = vld [vmem:[%s1105 + $0x28] sm:$0xf]
    %v1117 = vld [vmem:[%s1105 + $0x2c] sm:$0xf]
    %v1118 = vld [vmem:[%s1105 + $0x30] sm:$0xf]
    %v1119 = vld [vmem:[%s1105 + $0x34] sm:$0xf]
    %v1120 = vld [vmem:[%s1105 + $0x38] sm:$0xf]
    %v1121 = vld [vmem:[%s1105 + $0x3c] sm:$0xf]
    %v1122 = vpack.c.bf16 %v1075, %v1073
    %v1123 = vpack.c.bf16 %v1076, %v1074
    %v1124 = vpack.c.bf16 %v1079, %v1077
    %v1125 = vpack.c.bf16 %v1080, %v1078
    %v1126 = vpack.c.bf16 %v1083, %v1081
    %v1127 = vpack.c.bf16 %v1084, %v1082
    %v1128 = vpack.c.bf16 %v1087, %v1085
    %v1129 = vpack.c.bf16 %v1088, %v1086
    %v1130 = vpack.c.bf16 %v1091, %v1089
    %v1131 = vpack.c.bf16 %v1092, %v1090
    %v1132 = vpack.c.bf16 %v1095, %v1093
    %v1133 = vpack.c.bf16 %v1096, %v1094
    %v1134 = vpack.c.bf16 %v1099, %v1097
    %v1135 = vpack.c.bf16 %v1100, %v1098
    %v1136 = vpack.c.bf16 %v1103, %v1101
    %v1137 = vpack.c.bf16 %v1104, %v1102
    %1139 = vset.pattern.permute.xlu0 0
    %1140 = vperm.xlu0 %1139, %v351
    %v1141 = vpop.permute.xlu0 %1140
    %1144 = vset.pattern.permute.xlu0 0
    %1145 = vperm.xlu0 %1144, %v352
    %v1146 = vpop.permute.xlu0 %1145
    %1149 = vset.pattern.permute.xlu0 0
    %1150 = vperm.xlu0 %1149, %v353
    %v1151 = vpop.permute.xlu0 %1150
    %1154 = vset.pattern.permute.xlu0 0
    %1155 = vperm.xlu0 %1154, %v354
    %v1156 = vpop.permute.xlu0 %1155
    %1159 = vset.pattern.permute.xlu0 0
    %1160 = vperm.xlu0 %1159, %v355
    %v1161 = vpop.permute.xlu0 %1160
    %1164 = vset.pattern.permute.xlu0 0
    %1165 = vperm.xlu0 %1164, %v356
    %v1166 = vpop.permute.xlu0 %1165
    %1169 = vset.pattern.permute.xlu0 0
    %1170 = vperm.xlu0 %1169, %v357
    %v1171 = vpop.permute.xlu0 %1170
    %1174 = vset.pattern.permute.xlu0 0
    %1175 = vperm.xlu0 %1174, %v358
    %v1176 = vpop.permute.xlu0 %1175
    %1179 = vset.pattern.permute.xlu0 0
    %1180 = vperm.xlu0 %1179, %v359
    %v1181 = vpop.permute.xlu0 %1180
    %1184 = vset.pattern.permute.xlu0 0
    %1185 = vperm.xlu0 %1184, %v360
    %v1186 = vpop.permute.xlu0 %1185
    %1189 = vset.pattern.permute.xlu0 0
    %1190 = vperm.xlu0 %1189, %v361
    %v1191 = vpop.permute.xlu0 %1190
    %1194 = vset.pattern.permute.xlu0 0
    %1195 = vperm.xlu0 %1194, %v362
    %v1196 = vpop.permute.xlu0 %1195
    %1199 = vset.pattern.permute.xlu0 0
    %1200 = vperm.xlu0 %1199, %v363
    %v1201 = vpop.permute.xlu0 %1200
    %1204 = vset.pattern.permute.xlu0 0
    %1205 = vperm.xlu0 %1204, %v364
    %v1206 = vpop.permute.xlu0 %1205
    %1209 = vset.pattern.permute.xlu0 0
    %1210 = vperm.xlu0 %1209, %v365
    %v1211 = vpop.permute.xlu0 %1210
    %1214 = vset.pattern.permute.xlu0 0
    %1215 = vperm.xlu0 %1214, %v366
    %v1216 = vpop.permute.xlu0 %1215
    %v1234 = vunpack.c.l.b16 %v1106
    %v1235 = vunpack.c.l.b16 %v1107
    %v1236 = vunpack.c.l.b16 %v1108
    %v1237 = vunpack.c.l.b16 %v1109
    %v1238 = vunpack.c.l.b16 %v1110
    %v1239 = vunpack.c.l.b16 %v1111
    %v1240 = vunpack.c.l.b16 %v1112
    %v1241 = vunpack.c.l.b16 %v1113
    %v1242 = vunpack.c.l.b16 %v1114
    %v1243 = vunpack.c.l.b16 %v1115
    %v1244 = vunpack.c.l.b16 %v1116
    %v1245 = vunpack.c.l.b16 %v1117
    %v1246 = vunpack.c.l.b16 %v1118
    %v1247 = vunpack.c.l.b16 %v1119
    %v1248 = vunpack.c.l.b16 %v1120
    %v1249 = vunpack.c.l.b16 %v1121
    %v1250 = vpack.c.b16 %v1235, %v1234
    %v1251 = vpack.c.b16 %v1237, %v1236
    %v1252 = vpack.c.b16 %v1239, %v1238
    %v1253 = vpack.c.b16 %v1241, %v1240
    %v1254 = vpack.c.b16 %v1243, %v1242
    %v1255 = vpack.c.b16 %v1245, %v1244
    %v1256 = vpack.c.b16 %v1247, %v1246
    %v1257 = vpack.c.b16 %v1249, %v1248
    %1266 = vmatprep.subr.bf16.mxu0 %v1123
    %1267 = vmatpush1.bf16.msra.mxu0 %v1122
    %1268 = vmatprep.subr.bf16.mxu0 %v1125
    %1269 = vmatpush1.bf16.msra.mxu0 %v1124
    %1270 = vmatprep.subr.bf16.mxu0 %v1127
    %1271 = vmatpush1.bf16.msra.mxu0 %v1126
    %1272 = vmatprep.subr.bf16.mxu0 %v1129
    %1273 = vmatpush1.bf16.msra.mxu0 %v1128
    %1274 = vmatprep.subr.bf16.mxu0 %v1131
    %1275 = vmatpush1.bf16.msra.mxu0 %v1130
    %1276 = vmatprep.subr.bf16.mxu0 %v1133
    %1277 = vmatpush1.bf16.msra.mxu0 %v1132
    %1278 = vmatprep.subr.bf16.mxu0 %v1135
    %1279 = vmatpush1.bf16.msra.mxu0 %v1134
    %1280 = vmatprep.subr.bf16.mxu0 %v1137
    %1281 = vmatpush1.bf16.msra.mxu0 %v1136
    %1282 = vmatprep.subr.bf16.mxu0 0
    %1283 = vmatpush1.bf16.msra.mxu0 0
    %1284 = vmatprep.subr.bf16.mxu0 0
    %1285 = vmatpush1.bf16.msra.mxu0 0
    %1286 = vmatprep.subr.bf16.mxu0 0
    %1287 = vmatpush1.bf16.msra.mxu0 0
    %1288 = vmatprep.subr.bf16.mxu0 0
    %1289 = vmatpush1.bf16.msra.mxu0 0
    %1290 = vmatprep.subr.bf16.mxu0 0
    %1291 = vmatpush1.bf16.msra.mxu0 0
    %1292 = vmatprep.subr.bf16.mxu0 0
    %1293 = vmatpush1.bf16.msra.mxu0 0
    %1294 = vmatprep.subr.bf16.mxu0 0
    %1295 = vmatpush1.bf16.msra.mxu0 0
    %1296 = vmatprep.subr.bf16.mxu0 0
    %1297 = vmatpush1.bf16.msra.mxu0 0
    %1298 = vmatprep.mubr.bf16.mxu0 0
    %1299 = vmatmul.mubr.bf16.gmra.mrb[0].mxu0 %v1250
    %v1300 = vpop.f32.mrb[0].mxu0
    %v1301 = vadd.f32 %v1141, %v1300
    %v1302 = vpop.f32.mrb[0].mxu0
    %v1303 = vadd.f32 %v1141, %v1302
    %v1304 = vpop.f32.mrb[0].mxu0
    %v1305 = vadd.f32 %v1146, %v1304
    %v1306 = vpop.f32.mrb[0].mxu0
    %v1307 = vadd.f32 %v1146, %v1306
    %1308 = vmatprep.mubr.bf16.mxu0 0
    %1309 = vmatmul.mubr.bf16.gmra.mrb[0].mxu0 %v1251
    %v1310 = vpop.f32.mrb[0].mxu0
    %v1311 = vadd.f32 %v1151, %v1310
    %v1312 = vpop.f32.mrb[0].mxu0
    %v1313 = vadd.f32 %v1151, %v1312
    %v1314 = vpop.f32.mrb[0].mxu0
    %v1315 = vadd.f32 %v1156, %v1314
    %v1316 = vpop.f32.mrb[0].mxu0
    %v1317 = vadd.f32 %v1156, %v1316
    %1318 = vmatprep.mubr.bf16.mxu0 0
    %1319 = vmatmul.mubr.bf16.gmra.mrb[0].mxu0 %v1252
    %v1320 = vpop.f32.mrb[0].mxu0
    %v1321 = vadd.f32 %v1161, %v1320
    %v1322 = vpop.f32.mrb[0].mxu0
    %v1323 = vadd.f32 %v1161, %v1322
    %v1324 = vpop.f32.mrb[0].mxu0
    %v1325 = vadd.f32 %v1166, %v1324
    %v1326 = vpop.f32.mrb[0].mxu0
    %v1327 = vadd.f32 %v1166, %v1326
    %1328 = vmatprep.mubr.bf16.mxu0 0
    %1329 = vmatmul.mubr.bf16.gmra.mrb[0].mxu0 %v1253
    %v1330 = vpop.f32.mrb[0].mxu0
    %v1331 = vadd.f32 %v1171, %v1330
    %v1332 = vpop.f32.mrb[0].mxu0
    %v1333 = vadd.f32 %v1171, %v1332
    %v1334 = vpop.f32.mrb[0].mxu0
    %v1335 = vadd.f32 %v1176, %v1334
    %v1336 = vpop.f32.mrb[0].mxu0
    %v1337 = vadd.f32 %v1176, %v1336
    %1338 = vmatprep.mubr.bf16.mxu0 0
    %1339 = vmatmul.mubr.bf16.gmra.mrb[0].mxu0 %v1254
    %v1340 = vpop.f32.mrb[0].mxu0
    %v1341 = vadd.f32 %v1181, %v1340
    %v1342 = vpop.f32.mrb[0].mxu0
    %v1343 = vadd.f32 %v1181, %v1342
    %v1344 = vpop.f32.mrb[0].mxu0
    %v1345 = vadd.f32 %v1186, %v1344
    %v1346 = vpop.f32.mrb[0].mxu0
    %v1347 = vadd.f32 %v1186, %v1346
    %1348 = vmatprep.mubr.bf16.mxu0 0
    %1349 = vmatmul.mubr.bf16.gmra.mrb[0].mxu0 %v1255
    %v1350 = vpop.f32.mrb[0].mxu0
    %v1351 = vadd.f32 %v1191, %v1350
    %v1352 = vpop.f32.mrb[0].mxu0
    %v1353 = vadd.f32 %v1191, %v1352
    %v1354 = vpop.f32.mrb[0].mxu0
    %v1355 = vadd.f32 %v1196, %v1354
    %v1356 = vpop.f32.mrb[0].mxu0
    %v1357 = vadd.f32 %v1196, %v1356
    %1358 = vmatprep.mubr.bf16.mxu0 0
    %1359 = vmatmul.mubr.bf16.gmra.mrb[0].mxu0 %v1256
    %v1360 = vpop.f32.mrb[0].mxu0
    %v1361 = vadd.f32 %v1201, %v1360
    %v1362 = vpop.f32.mrb[0].mxu0
    %v1363 = vadd.f32 %v1201, %v1362
    %v1364 = vpop.f32.mrb[0].mxu0
    %v1365 = vadd.f32 %v1206, %v1364
    %v1366 = vpop.f32.mrb[0].mxu0
    %v1367 = vadd.f32 %v1206, %v1366
    %1368 = vmatprep.mubr.bf16.mxu0 0
    %1369 = vmatmul.mubr.bf16.gmra.mrb[0].mxu0 %v1257
    %v1370 = vpop.f32.mrb[0].mxu0
    %v1371 = vadd.f32 %v1211, %v1370
    %v1372 = vpop.f32.mrb[0].mxu0
    %v1373 = vadd.f32 %v1211, %v1372
    %v1374 = vpop.f32.mrb[0].mxu0
    %v1375 = vadd.f32 %v1216, %v1374
    %v1376 = vpop.f32.mrb[0].mxu0
    %v1377 = vadd.f32 %v1216, %v1376
    %1378 = vdwg.mxu0
    %v1379 = vtanh.pop %v1301
    %v1380 = vtanh.pop %v1303
    %v1381 = vtanh.pop %v1305
    %v1382 = vtanh.pop %v1307
    %v1383 = vtanh.pop %v1311
    %v1384 = vtanh.pop %v1313
    %v1385 = vtanh.pop %v1315
    %v1386 = vtanh.pop %v1317
    %v1387 = vtanh.pop %v1321
    %v1388 = vtanh.pop %v1323
    %v1389 = vtanh.pop %v1325
    %v1390 = vtanh.pop %v1327
    %v1391 = vtanh.pop %v1331
    %v1392 = vtanh.pop %v1333
    %v1393 = vtanh.pop %v1335
    %v1394 = vtanh.pop %v1337
    %v1395 = vtanh.pop %v1341
    %v1396 = vtanh.pop %v1343
    %v1397 = vtanh.pop %v1345
    %v1398 = vtanh.pop %v1347
    %v1399 = vtanh.pop %v1351
    %v1400 = vtanh.pop %v1353
    %v1401 = vtanh.pop %v1355
    %v1402 = vtanh.pop %v1357
    %v1403 = vtanh.pop %v1361
    %v1404 = vtanh.pop %v1363
    %v1405 = vtanh.pop %v1365
    %v1406 = vtanh.pop %v1367
    %v1407 = vtanh.pop %v1371
    %v1408 = vtanh.pop %v1373
    %v1409 = vtanh.pop %v1375
    %v1410 = vtanh.pop %v1377
    %v1411 = vpack.c.bf16 %v1381, %v1379
    %v1412 = vpack.c.bf16 %v1382, %v1380
    %v1413 = vpack.c.bf16 %v1385, %v1383
    %v1414 = vpack.c.bf16 %v1386, %v1384
    %v1415 = vpack.c.bf16 %v1389, %v1387
    %v1416 = vpack.c.bf16 %v1390, %v1388
    %v1417 = vpack.c.bf16 %v1393, %v1391
    %v1418 = vpack.c.bf16 %v1394, %v1392
    %v1419 = vpack.c.bf16 %v1397, %v1395
    %v1420 = vpack.c.bf16 %v1398, %v1396
    %v1421 = vpack.c.bf16 %v1401, %v1399
    %v1422 = vpack.c.bf16 %v1402, %v1400
    %v1423 = vpack.c.bf16 %v1405, %v1403
    %v1424 = vpack.c.bf16 %v1406, %v1404
    %v1425 = vpack.c.bf16 %v1409, %v1407
    %v1426 = vpack.c.bf16 %v1410, %v1408
    %s1427 = scalar_lea.vmem %s5, 64
    %v1428 = vld [vmem:[%s1427] sm:$0xf]
    %v1429 = vld [vmem:[%s1427 + $0x4] sm:$0xf]
    %v1430 = vld [vmem:[%s1427 + $0x8] sm:$0xf]
    %v1431 = vld [vmem:[%s1427 + $0xc] sm:$0xf]
    %v1432 = vld [vmem:[%s1427 + $0x10] sm:$0xf]
    %v1433 = vld [vmem:[%s1427 + $0x14] sm:$0xf]
    %v1434 = vld [vmem:[%s1427 + $0x18] sm:$0xf]
    %v1435 = vld [vmem:[%s1427 + $0x1c] sm:$0xf]
    %v1436 = vld [vmem:[%s1427 + $0x20] sm:$0xf]
    %v1437 = vld [vmem:[%s1427 + $0x24] sm:$0xf]
    %v1438 = vld [vmem:[%s1427 + $0x28] sm:$0xf]
    %v1439 = vld [vmem:[%s1427 + $0x2c] sm:$0xf]
    %v1440 = vld [vmem:[%s1427 + $0x30] sm:$0xf]
    %v1441 = vld [vmem:[%s1427 + $0x34] sm:$0xf]
    %v1442 = vld [vmem:[%s1427 + $0x38] sm:$0xf]
    %v1443 = vld [vmem:[%s1427 + $0x3c] sm:$0xf]
    %1445 = vset.pattern.permute.xlu0 0
    %1446 = vperm.xlu0 %1445, %v415
    %v1447 = vpop.permute.xlu0 %1446
    %1450 = vset.pattern.permute.xlu0 0
    %1451 = vperm.xlu0 %1450, %v416
    %v1452 = vpop.permute.xlu0 %1451
    %1455 = vset.pattern.permute.xlu0 0
    %1456 = vperm.xlu0 %1455, %v417
    %v1457 = vpop.permute.xlu0 %1456
    %1460 = vset.pattern.permute.xlu0 0
    %1461 = vperm.xlu0 %1460, %v418
    %v1462 = vpop.permute.xlu0 %1461
    %1465 = vset.pattern.permute.xlu0 0
    %1466 = vperm.xlu0 %1465, %v419
    %v1467 = vpop.permute.xlu0 %1466
    %1470 = vset.pattern.permute.xlu0 0
    %1471 = vperm.xlu0 %1470, %v420
    %v1472 = vpop.permute.xlu0 %1471
    %1475 = vset.pattern.permute.xlu0 0
    %1476 = vperm.xlu0 %1475, %v421
    %v1477 = vpop.permute.xlu0 %1476
    %1480 = vset.pattern.permute.xlu0 0
    %1481 = vperm.xlu0 %1480, %v422
    %v1482 = vpop.permute.xlu0 %1481
    %1485 = vset.pattern.permute.xlu0 0
    %1486 = vperm.xlu0 %1485, %v423
    %v1487 = vpop.permute.xlu0 %1486
    %1490 = vset.pattern.permute.xlu0 0
    %1491 = vperm.xlu0 %1490, %v424
    %v1492 = vpop.permute.xlu0 %1491
    %1495 = vset.pattern.permute.xlu0 0
    %1496 = vperm.xlu0 %1495, %v425
    %v1497 = vpop.permute.xlu0 %1496
    %1500 = vset.pattern.permute.xlu0 0
    %1501 = vperm.xlu0 %1500, %v426
    %v1502 = vpop.permute.xlu0 %1501
    %1505 = vset.pattern.permute.xlu0 0
    %1506 = vperm.xlu0 %1505, %v427
    %v1507 = vpop.permute.xlu0 %1506
    %1510 = vset.pattern.permute.xlu0 0
    %1511 = vperm.xlu0 %1510, %v428
    %v1512 = vpop.permute.xlu0 %1511
    %1515 = vset.pattern.permute.xlu0 0
    %1516 = vperm.xlu0 %1515, %v429
    %v1517 = vpop.permute.xlu0 %1516
    %1520 = vset.pattern.permute.xlu0 0
    %1521 = vperm.xlu0 %1520, %v430
    %v1522 = vpop.permute.xlu0 %1521
    %v1540 = vunpack.c.l.b16 %v1428
    %v1541 = vunpack.c.l.b16 %v1429
    %v1542 = vunpack.c.l.b16 %v1430
    %v1543 = vunpack.c.l.b16 %v1431
    %v1544 = vunpack.c.l.b16 %v1432
    %v1545 = vunpack.c.l.b16 %v1433
    %v1546 = vunpack.c.l.b16 %v1434
    %v1547 = vunpack.c.l.b16 %v1435
    %v1548 = vunpack.c.l.b16 %v1436
    %v1549 = vunpack.c.l.b16 %v1437
    %v1550 = vunpack.c.l.b16 %v1438
    %v1551 = vunpack.c.l.b16 %v1439
    %v1552 = vunpack.c.l.b16 %v1440
    %v1553 = vunpack.c.l.b16 %v1441
    %v1554 = vunpack.c.l.b16 %v1442
    %v1555 = vunpack.c.l.b16 %v1443
    %v1556 = vpack.c.b16 %v1541, %v1540
    %v1557 = vpack.c.b16 %v1543, %v1542
    %v1558 = vpack.c.b16 %v1545, %v1544
    %v1559 = vpack.c.b16 %v1547, %v1546
    %v1560 = vpack.c.b16 %v1549, %v1548
    %v1561 = vpack.c.b16 %v1551, %v1550
    %v1562 = vpack.c.b16 %v1553, %v1552
    %v1563 = vpack.c.b16 %v1555, %v1554
    %1572 = vmatprep.subr.bf16.mxu0 %v1412
    %1573 = vmatpush1.bf16.msra.mxu0 %v1411
    %1574 = vmatprep.subr.bf16.mxu0 %v1414
    %1575 = vmatpush1.bf16.msra.mxu0 %v1413
    %1576 = vmatprep.subr.bf16.mxu0 %v1416
    %1577 = vmatpush1.bf16.msra.mxu0 %v1415
    %1578 = vmatprep.subr.bf16.mxu0 %v1418
    %1579 = vmatpush1.bf16.msra.mxu0 %v1417
    %1580 = vmatprep.subr.bf16.mxu0 %v1420
    %1581 = vmatpush1.bf16.msra.mxu0 %v1419
    %1582 = vmatprep.subr.bf16.mxu0 %v1422
    %1583 = vmatpush1.bf16.msra.mxu0 %v1421
    %1584 = vmatprep.subr.bf16.mxu0 %v1424
    %1585 = vmatpush1.bf16.msra.mxu0 %v1423
    %1586 = vmatprep.subr.bf16.mxu0 %v1426
    %1587 = vmatpush1.bf16.msra.mxu0 %v1425
    %1588 = vmatprep.subr.bf16.mxu0 0
    %1589 = vmatpush1.bf16.msra.mxu0 0
    %1590 = vmatprep.subr.bf16.mxu0 0
    %1591 = vmatpush1.bf16.msra.mxu0 0
    %1592 = vmatprep.subr.bf16.mxu0 0
    %1593 = vmatpush1.bf16.msra.mxu0 0
    %1594 = vmatprep.subr.bf16.mxu0 0
    %1595 = vmatpush1.bf16.msra.mxu0 0
    %1596 = vmatprep.subr.bf16.mxu0 0
    %1597 = vmatpush1.bf16.msra.mxu0 0
    %1598 = vmatprep.subr.bf16.mxu0 0
    %1599 = vmatpush1.bf16.msra.mxu0 0
    %1600 = vmatprep.subr.bf16.mxu0 0
    %1601 = vmatpush1.bf16.msra.mxu0 0
    %1602 = vmatprep.subr.bf16.mxu0 0
    %1603 = vmatpush1.bf16.msra.mxu0 0
    %1604 = vmatprep.mubr.bf16.mxu0 0
    %1605 = vmatmul.mubr.bf16.gmra.mrb[0].mxu0 %v1556
    %v1606 = vpop.f32.mrb[0].mxu0
    %v1607 = vadd.f32 %v1447, %v1606
    %v1608 = vpop.f32.mrb[0].mxu0
    %v1609 = vadd.f32 %v1447, %v1608
    %v1610 = vpop.f32.mrb[0].mxu0
    %v1611 = vadd.f32 %v1452, %v1610
    %v1612 = vpop.f32.mrb[0].mxu0
    %v1613 = vadd.f32 %v1452, %v1612
    %1614 = vmatprep.mubr.bf16.mxu0 0
    %1615 = vmatmul.mubr.bf16.gmra.mrb[0].mxu0 %v1557
    %v1616 = vpop.f32.mrb[0].mxu0
    %v1617 = vadd.f32 %v1457, %v1616
    %v1618 = vpop.f32.mrb[0].mxu0
    %v1619 = vadd.f32 %v1457, %v1618
    %v1620 = vpop.f32.mrb[0].mxu0
    %v1621 = vadd.f32 %v1462, %v1620
    %v1622 = vpop.f32.mrb[0].mxu0
    %v1623 = vadd.f32 %v1462, %v1622
    %1624 = vmatprep.mubr.bf16.mxu0 0
    %1625 = vmatmul.mubr.bf16.gmra.mrb[0].mxu0 %v1558
    %v1626 = vpop.f32.mrb[0].mxu0
    %v1627 = vadd.f32 %v1467, %v1626
    %v1628 = vpop.f32.mrb[0].mxu0
    %v1629 = vadd.f32 %v1467, %v1628
    %v1630 = vpop.f32.mrb[0].mxu0
    %v1631 = vadd.f32 %v1472, %v1630
    %v1632 = vpop.f32.mrb[0].mxu0
    %v1633 = vadd.f32 %v1472, %v1632
    %1634 = vmatprep.mubr.bf16.mxu0 0
    %1635 = vmatmul.mubr.bf16.gmra.mrb[0].mxu0 %v1559
    %v1636 = vpop.f32.mrb[0].mxu0
    %v1637 = vadd.f32 %v1477, %v1636
    %v1638 = vpop.f32.mrb[0].mxu0
    %v1639 = vadd.f32 %v1477, %v1638
    %v1640 = vpop.f32.mrb[0].mxu0
    %v1641 = vadd.f32 %v1482, %v1640
    %v1642 = vpop.f32.mrb[0].mxu0
    %v1643 = vadd.f32 %v1482, %v1642
    %1644 = vmatprep.mubr.bf16.mxu0 0
    %1645 = vmatmul.mubr.bf16.gmra.mrb[0].mxu0 %v1560
    %v1646 = vpop.f32.mrb[0].mxu0
    %v1647 = vadd.f32 %v1487, %v1646
    %v1648 = vpop.f32.mrb[0].mxu0
    %v1649 = vadd.f32 %v1487, %v1648
    %v1650 = vpop.f32.mrb[0].mxu0
    %v1651 = vadd.f32 %v1492, %v1650
    %v1652 = vpop.f32.mrb[0].mxu0
    %v1653 = vadd.f32 %v1492, %v1652
    %1654 = vmatprep.mubr.bf16.mxu0 0
    %1655 = vmatmul.mubr.bf16.gmra.mrb[0].mxu0 %v1561
    %v1656 = vpop.f32.mrb[0].mxu0
    %v1657 = vadd.f32 %v1497, %v1656
    %v1658 = vpop.f32.mrb[0].mxu0
    %v1659 = vadd.f32 %v1497, %v1658
    %v1660 = vpop.f32.mrb[0].mxu0
    %v1661 = vadd.f32 %v1502, %v1660
    %v1662 = vpop.f32.mrb[0].mxu0
    %v1663 = vadd.f32 %v1502, %v1662
    %1664 = vmatprep.mubr.bf16.mxu0 0
    %1665 = vmatmul.mubr.bf16.gmra.mrb[0].mxu0 %v1562
    %v1666 = vpop.f32.mrb[0].mxu0
    %v1667 = vadd.f32 %v1507, %v1666
    %v1668 = vpop.f32.mrb[0].mxu0
    %v1669 = vadd.f32 %v1507, %v1668
    %v1670 = vpop.f32.mrb[0].mxu0
    %v1671 = vadd.f32 %v1512, %v1670
    %v1672 = vpop.f32.mrb[0].mxu0
    %v1673 = vadd.f32 %v1512, %v1672
    %1674 = vmatprep.mubr.bf16.mxu0 0
    %1675 = vmatmul.mubr.bf16.gmra.mrb[0].mxu0 %v1563
    %v1676 = vpop.f32.mrb[0].mxu0
    %v1677 = vadd.f32 %v1517, %v1676
    %v1678 = vpop.f32.mrb[0].mxu0
    %v1679 = vadd.f32 %v1517, %v1678
    %v1680 = vpop.f32.mrb[0].mxu0
    %v1681 = vadd.f32 %v1522, %v1680
    %v1682 = vpop.f32.mrb[0].mxu0
    %v1683 = vadd.f32 %v1522, %v1682
    %1684 = vdwg.mxu0
    %v1685 = vtanh.pop %v1607
    %v1686 = vtanh.pop %v1609
    %v1687 = vtanh.pop %v1611
    %v1688 = vtanh.pop %v1613
    %v1689 = vtanh.pop %v1617
    %v1690 = vtanh.pop %v1619
    %v1691 = vtanh.pop %v1621
    %v1692 = vtanh.pop %v1623
    %v1693 = vtanh.pop %v1627
    %v1694 = vtanh.pop %v1629
    %v1695 = vtanh.pop %v1631
    %v1696 = vtanh.pop %v1633
    %v1697 = vtanh.pop %v1637
    %v1698 = vtanh.pop %v1639
    %v1699 = vtanh.pop %v1641
    %v1700 = vtanh.pop %v1643
    %v1701 = vtanh.pop %v1647
    %v1702 = vtanh.pop %v1649
    %v1703 = vtanh.pop %v1651
    %v1704 = vtanh.pop %v1653
    %v1705 = vtanh.pop %v1657
    %v1706 = vtanh.pop %v1659
    %v1707 = vtanh.pop %v1661
    %v1708 = vtanh.pop %v1663
    %v1709 = vtanh.pop %v1667
    %v1710 = vtanh.pop %v1669
    %v1711 = vtanh.pop %v1671
    %v1712 = vtanh.pop %v1673
    %v1713 = vtanh.pop %v1677
    %v1714 = vtanh.pop %v1679
    %v1715 = vtanh.pop %v1681
    %v1716 = vtanh.pop %v1683
    %v1717 = vadd.f32 %v1685, %v1073
    %v1718 = vadd.f32 %v1686, %v1074
    %v1719 = vadd.f32 %v1687, %v1075
    %v1720 = vadd.f32 %v1688, %v1076
    %v1721 = vadd.f32 %v1689, %v1077
    %v1722 = vadd.f32 %v1690, %v1078
    %v1723 = vadd.f32 %v1691, %v1079
    %v1724 = vadd.f32 %v1692, %v1080
    %v1725 = vadd.f32 %v1693, %v1081
    %v1726 = vadd.f32 %v1694, %v1082
    %v1727 = vadd.f32 %v1695, %v1083
    %v1728 = vadd.f32 %v1696, %v1084
    %v1729 = vadd.f32 %v1697, %v1085
    %v1730 = vadd.f32 %v1698, %v1086
    %v1731 = vadd.f32 %v1699, %v1087
    %v1732 = vadd.f32 %v1700, %v1088
    %v1733 = vadd.f32 %v1701, %v1089
    %v1734 = vadd.f32 %v1702, %v1090
    %v1735 = vadd.f32 %v1703, %v1091
    %v1736 = vadd.f32 %v1704, %v1092
    %v1737 = vadd.f32 %v1705, %v1093
    %v1738 = vadd.f32 %v1706, %v1094
    %v1739 = vadd.f32 %v1707, %v1095
    %v1740 = vadd.f32 %v1708, %v1096
    %v1741 = vadd.f32 %v1709, %v1097
    %v1742 = vadd.f32 %v1710, %v1098
    %v1743 = vadd.f32 %v1711, %v1099
    %v1744 = vadd.f32 %v1712, %v1100
    %v1745 = vadd.f32 %v1713, %v1101
    %v1746 = vadd.f32 %v1714, %v1102
    %v1747 = vadd.f32 %v1715, %v1103
    %v1748 = vadd.f32 %v1716, %v1104
    %s1749 = scalar_lea.vmem %s3, 128
    %v1750 = vld [vmem:[%s1749] sm:$0xf]
    %v1751 = vld [vmem:[%s1749 + $0x4] sm:$0xf]
    %v1752 = vld [vmem:[%s1749 + $0x8] sm:$0xf]
    %v1753 = vld [vmem:[%s1749 + $0xc] sm:$0xf]
    %v1754 = vld [vmem:[%s1749 + $0x10] sm:$0xf]
    %v1755 = vld [vmem:[%s1749 + $0x14] sm:$0xf]
    %v1756 = vld [vmem:[%s1749 + $0x18] sm:$0xf]
    %v1757 = vld [vmem:[%s1749 + $0x1c] sm:$0xf]
    %v1758 = vld [vmem:[%s1749 + $0x20] sm:$0xf]
    %v1759 = vld [vmem:[%s1749 + $0x24] sm:$0xf]
    %v1760 = vld [vmem:[%s1749 + $0x28] sm:$0xf]
    %v1761 = vld [vmem:[%s1749 + $0x2c] sm:$0xf]
    %v1762 = vld [vmem:[%s1749 + $0x30] sm:$0xf]
    %v1763 = vld [vmem:[%s1749 + $0x34] sm:$0xf]
    %v1764 = vld [vmem:[%s1749 + $0x38] sm:$0xf]
    %v1765 = vld [vmem:[%s1749 + $0x3c] sm:$0xf]
    %v1766 = vpack.c.bf16 %v1719, %v1717
    %v1767 = vpack.c.bf16 %v1720, %v1718
    %v1768 = vpack.c.bf16 %v1723, %v1721
    %v1769 = vpack.c.bf16 %v1724, %v1722
    %v1770 = vpack.c.bf16 %v1727, %v1725
    %v1771 = vpack.c.bf16 %v1728, %v1726
    %v1772 = vpack.c.bf16 %v1731, %v1729
    %v1773 = vpack.c.bf16 %v1732, %v1730
    %v1774 = vpack.c.bf16 %v1735, %v1733
    %v1775 = vpack.c.bf16 %v1736, %v1734
    %v1776 = vpack.c.bf16 %v1739, %v1737
    %v1777 = vpack.c.bf16 %v1740, %v1738
    %v1778 = vpack.c.bf16 %v1743, %v1741
    %v1779 = vpack.c.bf16 %v1744, %v1742
    %v1780 = vpack.c.bf16 %v1747, %v1745
    %v1781 = vpack.c.bf16 %v1748, %v1746
    %1783 = vset.pattern.permute.xlu0 0
    %1784 = vperm.xlu0 %1783, %v367
    %v1785 = vpop.permute.xlu0 %1784
    %1788 = vset.pattern.permute.xlu0 0
    %1789 = vperm.xlu0 %1788, %v368
    %v1790 = vpop.permute.xlu0 %1789
    %1793 = vset.pattern.permute.xlu0 0
    %1794 = vperm.xlu0 %1793, %v369
    %v1795 = vpop.permute.xlu0 %1794
    %1798 = vset.pattern.permute.xlu0 0
    %1799 = vperm.xlu0 %1798, %v370
    %v1800 = vpop.permute.xlu0 %1799
    %1803 = vset.pattern.permute.xlu0 0
    %1804 = vperm.xlu0 %1803, %v371
    %v1805 = vpop.permute.xlu0 %1804
    %1808 = vset.pattern.permute.xlu0 0
    %1809 = vperm.xlu0 %1808, %v372
    %v1810 = vpop.permute.xlu0 %1809
    %1813 = vset.pattern.permute.xlu0 0
    %1814 = vperm.xlu0 %1813, %v373
    %v1815 = vpop.permute.xlu0 %1814
    %1818 = vset.pattern.permute.xlu0 0
    %1819 = vperm.xlu0 %1818, %v374
    %v1820 = vpop.permute.xlu0 %1819
    %1823 = vset.pattern.permute.xlu0 0
    %1824 = vperm.xlu0 %1823, %v375
    %v1825 = vpop.permute.xlu0 %1824
    %1828 = vset.pattern.permute.xlu0 0
    %1829 = vperm.xlu0 %1828, %v376
    %v1830 = vpop.permute.xlu0 %1829
    %1833 = vset.pattern.permute.xlu0 0
    %1834 = vperm.xlu0 %1833, %v377
    %v1835 = vpop.permute.xlu0 %1834
    %1838 = vset.pattern.permute.xlu0 0
    %1839 = vperm.xlu0 %1838, %v378
    %v1840 = vpop.permute.xlu0 %1839
    %1843 = vset.pattern.permute.xlu0 0
    %1844 = vperm.xlu0 %1843, %v379
    %v1845 = vpop.permute.xlu0 %1844
    %1848 = vset.pattern.permute.xlu0 0
    %1849 = vperm.xlu0 %1848, %v380
    %v1850 = vpop.permute.xlu0 %1849
    %1853 = vset.pattern.permute.xlu0 0
    %1854 = vperm.xlu0 %1853, %v381
    %v1855 = vpop.permute.xlu0 %1854
    %1858 = vset.pattern.permute.xlu0 0
    %1859 = vperm.xlu0 %1858, %v382
    %v1860 = vpop.permute.xlu0 %1859
    %v1878 = vunpack.c.l.b16 %v1750
    %v1879 = vunpack.c.l.b16 %v1751
    %v1880 = vunpack.c.l.b16 %v1752
    %v1881 = vunpack.c.l.b16 %v1753
    %v1882 = vunpack.c.l.b16 %v1754
    %v1883 = vunpack.c.l.b16 %v1755
    %v1884 = vunpack.c.l.b16 %v1756
    %v1885 = vunpack.c.l.b16 %v1757
    %v1886 = vunpack.c.l.b16 %v1758
    %v1887 = vunpack.c.l.b16 %v1759
    %v1888 = vunpack.c.l.b16 %v1760
    %v1889 = vunpack.c.l.b16 %v1761
    %v1890 = vunpack.c.l.b16 %v1762
    %v1891 = vunpack.c.l.b16 %v1763
    %v1892 = vunpack.c.l.b16 %v1764
    %v1893 = vunpack.c.l.b16 %v1765
    %v1894 = vpack.c.b16 %v1879, %v1878
    %v1895 = vpack.c.b16 %v1881, %v1880
    %v1896 = vpack.c.b16 %v1883, %v1882
    %v1897 = vpack.c.b16 %v1885, %v1884
    %v1898 = vpack.c.b16 %v1887, %v1886
    %v1899 = vpack.c.b16 %v1889, %v1888
    %v1900 = vpack.c.b16 %v1891, %v1890
    %v1901 = vpack.c.b16 %v1893, %v1892
    %1910 = vmatprep.subr.bf16.mxu0 %v1767
    %1911 = vmatpush1.bf16.msra.mxu0 %v1766
    %1912 = vmatprep.subr.bf16.mxu0 %v1769
    %1913 = vmatpush1.bf16.msra.mxu0 %v1768
    %1914 = vmatprep.subr.bf16.mxu0 %v1771
    %1915 = vmatpush1.bf16.msra.mxu0 %v1770
    %1916 = vmatprep.subr.bf16.mxu0 %v1773
    %1917 = vmatpush1.bf16.msra.mxu0 %v1772
    %1918 = vmatprep.subr.bf16.mxu0 %v1775
    %1919 = vmatpush1.bf16.msra.mxu0 %v1774
    %1920 = vmatprep.subr.bf16.mxu0 %v1777
    %1921 = vmatpush1.bf16.msra.mxu0 %v1776
    %1922 = vmatprep.subr.bf16.mxu0 %v1779
    %1923 = vmatpush1.bf16.msra.mxu0 %v1778
    %1924 = vmatprep.subr.bf16.mxu0 %v1781
    %1925 = vmatpush1.bf16.msra.mxu0 %v1780
    %1926 = vmatprep.subr.bf16.mxu0 0
    %1927 = vmatpush1.bf16.msra.mxu0 0
    %1928 = vmatprep.subr.bf16.mxu0 0
    %1929 = vmatpush1.bf16.msra.mxu0 0
    %1930 = vmatprep.subr.bf16.mxu0 0
    %1931 = vmatpush1.bf16.msra.mxu0 0
    %1932 = vmatprep.subr.bf16.mxu0 0
    %1933 = vmatpush1.bf16.msra.mxu0 0
    %1934 = vmatprep.subr.bf16.mxu0 0
    %1935 = vmatpush1.bf16.msra.mxu0 0
    %1936 = vmatprep.subr.bf16.mxu0 0
    %1937 = vmatpush1.bf16.msra.mxu0 0
    %1938 = vmatprep.subr.bf16.mxu0 0
    %1939 = vmatpush1.bf16.msra.mxu0 0
    %1940 = vmatprep.subr.bf16.mxu0 0
    %1941 = vmatpush1.bf16.msra.mxu0 0
    %1942 = vmatprep.mubr.bf16.mxu0 0
    %1943 = vmatmul.mubr.bf16.gmra.mrb[0].mxu0 %v1894
    %v1944 = vpop.f32.mrb[0].mxu0
    %v1945 = vadd.f32 %v1785, %v1944
    %v1946 = vpop.f32.mrb[0].mxu0
    %v1947 = vadd.f32 %v1785, %v1946
    %v1948 = vpop.f32.mrb[0].mxu0
    %v1949 = vadd.f32 %v1790, %v1948
    %v1950 = vpop.f32.mrb[0].mxu0
    %v1951 = vadd.f32 %v1790, %v1950
    %1952 = vmatprep.mubr.bf16.mxu0 0
    %1953 = vmatmul.mubr.bf16.gmra.mrb[0].mxu0 %v1895
    %v1954 = vpop.f32.mrb[0].mxu0
    %v1955 = vadd.f32 %v1795, %v1954
    %v1956 = vpop.f32.mrb[0].mxu0
    %v1957 = vadd.f32 %v1795, %v1956
    %v1958 = vpop.f32.mrb[0].mxu0
    %v1959 = vadd.f32 %v1800, %v1958
    %v1960 = vpop.f32.mrb[0].mxu0
    %v1961 = vadd.f32 %v1800, %v1960
    %1962 = vmatprep.mubr.bf16.mxu0 0
    %1963 = vmatmul.mubr.bf16.gmra.mrb[0].mxu0 %v1896
    %v1964 = vpop.f32.mrb[0].mxu0
    %v1965 = vadd.f32 %v1805, %v1964
    %v1966 = vpop.f32.mrb[0].mxu0
    %v1967 = vadd.f32 %v1805, %v1966
    %v1968 = vpop.f32.mrb[0].mxu0
    %v1969 = vadd.f32 %v1810, %v1968
    %v1970 = vpop.f32.mrb[0].mxu0
    %v1971 = vadd.f32 %v1810, %v1970
    %1972 = vmatprep.mubr.bf16.mxu0 0
    %1973 = vmatmul.mubr.bf16.gmra.mrb[0].mxu0 %v1897
    %v1974 = vpop.f32.mrb[0].mxu0
    %v1975 = vadd.f32 %v1815, %v1974
    %v1976 = vpop.f32.mrb[0].mxu0
    %v1977 = vadd.f32 %v1815, %v1976
    %v1978 = vpop.f32.mrb[0].mxu0
    %v1979 = vadd.f32 %v1820, %v1978
    %v1980 = vpop.f32.mrb[0].mxu0
    %v1981 = vadd.f32 %v1820, %v1980
    %1982 = vmatprep.mubr.bf16.mxu0 0
    %1983 = vmatmul.mubr.bf16.gmra.mrb[0].mxu0 %v1898
    %v1984 = vpop.f32.mrb[0].mxu0
    %v1985 = vadd.f32 %v1825, %v1984
    %v1986 = vpop.f32.mrb[0].mxu0
    %v1987 = vadd.f32 %v1825, %v1986
    %v1988 = vpop.f32.mrb[0].mxu0
    %v1989 = vadd.f32 %v1830, %v1988
    %v1990 = vpop.f32.mrb[0].mxu0
    %v1991 = vadd.f32 %v1830, %v1990
    %1992 = vmatprep.mubr.bf16.mxu0 0
    %1993 = vmatmul.mubr.bf16.gmra.mrb[0].mxu0 %v1899
    %v1994 = vpop.f32.mrb[0].mxu0
    %v1995 = vadd.f32 %v1835, %v1994
    %v1996 = vpop.f32.mrb[0].mxu0
    %v1997 = vadd.f32 %v1835, %v1996
    %v1998 = vpop.f32.mrb[0].mxu0
    %v1999 = vadd.f32 %v1840, %v1998
    %v2000 = vpop.f32.mrb[0].mxu0
    %v2001 = vadd.f32 %v1840, %v2000
    %2002 = vmatprep.mubr.bf16.mxu0 0
    %2003 = vmatmul.mubr.bf16.gmra.mrb[0].mxu0 %v1900
    %v2004 = vpop.f32.mrb[0].mxu0
    %v2005 = vadd.f32 %v1845, %v2004
    %v2006 = vpop.f32.mrb[0].mxu0
    %v2007 = vadd.f32 %v1845, %v2006
    %v2008 = vpop.f32.mrb[0].mxu0
    %v2009 = vadd.f32 %v1850, %v2008
    %v2010 = vpop.f32.mrb[0].mxu0
    %v2011 = vadd.f32 %v1850, %v2010
    %2012 = vmatprep.mubr.bf16.mxu0 0
    %2013 = vmatmul.mubr.bf16.gmra.mrb[0].mxu0 %v1901
    %v2014 = vpop.f32.mrb[0].mxu0
    %v2015 = vadd.f32 %v1855, %v2014
    %v2016 = vpop.f32.mrb[0].mxu0
    %v2017 = vadd.f32 %v1855, %v2016
    %v2018 = vpop.f32.mrb[0].mxu0
    %v2019 = vadd.f32 %v1860, %v2018
    %v2020 = vpop.f32.mrb[0].mxu0
    %v2021 = vadd.f32 %v1860, %v2020
    %2022 = vdwg.mxu0
    %v2023 = vtanh.pop %v1945
    %v2024 = vtanh.pop %v1947
    %v2025 = vtanh.pop %v1949
    %v2026 = vtanh.pop %v1951
    %v2027 = vtanh.pop %v1955
    %v2028 = vtanh.pop %v1957
    %v2029 = vtanh.pop %v1959
    %v2030 = vtanh.pop %v1961
    %v2031 = vtanh.pop %v1965
    %v2032 = vtanh.pop %v1967
    %v2033 = vtanh.pop %v1969
    %v2034 = vtanh.pop %v1971
    %v2035 = vtanh.pop %v1975
    %v2036 = vtanh.pop %v1977
    %v2037 = vtanh.pop %v1979
    %v2038 = vtanh.pop %v1981
    %v2039 = vtanh.pop %v1985
    %v2040 = vtanh.pop %v1987
    %v2041 = vtanh.pop %v1989
    %v2042 = vtanh.pop %v1991
    %v2043 = vtanh.pop %v1995
    %v2044 = vtanh.pop %v1997
    %v2045 = vtanh.pop %v1999
    %v2046 = vtanh.pop %v2001
    %v2047 = vtanh.pop %v2005
    %v2048 = vtanh.pop %v2007
    %v2049 = vtanh.pop %v2009
    %v2050 = vtanh.pop %v2011
    %v2051 = vtanh.pop %v2015
    %v2052 = vtanh.pop %v2017
    %v2053 = vtanh.pop %v2019
    %v2054 = vtanh.pop %v2021
    %v2055 = vpack.c.bf16 %v2025, %v2023
    %v2056 = vpack.c.bf16 %v2026, %v2024
    %v2057 = vpack.c.bf16 %v2029, %v2027
    %v2058 = vpack.c.bf16 %v2030, %v2028
    %v2059 = vpack.c.bf16 %v2033, %v2031
    %v2060 = vpack.c.bf16 %v2034, %v2032
    %v2061 = vpack.c.bf16 %v2037, %v2035
    %v2062 = vpack.c.bf16 %v2038, %v2036
    %v2063 = vpack.c.bf16 %v2041, %v2039
    %v2064 = vpack.c.bf16 %v2042, %v2040
    %v2065 = vpack.c.bf16 %v2045, %v2043
    %v2066 = vpack.c.bf16 %v2046, %v2044
    %v2067 = vpack.c.bf16 %v2049, %v2047
    %v2068 = vpack.c.bf16 %v2050, %v2048
    %v2069 = vpack.c.bf16 %v2053, %v2051
    %v2070 = vpack.c.bf16 %v2054, %v2052
    %s2071 = scalar_lea.vmem %s5, 128
    %v2072 = vld [vmem:[%s2071] sm:$0xf]
    %v2073 = vld [vmem:[%s2071 + $0x4] sm:$0xf]
    %v2074 = vld [vmem:[%s2071 + $0x8] sm:$0xf]
    %v2075 = vld [vmem:[%s2071 + $0xc] sm:$0xf]
    %v2076 = vld [vmem:[%s2071 + $0x10] sm:$0xf]
    %v2077 = vld [vmem:[%s2071 + $0x14] sm:$0xf]
    %v2078 = vld [vmem:[%s2071 + $0x18] sm:$0xf]
    %v2079 = vld [vmem:[%s2071 + $0x1c] sm:$0xf]
    %v2080 = vld [vmem:[%s2071 + $0x20] sm:$0xf]
    %v2081 = vld [vmem:[%s2071 + $0x24] sm:$0xf]
    %v2082 = vld [vmem:[%s2071 + $0x28] sm:$0xf]
    %v2083 = vld [vmem:[%s2071 + $0x2c] sm:$0xf]
    %v2084 = vld [vmem:[%s2071 + $0x30] sm:$0xf]
    %v2085 = vld [vmem:[%s2071 + $0x34] sm:$0xf]
    %v2086 = vld [vmem:[%s2071 + $0x38] sm:$0xf]
    %v2087 = vld [vmem:[%s2071 + $0x3c] sm:$0xf]
    %2089 = vset.pattern.permute.xlu0 0
    %2090 = vperm.xlu0 %2089, %v431
    %v2091 = vpop.permute.xlu0 %2090
    %2094 = vset.pattern.permute.xlu0 0
    %2095 = vperm.xlu0 %2094, %v432
    %v2096 = vpop.permute.xlu0 %2095
    %2099 = vset.pattern.permute.xlu0 0
    %2100 = vperm.xlu0 %2099, %v433
    %v2101 = vpop.permute.xlu0 %2100
    %2104 = vset.pattern.permute.xlu0 0
    %2105 = vperm.xlu0 %2104, %v434
    %v2106 = vpop.permute.xlu0 %2105
    %2109 = vset.pattern.permute.xlu0 0
    %2110 = vperm.xlu0 %2109, %v435
    %v2111 = vpop.permute.xlu0 %2110
    %2114 = vset.pattern.permute.xlu0 0
    %2115 = vperm.xlu0 %2114, %v436
    %v2116 = vpop.permute.xlu0 %2115
    %2119 = vset.pattern.permute.xlu0 0
    %2120 = vperm.xlu0 %2119, %v437
    %v2121 = vpop.permute.xlu0 %2120
    %2124 = vset.pattern.permute.xlu0 0
    %2125 = vperm.xlu0 %2124, %v438
    %v2126 = vpop.permute.xlu0 %2125
    %2129 = vset.pattern.permute.xlu0 0
    %2130 = vperm.xlu0 %2129, %v439
    %v2131 = vpop.permute.xlu0 %2130
    %2134 = vset.pattern.permute.xlu0 0
    %2135 = vperm.xlu0 %2134, %v440
    %v2136 = vpop.permute.xlu0 %2135
    %2139 = vset.pattern.permute.xlu0 0
    %2140 = vperm.xlu0 %2139, %v441
    %v2141 = vpop.permute.xlu0 %2140
    %2144 = vset.pattern.permute.xlu0 0
    %2145 = vperm.xlu0 %2144, %v442
    %v2146 = vpop.permute.xlu0 %2145
    %2149 = vset.pattern.permute.xlu0 0
    %2150 = vperm.xlu0 %2149, %v443
    %v2151 = vpop.permute.xlu0 %2150
    %2154 = vset.pattern.permute.xlu0 0
    %2155 = vperm.xlu0 %2154, %v444
    %v2156 = vpop.permute.xlu0 %2155
    %2159 = vset.pattern.permute.xlu0 0
    %2160 = vperm.xlu0 %2159, %v445
    %v2161 = vpop.permute.xlu0 %2160
    %2164 = vset.pattern.permute.xlu0 0
    %2165 = vperm.xlu0 %2164, %v446
    %v2166 = vpop.permute.xlu0 %2165
    %v2184 = vunpack.c.l.b16 %v2072
    %v2185 = vunpack.c.l.b16 %v2073
    %v2186 = vunpack.c.l.b16 %v2074
    %v2187 = vunpack.c.l.b16 %v2075
    %v2188 = vunpack.c.l.b16 %v2076
    %v2189 = vunpack.c.l.b16 %v2077
    %v2190 = vunpack.c.l.b16 %v2078
    %v2191 = vunpack.c.l.b16 %v2079
    %v2192 = vunpack.c.l.b16 %v2080
    %v2193 = vunpack.c.l.b16 %v2081
    %v2194 = vunpack.c.l.b16 %v2082
    %v2195 = vunpack.c.l.b16 %v2083
    %v2196 = vunpack.c.l.b16 %v2084
    %v2197 = vunpack.c.l.b16 %v2085
    %v2198 = vunpack.c.l.b16 %v2086
    %v2199 = vunpack.c.l.b16 %v2087
    %v2200 = vpack.c.b16 %v2185, %v2184
    %v2201 = vpack.c.b16 %v2187, %v2186
    %v2202 = vpack.c.b16 %v2189, %v2188
    %v2203 = vpack.c.b16 %v2191, %v2190
    %v2204 = vpack.c.b16 %v2193, %v2192
    %v2205 = vpack.c.b16 %v2195, %v2194
    %v2206 = vpack.c.b16 %v2197, %v2196
    %v2207 = vpack.c.b16 %v2199, %v2198
    %2216 = vmatprep.subr.bf16.mxu0 %v2056
    %2217 = vmatpush1.bf16.msra.mxu0 %v2055
    %2218 = vmatprep.subr.bf16.mxu0 %v2058
    %2219 = vmatpush1.bf16.msra.mxu0 %v2057
    %2220 = vmatprep.subr.bf16.mxu0 %v2060
    %2221 = vmatpush1.bf16.msra.mxu0 %v2059
    %2222 = vmatprep.subr.bf16.mxu0 %v2062
    %2223 = vmatpush1.bf16.msra.mxu0 %v2061
    %2224 = vmatprep.subr.bf16.mxu0 %v2064
    %2225 = vmatpush1.bf16.msra.mxu0 %v2063
    %2226 = vmatprep.subr.bf16.mxu0 %v2066
    %2227 = vmatpush1.bf16.msra.mxu0 %v2065
    %2228 = vmatprep.subr.bf16.mxu0 %v2068
    %2229 = vmatpush1.bf16.msra.mxu0 %v2067
    %2230 = vmatprep.subr.bf16.mxu0 %v2070
    %2231 = vmatpush1.bf16.msra.mxu0 %v2069
    %2232 = vmatprep.subr.bf16.mxu0 0
    %2233 = vmatpush1.bf16.msra.mxu0 0
    %2234 = vmatprep.subr.bf16.mxu0 0
    %2235 = vmatpush1.bf16.msra.mxu0 0
    %2236 = vmatprep.subr.bf16.mxu0 0
    %2237 = vmatpush1.bf16.msra.mxu0 0
    %2238 = vmatprep.subr.bf16.mxu0 0
    %2239 = vmatpush1.bf16.msra.mxu0 0
    %2240 = vmatprep.subr.bf16.mxu0 0
    %2241 = vmatpush1.bf16.msra.mxu0 0
    %2242 = vmatprep.subr.bf16.mxu0 0
    %2243 = vmatpush1.bf16.msra.mxu0 0
    %2244 = vmatprep.subr.bf16.mxu0 0
    %2245 = vmatpush1.bf16.msra.mxu0 0
    %2246 = vmatprep.subr.bf16.mxu0 0
    %2247 = vmatpush1.bf16.msra.mxu0 0
    %2248 = vmatprep.mubr.bf16.mxu0 0
    %2249 = vmatmul.mubr.bf16.gmra.mrb[0].mxu0 %v2200
    %v2250 = vpop.f32.mrb[0].mxu0
    %v2251 = vadd.f32 %v2091, %v2250
    %v2252 = vpop.f32.mrb[0].mxu0
    %v2253 = vadd.f32 %v2091, %v2252
    %v2254 = vpop.f32.mrb[0].mxu0
    %v2255 = vadd.f32 %v2096, %v2254
    %v2256 = vpop.f32.mrb[0].mxu0
    %v2257 = vadd.f32 %v2096, %v2256
    %2258 = vmatprep.mubr.bf16.mxu0 0
    %2259 = vmatmul.mubr.bf16.gmra.mrb[0].mxu0 %v2201
    %v2260 = vpop.f32.mrb[0].mxu0
    %v2261 = vadd.f32 %v2101, %v2260
    %v2262 = vpop.f32.mrb[0].mxu0
    %v2263 = vadd.f32 %v2101, %v2262
    %v2264 = vpop.f32.mrb[0].mxu0
    %v2265 = vadd.f32 %v2106, %v2264
    %v2266 = vpop.f32.mrb[0].mxu0
    %v2267 = vadd.f32 %v2106, %v2266
    %2268 = vmatprep.mubr.bf16.mxu0 0
    %2269 = vmatmul.mubr.bf16.gmra.mrb[0].mxu0 %v2202
    %v2270 = vpop.f32.mrb[0].mxu0
    %v2271 = vadd.f32 %v2111, %v2270
    %v2272 = vpop.f32.mrb[0].mxu0
    %v2273 = vadd.f32 %v2111, %v2272
    %v2274 = vpop.f32.mrb[0].mxu0
    %v2275 = vadd.f32 %v2116, %v2274
    %v2276 = vpop.f32.mrb[0].mxu0
    %v2277 = vadd.f32 %v2116, %v2276
    %2278 = vmatprep.mubr.bf16.mxu0 0
    %2279 = vmatmul.mubr.bf16.gmra.mrb[0].mxu0 %v2203
    %v2280 = vpop.f32.mrb[0].mxu0
    %v2281 = vadd.f32 %v2121, %v2280
    %v2282 = vpop.f32.mrb[0].mxu0
    %v2283 = vadd.f32 %v2121, %v2282
    %v2284 = vpop.f32.mrb[0].mxu0
    %v2285 = vadd.f32 %v2126, %v2284
    %v2286 = vpop.f32.mrb[0].mxu0
    %v2287 = vadd.f32 %v2126, %v2286
    %2288 = vmatprep.mubr.bf16.mxu0 0
    %2289 = vmatmul.mubr.bf16.gmra.mrb[0].mxu0 %v2204
    %v2290 = vpop.f32.mrb[0].mxu0
    %v2291 = vadd.f32 %v2131, %v2290
    %v2292 = vpop.f32.mrb[0].mxu0
    %v2293 = vadd.f32 %v2131, %v2292
    %v2294 = vpop.f32.mrb[0].mxu0
    %v2295 = vadd.f32 %v2136, %v2294
    %v2296 = vpop.f32.mrb[0].mxu0
    %v2297 = vadd.f32 %v2136, %v2296
    %2298 = vmatprep.mubr.bf16.mxu0 0
    %2299 = vmatmul.mubr.bf16.gmra.mrb[0].mxu0 %v2205
    %v2300 = vpop.f32.mrb[0].mxu0
    %v2301 = vadd.f32 %v2141, %v2300
    %v2302 = vpop.f32.mrb[0].mxu0
    %v2303 = vadd.f32 %v2141, %v2302
    %v2304 = vpop.f32.mrb[0].mxu0
    %v2305 = vadd.f32 %v2146, %v2304
    %v2306 = vpop.f32.mrb[0].mxu0
    %v2307 = vadd.f32 %v2146, %v2306
    %2308 = vmatprep.mubr.bf16.mxu0 0
    %2309 = vmatmul.mubr.bf16.gmra.mrb[0].mxu0 %v2206
    %v2310 = vpop.f32.mrb[0].mxu0
    %v2311 = vadd.f32 %v2151, %v2310
    %v2312 = vpop.f32.mrb[0].mxu0
    %v2313 = vadd.f32 %v2151, %v2312
    %v2314 = vpop.f32.mrb[0].mxu0
    %v2315 = vadd.f32 %v2156, %v2314
    %v2316 = vpop.f32.mrb[0].mxu0
    %v2317 = vadd.f32 %v2156, %v2316
    %2318 = vmatprep.mubr.bf16.mxu0 0
    %2319 = vmatmul.mubr.bf16.gmra.mrb[0].mxu0 %v2207
    %v2320 = vpop.f32.mrb[0].mxu0
    %v2321 = vadd.f32 %v2161, %v2320
    %v2322 = vpop.f32.mrb[0].mxu0
    %v2323 = vadd.f32 %v2161, %v2322
    %v2324 = vpop.f32.mrb[0].mxu0
    %v2325 = vadd.f32 %v2166, %v2324
    %v2326 = vpop.f32.mrb[0].mxu0
    %v2327 = vadd.f32 %v2166, %v2326
    %2328 = vdwg.mxu0
    %v2329 = vtanh.pop %v2251
    %v2330 = vtanh.pop %v2253
    %v2331 = vtanh.pop %v2255
    %v2332 = vtanh.pop %v2257
    %v2333 = vtanh.pop %v2261
    %v2334 = vtanh.pop %v2263
    %v2335 = vtanh.pop %v2265
    %v2336 = vtanh.pop %v2267
    %v2337 = vtanh.pop %v2271
    %v2338 = vtanh.pop %v2273
    %v2339 = vtanh.pop %v2275
    %v2340 = vtanh.pop %v2277
    %v2341 = vtanh.pop %v2281
    %v2342 = vtanh.pop %v2283
    %v2343 = vtanh.pop %v2285
    %v2344 = vtanh.pop %v2287
    %v2345 = vtanh.pop %v2291
    %v2346 = vtanh.pop %v2293
    %v2347 = vtanh.pop %v2295
    %v2348 = vtanh.pop %v2297
    %v2349 = vtanh.pop %v2301
    %v2350 = vtanh.pop %v2303
    %v2351 = vtanh.pop %v2305
    %v2352 = vtanh.pop %v2307
    %v2353 = vtanh.pop %v2311
    %v2354 = vtanh.pop %v2313
    %v2355 = vtanh.pop %v2315
    %v2356 = vtanh.pop %v2317
    %v2357 = vtanh.pop %v2321
    %v2358 = vtanh.pop %v2323
    %v2359 = vtanh.pop %v2325
    %v2360 = vtanh.pop %v2327
    %v2361 = vadd.f32 %v2329, %v1717
    %v2362 = vadd.f32 %v2330, %v1718
    %v2363 = vadd.f32 %v2331, %v1719
    %v2364 = vadd.f32 %v2332, %v1720
    %v2365 = vadd.f32 %v2333, %v1721
    %v2366 = vadd.f32 %v2334, %v1722
    %v2367 = vadd.f32 %v2335, %v1723
    %v2368 = vadd.f32 %v2336, %v1724
    %v2369 = vadd.f32 %v2337, %v1725
    %v2370 = vadd.f32 %v2338, %v1726
    %v2371 = vadd.f32 %v2339, %v1727
    %v2372 = vadd.f32 %v2340, %v1728
    %v2373 = vadd.f32 %v2341, %v1729
    %v2374 = vadd.f32 %v2342, %v1730
    %v2375 = vadd.f32 %v2343, %v1731
    %v2376 = vadd.f32 %v2344, %v1732
    %v2377 = vadd.f32 %v2345, %v1733
    %v2378 = vadd.f32 %v2346, %v1734
    %v2379 = vadd.f32 %v2347, %v1735
    %v2380 = vadd.f32 %v2348, %v1736
    %v2381 = vadd.f32 %v2349, %v1737
    %v2382 = vadd.f32 %v2350, %v1738
    %v2383 = vadd.f32 %v2351, %v1739
    %v2384 = vadd.f32 %v2352, %v1740
    %v2385 = vadd.f32 %v2353, %v1741
    %v2386 = vadd.f32 %v2354, %v1742
    %v2387 = vadd.f32 %v2355, %v1743
    %v2388 = vadd.f32 %v2356, %v1744
    %v2389 = vadd.f32 %v2357, %v1745
    %v2390 = vadd.f32 %v2358, %v1746
    %v2391 = vadd.f32 %v2359, %v1747
    %v2392 = vadd.f32 %v2360, %v1748
    %s2393 = scalar_lea.vmem %s3, 192
    %v2394 = vld [vmem:[%s2393] sm:$0xf]
    %v2395 = vld [vmem:[%s2393 + $0x4] sm:$0xf]
    %v2396 = vld [vmem:[%s2393 + $0x8] sm:$0xf]
    %v2397 = vld [vmem:[%s2393 + $0xc] sm:$0xf]
    %v2398 = vld [vmem:[%s2393 + $0x10] sm:$0xf]
    %v2399 = vld [vmem:[%s2393 + $0x14] sm:$0xf]
    %v2400 = vld [vmem:[%s2393 + $0x18] sm:$0xf]
    %v2401 = vld [vmem:[%s2393 + $0x1c] sm:$0xf]
    %v2402 = vld [vmem:[%s2393 + $0x20] sm:$0xf]
    %v2403 = vld [vmem:[%s2393 + $0x24] sm:$0xf]
    %v2404 = vld [vmem:[%s2393 + $0x28] sm:$0xf]
    %v2405 = vld [vmem:[%s2393 + $0x2c] sm:$0xf]
    %v2406 = vld [vmem:[%s2393 + $0x30] sm:$0xf]
    %v2407 = vld [vmem:[%s2393 + $0x34] sm:$0xf]
    %v2408 = vld [vmem:[%s2393 + $0x38] sm:$0xf]
    %v2409 = vld [vmem:[%s2393 + $0x3c] sm:$0xf]
    %v2410 = vpack.c.bf16 %v2363, %v2361
    %v2411 = vpack.c.bf16 %v2364, %v2362
    %v2412 = vpack.c.bf16 %v2367, %v2365
    %v2413 = vpack.c.bf16 %v2368, %v2366
    %v2414 = vpack.c.bf16 %v2371, %v2369
    %v2415 = vpack.c.bf16 %v2372, %v2370
    %v2416 = vpack.c.bf16 %v2375, %v2373
    %v2417 = vpack.c.bf16 %v2376, %v2374
    %v2418 = vpack.c.bf16 %v2379, %v2377
    %v2419 = vpack.c.bf16 %v2380, %v2378
    %v2420 = vpack.c.bf16 %v2383, %v2381
    %v2421 = vpack.c.bf16 %v2384, %v2382
    %v2422 = vpack.c.bf16 %v2387, %v2385
    %v2423 = vpack.c.bf16 %v2388, %v2386
    %v2424 = vpack.c.bf16 %v2391, %v2389
    %v2425 = vpack.c.bf16 %v2392, %v2390
    %2427 = vset.pattern.permute.xlu0 0
    %2428 = vperm.xlu0 %2427, %v383
    %v2429 = vpop.permute.xlu0 %2428
    %2432 = vset.pattern.permute.xlu0 0
    %2433 = vperm.xlu0 %2432, %v384
    %v2434 = vpop.permute.xlu0 %2433
    %2437 = vset.pattern.permute.xlu0 0
    %2438 = vperm.xlu0 %2437, %v385
    %v2439 = vpop.permute.xlu0 %2438
    %2442 = vset.pattern.permute.xlu0 0
    %2443 = vperm.xlu0 %2442, %v386
    %v2444 = vpop.permute.xlu0 %2443
    %2447 = vset.pattern.permute.xlu0 0
    %2448 = vperm.xlu0 %2447, %v387
    %v2449 = vpop.permute.xlu0 %2448
    %2452 = vset.pattern.permute.xlu0 0
    %2453 = vperm.xlu0 %2452, %v388
    %v2454 = vpop.permute.xlu0 %2453
    %2457 = vset.pattern.permute.xlu0 0
    %2458 = vperm.xlu0 %2457, %v389
    %v2459 = vpop.permute.xlu0 %2458
    %2462 = vset.pattern.permute.xlu0 0
    %2463 = vperm.xlu0 %2462, %v390
    %v2464 = vpop.permute.xlu0 %2463
    %2467 = vset.pattern.permute.xlu0 0
    %2468 = vperm.xlu0 %2467, %v391
    %v2469 = vpop.permute.xlu0 %2468
    %2472 = vset.pattern.permute.xlu0 0
    %2473 = vperm.xlu0 %2472, %v392
    %v2474 = vpop.permute.xlu0 %2473
    %2477 = vset.pattern.permute.xlu0 0
    %2478 = vperm.xlu0 %2477, %v393
    %v2479 = vpop.permute.xlu0 %2478
    %2482 = vset.pattern.permute.xlu0 0
    %2483 = vperm.xlu0 %2482, %v394
    %v2484 = vpop.permute.xlu0 %2483
    %2487 = vset.pattern.permute.xlu0 0
    %2488 = vperm.xlu0 %2487, %v395
    %v2489 = vpop.permute.xlu0 %2488
    %2492 = vset.pattern.permute.xlu0 0
    %2493 = vperm.xlu0 %2492, %v396
    %v2494 = vpop.permute.xlu0 %2493
    %2497 = vset.pattern.permute.xlu0 0
    %2498 = vperm.xlu0 %2497, %v397
    %v2499 = vpop.permute.xlu0 %2498
    %2502 = vset.pattern.permute.xlu0 0
    %2503 = vperm.xlu0 %2502, %v398
    %v2504 = vpop.permute.xlu0 %2503
    %v2522 = vunpack.c.l.b16 %v2394
    %v2523 = vunpack.c.l.b16 %v2395
    %v2524 = vunpack.c.l.b16 %v2396
    %v2525 = vunpack.c.l.b16 %v2397
    %v2526 = vunpack.c.l.b16 %v2398
    %v2527 = vunpack.c.l.b16 %v2399
    %v2528 = vunpack.c.l.b16 %v2400
    %v2529 = vunpack.c.l.b16 %v2401
    %v2530 = vunpack.c.l.b16 %v2402
    %v2531 = vunpack.c.l.b16 %v2403
    %v2532 = vunpack.c.l.b16 %v2404
    %v2533 = vunpack.c.l.b16 %v2405
    %v2534 = vunpack.c.l.b16 %v2406
    %v2535 = vunpack.c.l.b16 %v2407
    %v2536 = vunpack.c.l.b16 %v2408
    %v2537 = vunpack.c.l.b16 %v2409
    %v2538 = vpack.c.b16 %v2523, %v2522
    %v2539 = vpack.c.b16 %v2525, %v2524
    %v2540 = vpack.c.b16 %v2527, %v2526
    %v2541 = vpack.c.b16 %v2529, %v2528
    %v2542 = vpack.c.b16 %v2531, %v2530
    %v2543 = vpack.c.b16 %v2533, %v2532
    %v2544 = vpack.c.b16 %v2535, %v2534
    %v2545 = vpack.c.b16 %v2537, %v2536
    %2554 = vmatprep.subr.bf16.mxu0 %v2411
    %2555 = vmatpush1.bf16.msra.mxu0 %v2410
    %2556 = vmatprep.subr.bf16.mxu0 %v2413
    %2557 = vmatpush1.bf16.msra.mxu0 %v2412
    %2558 = vmatprep.subr.bf16.mxu0 %v2415
    %2559 = vmatpush1.bf16.msra.mxu0 %v2414
    %2560 = vmatprep.subr.bf16.mxu0 %v2417
    %2561 = vmatpush1.bf16.msra.mxu0 %v2416
    %2562 = vmatprep.subr.bf16.mxu0 %v2419
    %2563 = vmatpush1.bf16.msra.mxu0 %v2418
    %2564 = vmatprep.subr.bf16.mxu0 %v2421
    %2565 = vmatpush1.bf16.msra.mxu0 %v2420
    %2566 = vmatprep.subr.bf16.mxu0 %v2423
    %2567 = vmatpush1.bf16.msra.mxu0 %v2422
    %2568 = vmatprep.subr.bf16.mxu0 %v2425
    %2569 = vmatpush1.bf16.msra.mxu0 %v2424
    %2570 = vmatprep.subr.bf16.mxu0 0
    %2571 = vmatpush1.bf16.msra.mxu0 0
    %2572 = vmatprep.subr.bf16.mxu0 0
    %2573 = vmatpush1.bf16.msra.mxu0 0
    %2574 = vmatprep.subr.bf16.mxu0 0
    %2575 = vmatpush1.bf16.msra.mxu0 0
    %2576 = vmatprep.subr.bf16.mxu0 0
    %2577 = vmatpush1.bf16.msra.mxu0 0
    %2578 = vmatprep.subr.bf16.mxu0 0
    %2579 = vmatpush1.bf16.msra.mxu0 0
    %2580 = vmatprep.subr.bf16.mxu0 0
    %2581 = vmatpush1.bf16.msra.mxu0 0
    %2582 = vmatprep.subr.bf16.mxu0 0
    %2583 = vmatpush1.bf16.msra.mxu0 0
    %2584 = vmatprep.subr.bf16.mxu0 0
    %2585 = vmatpush1.bf16.msra.mxu0 0
    %2586 = vmatprep.mubr.bf16.mxu0 0
    %2587 = vmatmul.mubr.bf16.gmra.mrb[0].mxu0 %v2538
    %v2588 = vpop.f32.mrb[0].mxu0
    %v2589 = vadd.f32 %v2429, %v2588
    %v2590 = vpop.f32.mrb[0].mxu0
    %v2591 = vadd.f32 %v2429, %v2590
    %v2592 = vpop.f32.mrb[0].mxu0
    %v2593 = vadd.f32 %v2434, %v2592
    %v2594 = vpop.f32.mrb[0].mxu0
    %v2595 = vadd.f32 %v2434, %v2594
    %2596 = vmatprep.mubr.bf16.mxu0 0
    %2597 = vmatmul.mubr.bf16.gmra.mrb[0].mxu0 %v2539
    %v2598 = vpop.f32.mrb[0].mxu0
    %v2599 = vadd.f32 %v2439, %v2598
    %v2600 = vpop.f32.mrb[0].mxu0
    %v2601 = vadd.f32 %v2439, %v2600
    %v2602 = vpop.f32.mrb[0].mxu0
    %v2603 = vadd.f32 %v2444, %v2602
    %v2604 = vpop.f32.mrb[0].mxu0
    %v2605 = vadd.f32 %v2444, %v2604
    %2606 = vmatprep.mubr.bf16.mxu0 0
    %2607 = vmatmul.mubr.bf16.gmra.mrb[0].mxu0 %v2540
    %v2608 = vpop.f32.mrb[0].mxu0
    %v2609 = vadd.f32 %v2449, %v2608
    %v2610 = vpop.f32.mrb[0].mxu0
    %v2611 = vadd.f32 %v2449, %v2610
    %v2612 = vpop.f32.mrb[0].mxu0
    %v2613 = vadd.f32 %v2454, %v2612
    %v2614 = vpop.f32.mrb[0].mxu0
    %v2615 = vadd.f32 %v2454, %v2614
    %2616 = vmatprep.mubr.bf16.mxu0 0
    %2617 = vmatmul.mubr.bf16.gmra.mrb[0].mxu0 %v2541
    %v2618 = vpop.f32.mrb[0].mxu0
    %v2619 = vadd.f32 %v2459, %v2618
    %v2620 = vpop.f32.mrb[0].mxu0
    %v2621 = vadd.f32 %v2459, %v2620
    %v2622 = vpop.f32.mrb[0].mxu0
    %v2623 = vadd.f32 %v2464, %v2622
    %v2624 = vpop.f32.mrb[0].mxu0
    %v2625 = vadd.f32 %v2464, %v2624
    %2626 = vmatprep.mubr.bf16.mxu0 0
    %2627 = vmatmul.mubr.bf16.gmra.mrb[0].mxu0 %v2542
    %v2628 = vpop.f32.mrb[0].mxu0
    %v2629 = vadd.f32 %v2469, %v2628
    %v2630 = vpop.f32.mrb[0].mxu0
    %v2631 = vadd.f32 %v2469, %v2630
    %v2632 = vpop.f32.mrb[0].mxu0
    %v2633 = vadd.f32 %v2474, %v2632
    %v2634 = vpop.f32.mrb[0].mxu0
    %v2635 = vadd.f32 %v2474, %v2634
    %2636 = vmatprep.mubr.bf16.mxu0 0
    %2637 = vmatmul.mubr.bf16.gmra.mrb[0].mxu0 %v2543
    %v2638 = vpop.f32.mrb[0].mxu0
    %v2639 = vadd.f32 %v2479, %v2638
    %v2640 = vpop.f32.mrb[0].mxu0
    %v2641 = vadd.f32 %v2479, %v2640
    %v2642 = vpop.f32.mrb[0].mxu0
    %v2643 = vadd.f32 %v2484, %v2642
    %v2644 = vpop.f32.mrb[0].mxu0
    %v2645 = vadd.f32 %v2484, %v2644
    %2646 = vmatprep.mubr.bf16.mxu0 0
    %2647 = vmatmul.mubr.bf16.gmra.mrb[0].mxu0 %v2544
    %v2648 = vpop.f32.mrb[0].mxu0
    %v2649 = vadd.f32 %v2489, %v2648
    %v2650 = vpop.f32.mrb[0].mxu0
    %v2651 = vadd.f32 %v2489, %v2650
    %v2652 = vpop.f32.mrb[0].mxu0
    %v2653 = vadd.f32 %v2494, %v2652
    %v2654 = vpop.f32.mrb[0].mxu0
    %v2655 = vadd.f32 %v2494, %v2654
    %2656 = vmatprep.mubr.bf16.mxu0 0
    %2657 = vmatmul.mubr.bf16.gmra.mrb[0].mxu0 %v2545
    %v2658 = vpop.f32.mrb[0].mxu0
    %v2659 = vadd.f32 %v2499, %v2658
    %v2660 = vpop.f32.mrb[0].mxu0
    %v2661 = vadd.f32 %v2499, %v2660
    %v2662 = vpop.f32.mrb[0].mxu0
    %v2663 = vadd.f32 %v2504, %v2662
    %v2664 = vpop.f32.mrb[0].mxu0
    %v2665 = vadd.f32 %v2504, %v2664
    %2666 = vdwg.mxu0
    %v2667 = vtanh.pop %v2589
    %v2668 = vtanh.pop %v2591
    %v2669 = vtanh.pop %v2593
    %v2670 = vtanh.pop %v2595
    %v2671 = vtanh.pop %v2599
    %v2672 = vtanh.pop %v2601
    %v2673 = vtanh.pop %v2603
    %v2674 = vtanh.pop %v2605
    %v2675 = vtanh.pop %v2609
    %v2676 = vtanh.pop %v2611
    %v2677 = vtanh.pop %v2613
    %v2678 = vtanh.pop %v2615
    %v2679 = vtanh.pop %v2619
    %v2680 = vtanh.pop %v2621
    %v2681 = vtanh.pop %v2623
    %v2682 = vtanh.pop %v2625
    %v2683 = vtanh.pop %v2629
    %v2684 = vtanh.pop %v2631
    %v2685 = vtanh.pop %v2633
    %v2686 = vtanh.pop %v2635
    %v2687 = vtanh.pop %v2639
    %v2688 = vtanh.pop %v2641
    %v2689 = vtanh.pop %v2643
    %v2690 = vtanh.pop %v2645
    %v2691 = vtanh.pop %v2649
    %v2692 = vtanh.pop %v2651
    %v2693 = vtanh.pop %v2653
    %v2694 = vtanh.pop %v2655
    %v2695 = vtanh.pop %v2659
    %v2696 = vtanh.pop %v2661
    %v2697 = vtanh.pop %v2663
    %v2698 = vtanh.pop %v2665
    %v2699 = vpack.c.bf16 %v2669, %v2667
    %v2700 = vpack.c.bf16 %v2670, %v2668
    %v2701 = vpack.c.bf16 %v2673, %v2671
    %v2702 = vpack.c.bf16 %v2674, %v2672
    %v2703 = vpack.c.bf16 %v2677, %v2675
    %v2704 = vpack.c.bf16 %v2678, %v2676
    %v2705 = vpack.c.bf16 %v2681, %v2679
    %v2706 = vpack.c.bf16 %v2682, %v2680
    %v2707 = vpack.c.bf16 %v2685, %v2683
    %v2708 = vpack.c.bf16 %v2686, %v2684
    %v2709 = vpack.c.bf16 %v2689, %v2687
    %v2710 = vpack.c.bf16 %v2690, %v2688
    %v2711 = vpack.c.bf16 %v2693, %v2691
    %v2712 = vpack.c.bf16 %v2694, %v2692
    %v2713 = vpack.c.bf16 %v2697, %v2695
    %v2714 = vpack.c.bf16 %v2698, %v2696
    %s2715 = scalar_lea.vmem %s5, 192
    %v2716 = vld [vmem:[%s2715] sm:$0xf]
    %v2717 = vld [vmem:[%s2715 + $0x4] sm:$0xf]
    %v2718 = vld [vmem:[%s2715 + $0x8] sm:$0xf]
    %v2719 = vld [vmem:[%s2715 + $0xc] sm:$0xf]
    %v2720 = vld [vmem:[%s2715 + $0x10] sm:$0xf]
    %v2721 = vld [vmem:[%s2715 + $0x14] sm:$0xf]
    %v2722 = vld [vmem:[%s2715 + $0x18] sm:$0xf]
    %v2723 = vld [vmem:[%s2715 + $0x1c] sm:$0xf]
    %v2724 = vld [vmem:[%s2715 + $0x20] sm:$0xf]
    %v2725 = vld [vmem:[%s2715 + $0x24] sm:$0xf]
    %v2726 = vld [vmem:[%s2715 + $0x28] sm:$0xf]
    %v2727 = vld [vmem:[%s2715 + $0x2c] sm:$0xf]
    %v2728 = vld [vmem:[%s2715 + $0x30] sm:$0xf]
    %v2729 = vld [vmem:[%s2715 + $0x34] sm:$0xf]
    %v2730 = vld [vmem:[%s2715 + $0x38] sm:$0xf]
    %v2731 = vld [vmem:[%s2715 + $0x3c] sm:$0xf]
    %2733 = vset.pattern.permute.xlu0 0
    %2734 = vperm.xlu0 %2733, %v447
    %v2735 = vpop.permute.xlu0 %2734
    %2738 = vset.pattern.permute.xlu0 0
    %2739 = vperm.xlu0 %2738, %v448
    %v2740 = vpop.permute.xlu0 %2739
    %2743 = vset.pattern.permute.xlu0 0
    %2744 = vperm.xlu0 %2743, %v449
    %v2745 = vpop.permute.xlu0 %2744
    %2748 = vset.pattern.permute.xlu0 0
    %2749 = vperm.xlu0 %2748, %v450
    %v2750 = vpop.permute.xlu0 %2749
    %2753 = vset.pattern.permute.xlu0 0
    %2754 = vperm.xlu0 %2753, %v451
    %v2755 = vpop.permute.xlu0 %2754
    %2758 = vset.pattern.permute.xlu0 0
    %2759 = vperm.xlu0 %2758, %v452
    %v2760 = vpop.permute.xlu0 %2759
    %2763 = vset.pattern.permute.xlu0 0
    %2764 = vperm.xlu0 %2763, %v453
    %v2765 = vpop.permute.xlu0 %2764
    %2768 = vset.pattern.permute.xlu0 0
    %2769 = vperm.xlu0 %2768, %v454
    %v2770 = vpop.permute.xlu0 %2769
    %2773 = vset.pattern.permute.xlu0 0
    %2774 = vperm.xlu0 %2773, %v455
    %v2775 = vpop.permute.xlu0 %2774
    %2778 = vset.pattern.permute.xlu0 0
    %2779 = vperm.xlu0 %2778, %v456
    %v2780 = vpop.permute.xlu0 %2779
    %2783 = vset.pattern.permute.xlu0 0
    %2784 = vperm.xlu0 %2783, %v457
    %v2785 = vpop.permute.xlu0 %2784
    %2788 = vset.pattern.permute.xlu0 0
    %2789 = vperm.xlu0 %2788, %v458
    %v2790 = vpop.permute.xlu0 %2789
    %2793 = vset.pattern.permute.xlu0 0
    %2794 = vperm.xlu0 %2793, %v459
    %v2795 = vpop.permute.xlu0 %2794
    %2798 = vset.pattern.permute.xlu0 0
    %2799 = vperm.xlu0 %2798, %v460
    %v2800 = vpop.permute.xlu0 %2799
    %2803 = vset.pattern.permute.xlu0 0
    %2804 = vperm.xlu0 %2803, %v461
    %v2805 = vpop.permute.xlu0 %2804
    %2808 = vset.pattern.permute.xlu0 0
    %2809 = vperm.xlu0 %2808, %v462
    %v2810 = vpop.permute.xlu0 %2809
    %v2828 = vunpack.c.l.b16 %v2716
    %v2829 = vunpack.c.l.b16 %v2717
    %v2830 = vunpack.c.l.b16 %v2718
    %v2831 = vunpack.c.l.b16 %v2719
    %v2832 = vunpack.c.l.b16 %v2720
    %v2833 = vunpack.c.l.b16 %v2721
    %v2834 = vunpack.c.l.b16 %v2722
    %v2835 = vunpack.c.l.b16 %v2723
    %v2836 = vunpack.c.l.b16 %v2724
    %v2837 = vunpack.c.l.b16 %v2725
    %v2838 = vunpack.c.l.b16 %v2726
    %v2839 = vunpack.c.l.b16 %v2727
    %v2840 = vunpack.c.l.b16 %v2728
    %v2841 = vunpack.c.l.b16 %v2729
    %v2842 = vunpack.c.l.b16 %v2730
    %v2843 = vunpack.c.l.b16 %v2731
    %v2844 = vpack.c.b16 %v2829, %v2828
    %v2845 = vpack.c.b16 %v2831, %v2830
    %v2846 = vpack.c.b16 %v2833, %v2832
    %v2847 = vpack.c.b16 %v2835, %v2834
    %v2848 = vpack.c.b16 %v2837, %v2836
    %v2849 = vpack.c.b16 %v2839, %v2838
    %v2850 = vpack.c.b16 %v2841, %v2840
    %v2851 = vpack.c.b16 %v2843, %v2842
    %2860 = vmatprep.subr.bf16.mxu0 %v2700
    %2861 = vmatpush1.bf16.msra.mxu0 %v2699
    %2862 = vmatprep.subr.bf16.mxu0 %v2702
    %2863 = vmatpush1.bf16.msra.mxu0 %v2701
    %2864 = vmatprep.subr.bf16.mxu0 %v2704
    %2865 = vmatpush1.bf16.msra.mxu0 %v2703
    %2866 = vmatprep.subr.bf16.mxu0 %v2706
    %2867 = vmatpush1.bf16.msra.mxu0 %v2705
    %2868 = vmatprep.subr.bf16.mxu0 %v2708
    %2869 = vmatpush1.bf16.msra.mxu0 %v2707
    %2870 = vmatprep.subr.bf16.mxu0 %v2710
    %2871 = vmatpush1.bf16.msra.mxu0 %v2709
    %2872 = vmatprep.subr.bf16.mxu0 %v2712
    %2873 = vmatpush1.bf16.msra.mxu0 %v2711
    %2874 = vmatprep.subr.bf16.mxu0 %v2714
    %2875 = vmatpush1.bf16.msra.mxu0 %v2713
    %2876 = vmatprep.subr.bf16.mxu0 0
    %2877 = vmatpush1.bf16.msra.mxu0 0
    %2878 = vmatprep.subr.bf16.mxu0 0
    %2879 = vmatpush1.bf16.msra.mxu0 0
    %2880 = vmatprep.subr.bf16.mxu0 0
    %2881 = vmatpush1.bf16.msra.mxu0 0
    %2882 = vmatprep.subr.bf16.mxu0 0
    %2883 = vmatpush1.bf16.msra.mxu0 0
    %2884 = vmatprep.subr.bf16.mxu0 0
    %2885 = vmatpush1.bf16.msra.mxu0 0
    %2886 = vmatprep.subr.bf16.mxu0 0
    %2887 = vmatpush1.bf16.msra.mxu0 0
    %2888 = vmatprep.subr.bf16.mxu0 0
    %2889 = vmatpush1.bf16.msra.mxu0 0
    %2890 = vmatprep.subr.bf16.mxu0 0
    %2891 = vmatpush1.bf16.msra.mxu0 0
    %2892 = vmatprep.mubr.bf16.mxu0 0
    %2893 = vmatmul.mubr.bf16.gmra.mrb[0].mxu0 %v2844
    %v2894 = vpop.f32.mrb[0].mxu0
    %v2895 = vadd.f32 %v2735, %v2894
    %v2896 = vpop.f32.mrb[0].mxu0
    %v2897 = vadd.f32 %v2735, %v2896
    %v2898 = vpop.f32.mrb[0].mxu0
    %v2899 = vadd.f32 %v2740, %v2898
    %v2900 = vpop.f32.mrb[0].mxu0
    %v2901 = vadd.f32 %v2740, %v2900
    %2902 = vmatprep.mubr.bf16.mxu0 0
    %2903 = vmatmul.mubr.bf16.gmra.mrb[0].mxu0 %v2845
    %v2904 = vpop.f32.mrb[0].mxu0
    %v2905 = vadd.f32 %v2745, %v2904
    %v2906 = vpop.f32.mrb[0].mxu0
    %v2907 = vadd.f32 %v2745, %v2906
    %v2908 = vpop.f32.mrb[0].mxu0
    %v2909 = vadd.f32 %v2750, %v2908
    %v2910 = vpop.f32.mrb[0].mxu0
    %v2911 = vadd.f32 %v2750, %v2910
    %2912 = vmatprep.mubr.bf16.mxu0 0
    %2913 = vmatmul.mubr.bf16.gmra.mrb[0].mxu0 %v2846
    %v2914 = vpop.f32.mrb[0].mxu0
    %v2915 = vadd.f32 %v2755, %v2914
    %v2916 = vpop.f32.mrb[0].mxu0
    %v2917 = vadd.f32 %v2755, %v2916
    %v2918 = vpop.f32.mrb[0].mxu0
    %v2919 = vadd.f32 %v2760, %v2918
    %v2920 = vpop.f32.mrb[0].mxu0
    %v2921 = vadd.f32 %v2760, %v2920
    %2922 = vmatprep.mubr.bf16.mxu0 0
    %2923 = vmatmul.mubr.bf16.gmra.mrb[0].mxu0 %v2847
    %v2924 = vpop.f32.mrb[0].mxu0
    %v2925 = vadd.f32 %v2765, %v2924
    %v2926 = vpop.f32.mrb[0].mxu0
    %v2927 = vadd.f32 %v2765, %v2926
    %v2928 = vpop.f32.mrb[0].mxu0
    %v2929 = vadd.f32 %v2770, %v2928
    %v2930 = vpop.f32.mrb[0].mxu0
    %v2931 = vadd.f32 %v2770, %v2930
    %2932 = vmatprep.mubr.bf16.mxu0 0
    %2933 = vmatmul.mubr.bf16.gmra.mrb[0].mxu0 %v2848
    %v2934 = vpop.f32.mrb[0].mxu0
    %v2935 = vadd.f32 %v2775, %v2934
    %v2936 = vpop.f32.mrb[0].mxu0
    %v2937 = vadd.f32 %v2775, %v2936
    %v2938 = vpop.f32.mrb[0].mxu0
    %v2939 = vadd.f32 %v2780, %v2938
    %v2940 = vpop.f32.mrb[0].mxu0
    %v2941 = vadd.f32 %v2780, %v2940
    %2942 = vmatprep.mubr.bf16.mxu0 0
    %2943 = vmatmul.mubr.bf16.gmra.mrb[0].mxu0 %v2849
    %v2944 = vpop.f32.mrb[0].mxu0
    %v2945 = vadd.f32 %v2785, %v2944
    %v2946 = vpop.f32.mrb[0].mxu0
    %v2947 = vadd.f32 %v2785, %v2946
    %v2948 = vpop.f32.mrb[0].mxu0
    %v2949 = vadd.f32 %v2790, %v2948
    %v2950 = vpop.f32.mrb[0].mxu0
    %v2951 = vadd.f32 %v2790, %v2950
    %2952 = vmatprep.mubr.bf16.mxu0 0
    %2953 = vmatmul.mubr.bf16.gmra.mrb[0].mxu0 %v2850
    %v2954 = vpop.f32.mrb[0].mxu0
    %v2955 = vadd.f32 %v2795, %v2954
    %v2956 = vpop.f32.mrb[0].mxu0
    %v2957 = vadd.f32 %v2795, %v2956
    %v2958 = vpop.f32.mrb[0].mxu0
    %v2959 = vadd.f32 %v2800, %v2958
    %v2960 = vpop.f32.mrb[0].mxu0
    %v2961 = vadd.f32 %v2800, %v2960
    %2962 = vmatprep.mubr.bf16.mxu0 0
    %2963 = vmatmul.mubr.bf16.gmra.mrb[0].mxu0 %v2851
    %v2964 = vpop.f32.mrb[0].mxu0
    %v2965 = vadd.f32 %v2805, %v2964
    %v2966 = vpop.f32.mrb[0].mxu0
    %v2967 = vadd.f32 %v2805, %v2966
    %v2968 = vpop.f32.mrb[0].mxu0
    %v2969 = vadd.f32 %v2810, %v2968
    %v2970 = vpop.f32.mrb[0].mxu0
    %v2971 = vadd.f32 %v2810, %v2970
    %2972 = vdwg.mxu0
    %v2973 = vtanh.pop %v2895
    %v2974 = vtanh.pop %v2897
    %v2975 = vtanh.pop %v2899
    %v2976 = vtanh.pop %v2901
    %v2977 = vtanh.pop %v2905
    %v2978 = vtanh.pop %v2907
    %v2979 = vtanh.pop %v2909
    %v2980 = vtanh.pop %v2911
    %v2981 = vtanh.pop %v2915
    %v2982 = vtanh.pop %v2917
    %v2983 = vtanh.pop %v2919
    %v2984 = vtanh.pop %v2921
    %v2985 = vtanh.pop %v2925
    %v2986 = vtanh.pop %v2927
    %v2987 = vtanh.pop %v2929
    %v2988 = vtanh.pop %v2931
    %v2989 = vtanh.pop %v2935
    %v2990 = vtanh.pop %v2937
    %v2991 = vtanh.pop %v2939
    %v2992 = vtanh.pop %v2941
    %v2993 = vtanh.pop %v2945
    %v2994 = vtanh.pop %v2947
    %v2995 = vtanh.pop %v2949
    %v2996 = vtanh.pop %v2951
    %v2997 = vtanh.pop %v2955
    %v2998 = vtanh.pop %v2957
    %v2999 = vtanh.pop %v2959
    %v3000 = vtanh.pop %v2961
    %v3001 = vtanh.pop %v2965
    %v3002 = vtanh.pop %v2967
    %v3003 = vtanh.pop %v2969
    %v3004 = vtanh.pop %v2971
    %v3005 = vadd.f32 %v2973, %v2361
    %v3006 = vadd.f32 %v2974, %v2362
    %v3007 = vadd.f32 %v2975, %v2363
    %v3008 = vadd.f32 %v2976, %v2364
    %v3009 = vadd.f32 %v2977, %v2365
    %v3010 = vadd.f32 %v2978, %v2366
    %v3011 = vadd.f32 %v2979, %v2367
    %v3012 = vadd.f32 %v2980, %v2368
    %v3013 = vadd.f32 %v2981, %v2369
    %v3014 = vadd.f32 %v2982, %v2370
    %v3015 = vadd.f32 %v2983, %v2371
    %v3016 = vadd.f32 %v2984, %v2372
    %v3017 = vadd.f32 %v2985, %v2373
    %v3018 = vadd.f32 %v2986, %v2374
    %v3019 = vadd.f32 %v2987, %v2375
    %v3020 = vadd.f32 %v2988, %v2376
    %v3021 = vadd.f32 %v2989, %v2377
    %v3022 = vadd.f32 %v2990, %v2378
    %v3023 = vadd.f32 %v2991, %v2379
    %v3024 = vadd.f32 %v2992, %v2380
    %v3025 = vadd.f32 %v2993, %v2381
    %v3026 = vadd.f32 %v2994, %v2382
    %v3027 = vadd.f32 %v2995, %v2383
    %v3028 = vadd.f32 %v2996, %v2384
    %v3029 = vadd.f32 %v2997, %v2385
    %v3030 = vadd.f32 %v2998, %v2386
    %v3031 = vadd.f32 %v2999, %v2387
    %v3032 = vadd.f32 %v3000, %v2388
    %v3033 = vadd.f32 %v3001, %v2389
    %v3034 = vadd.f32 %v3002, %v2390
    %v3035 = vadd.f32 %v3003, %v2391
    %v3036 = vadd.f32 %v3004, %v2392
    %v3037 = vld [vmem:[%s7] sm:$0x3]
    %v3038 = vpack.c.bf16 %v3007, %v3005
    %v3039 = vpack.c.bf16 %v3008, %v3006
    %v3040 = vpack.c.bf16 %v3011, %v3009
    %v3041 = vpack.c.bf16 %v3012, %v3010
    %v3042 = vpack.c.bf16 %v3015, %v3013
    %v3043 = vpack.c.bf16 %v3016, %v3014
    %v3044 = vpack.c.bf16 %v3019, %v3017
    %v3045 = vpack.c.bf16 %v3020, %v3018
    %v3046 = vpack.c.bf16 %v3023, %v3021
    %v3047 = vpack.c.bf16 %v3024, %v3022
    %v3048 = vpack.c.bf16 %v3027, %v3025
    %v3049 = vpack.c.bf16 %v3028, %v3026
    %v3050 = vpack.c.bf16 %v3031, %v3029
    %v3051 = vpack.c.bf16 %v3032, %v3030
    %v3052 = vpack.c.bf16 %v3035, %v3033
    %v3053 = vpack.c.bf16 %v3036, %v3034
    %v3054 = vld [vmem:[%s8] sm:$0xf]
    %3056 = vset.pattern.permute.xlu0 0
    %3057 = vperm.xlu0 %3056, %v3054
    %v3058 = vpop.permute.xlu0 %3057
    %3060 = vmatprep.subr.bf16.mxu0 %v3039
    %3061 = vmatpush1.bf16.msra.mxu0 %v3038
    %3062 = vmatprep.subr.bf16.mxu0 %v3041
    %3063 = vmatpush1.bf16.msra.mxu0 %v3040
    %3064 = vmatprep.subr.bf16.mxu0 %v3043
    %3065 = vmatpush1.bf16.msra.mxu0 %v3042
    %3066 = vmatprep.subr.bf16.mxu0 %v3045
    %3067 = vmatpush1.bf16.msra.mxu0 %v3044
    %3068 = vmatprep.subr.bf16.mxu0 %v3047
    %3069 = vmatpush1.bf16.msra.mxu0 %v3046
    %3070 = vmatprep.subr.bf16.mxu0 %v3049
    %3071 = vmatpush1.bf16.msra.mxu0 %v3048
    %3072 = vmatprep.subr.bf16.mxu0 %v3051
    %3073 = vmatpush1.bf16.msra.mxu0 %v3050
    %3074 = vmatprep.subr.bf16.mxu0 %v3053
    %3075 = vmatpush1.bf16.msra.mxu0 %v3052
    %3076 = vmatprep.subr.bf16.mxu0 0
    %3077 = vmatpush1.bf16.msra.mxu0 0
    %3078 = vmatprep.subr.bf16.mxu0 0
    %3079 = vmatpush1.bf16.msra.mxu0 0
    %3080 = vmatprep.subr.bf16.mxu0 0
    %3081 = vmatpush1.bf16.msra.mxu0 0
    %3082 = vmatprep.subr.bf16.mxu0 0
    %3083 = vmatpush1.bf16.msra.mxu0 0
    %3084 = vmatprep.subr.bf16.mxu0 0
    %3085 = vmatpush1.bf16.msra.mxu0 0
    %3086 = vmatprep.subr.bf16.mxu0 0
    %3087 = vmatpush1.bf16.msra.mxu0 0
    %3088 = vmatprep.subr.bf16.mxu0 0
    %3089 = vmatpush1.bf16.msra.mxu0 0
    %3090 = vmatprep.subr.bf16.mxu0 0
    %3091 = vmatpush1.bf16.msra.mxu0 0
    %3092 = vmatprep.mubr.bf16.mxu0 0
    %3093 = vmatmul.mubr.bf16.gmra.mrb[0].mxu0 %v3037
    %v3094 = vpop.f32.mrb[0].mxu0
    %v3095 = vadd.f32 %v3058, %v3094
    %v3096 = vpop.f32.mrb[0].mxu0
    %v3097 = vadd.f32 %v3058, %v3096
    %v3098 = vpop.f32.mrb[0].mxu0
    %v3099 = vpop.f32.mrb[0].mxu0
    %3100 = vdwg.mxu0
    %v3103 = vcombine.low %v3095, %v3097
    %3105 = vst [vmem:[#allocation2] sm:$0xff] %v3103
    // Predicated region
    $region38: #{tpu_custom_call.1} parent=1 // pred_check
      _
    $region39: #{tpu_custom_call.1} parent=1 // pred_check_branch
      %3107 = sbr.rel (0) target = $region41
    $region40: #{tpu_custom_call.1} parent=1 // pred_region
      %s3109 = ssub.s32 128, 128
      %3110 = vsyncadd [#allocation3], %s3109
      %s3112 = sshll.u32 [#allocation2], 4
      %s3113 = int_to_ptr.vmem [resolvable:$true] %s3112
      %3115 = dma.vmem_to_hbm [thread:$0]  %s3113, 128, %s9, [#allocation3]
    $region41: #{tpu_custom_call.1} parent=1 // pred_fallthru
      _
    // Predicated region
    $region42: #{tpu_custom_call.1} parent=1 // pred_check
      _
    $region43: #{tpu_custom_call.1} parent=1 // pred_check_branch
      %3117 = sbr.rel (0) target = $region45
    $region44: #{tpu_custom_call.1} parent=1 // pred_region
      %3118 = dma.done [#allocation3], 128
    $region45: #{tpu_custom_call.1} parent=1 // pred_fallthru
      _
    %3119 = vsyncpa [#allocation3], 1

// kernel: tpu_custom_call.1
$region0: #{tpu_custom_call.1}
  #allocation0 [shape = 'u32[]', space=smem, size = 0x4, offset = 0x4, fixed_abs, tag = 'smem constant byte address 0x4 - core index']
  #allocation1 [shape = 'u32[144,128]{1,0:T(1,128)}', space=vmem, size = 0x12000, scoped, tag = 'internal scratch']
  %s0 = inlined_call_operand.vmem [shape: f32[8,256], index: 0, kind: input, shape index: {}]
  %s1 = inlined_call_operand.vmem [shape: bf16[128,8], index: 1, kind: input, shape index: {}]
  %s2 = inlined_call_operand.vmem [shape: f32[128,1], index: 2, kind: input, shape index: {}]
  %s3 = inlined_call_operand.vmem [shape: bf16[4,128,128], index: 3, kind: input, shape index: {}]
  %s4 = inlined_call_operand.vmem [shape: f32[4,128,1], index: 4, kind: input, shape index: {}]
  %s5 = inlined_call_operand.vmem [shape: bf16[4,128,128], index: 5, kind: input, shape index: {}]
  %s6 = inlined_call_operand.vmem [shape: f32[4,128,1], index: 6, kind: input, shape index: {}]
  %s7 = inlined_call_operand.vmem [shape: bf16[4,128], index: 7, kind: input, shape index: {}]
  %s8 = inlined_call_operand.vmem [shape: f32[4,1], index: 8, kind: input, shape index: {}]
  %s9 = inlined_call_operand.hbm [shape: f32[4,256], index: 9, kind: output, shape index: {}]
  %s10 = sld [smem:[#allocation0]]
  $region46: #{tpu_custom_call.1} parent=0
    _
  %s12 = ssub.s32 1, %s10
  %s13 = scalar_select 0, %s12, %s10
  $region1: #{tpu_custom_call.1} parent=0
    #allocation2 [shape = 'u8[4096]{0}', space=vmem, size = 0x1000, scoped, tag = 'output window, operand 0, single buffered']
    #allocation3 [shape = 's32[1]{0}', space=sflag, size = 0x4, scoped, tag = 'scoped memory for tpu_custom_call.1']
    %14 = vsyncpa [#allocation3], 0
    // Predicated region
    $region2: #{tpu_custom_call.1} parent=1 // pred_check
      _
    $region3: #{tpu_custom_call.1} parent=1 // pred_check_branch
      %16 = sbr.rel (0) target = $region5
    $region4: #{tpu_custom_call.1} parent=1 // pred_region
      _
    $region5: #{tpu_custom_call.1} parent=1 // pred_fallthru
      _
    // Predicated region
    $region6: #{tpu_custom_call.1} parent=1 // pred_check
      _
    $region7: #{tpu_custom_call.1} parent=1 // pred_check_branch
      %18 = sbr.rel (0) target = $region9
    $region8: #{tpu_custom_call.1} parent=1 // pred_region
      _
    $region9: #{tpu_custom_call.1} parent=1 // pred_fallthru
      _
    // Predicated region
    $region10: #{tpu_custom_call.1} parent=1 // pred_check
      _
    $region11: #{tpu_custom_call.1} parent=1 // pred_check_branch
      %20 = sbr.rel (0) target = $region13
    $region12: #{tpu_custom_call.1} parent=1 // pred_region
      _
    $region13: #{tpu_custom_call.1} parent=1 // pred_fallthru
      _
    // Predicated region
    $region14: #{tpu_custom_call.1} parent=1 // pred_check
      _
    $region15: #{tpu_custom_call.1} parent=1 // pred_check_branch
      %22 = sbr.rel (0) target = $region17
    $region16: #{tpu_custom_call.1} parent=1 // pred_region
      _
    $region17: #{tpu_custom_call.1} parent=1 // pred_fallthru
      _
    // Predicated region
    $region18: #{tpu_custom_call.1} parent=1 // pred_check
      _
    $region19: #{tpu_custom_call.1} parent=1 // pred_check_branch
      %24 = sbr.rel (0) target = $region21
    $region20: #{tpu_custom_call.1} parent=1 // pred_region
      _
    $region21: #{tpu_custom_call.1} parent=1 // pred_fallthru
      _
    // Predicated region
    $region22: #{tpu_custom_call.1} parent=1 // pred_check
      _
    $region23: #{tpu_custom_call.1} parent=1 // pred_check_branch
      %26 = sbr.rel (0) target = $region25
    $region24: #{tpu_custom_call.1} parent=1 // pred_region
      _
    $region25: #{tpu_custom_call.1} parent=1 // pred_fallthru
      _
    // Predicated region
    $region26: #{tpu_custom_call.1} parent=1 // pred_check
      _
    $region27: #{tpu_custom_call.1} parent=1 // pred_check_branch
      %28 = sbr.rel (0) target = $region29
    $region28: #{tpu_custom_call.1} parent=1 // pred_region
      _
    $region29: #{tpu_custom_call.1} parent=1 // pred_fallthru
      _
    // Predicated region
    $region30: #{tpu_custom_call.1} parent=1 // pred_check
      _
    $region31: #{tpu_custom_call.1} parent=1 // pred_check_branch
      %30 = sbr.rel (0) target = $region33
    $region32: #{tpu_custom_call.1} parent=1 // pred_region
      _
    $region33: #{tpu_custom_call.1} parent=1 // pred_fallthru
      _
    // Predicated region
    $region34: #{tpu_custom_call.1} parent=1 // pred_check
      _
    $region35: #{tpu_custom_call.1} parent=1 // pred_check_branch
      %32 = sbr.rel (0) target = $region37
    $region36: #{tpu_custom_call.1} parent=1 // pred_region
      _
    $region37: #{tpu_custom_call.1} parent=1 // pred_fallthru
      _
    %v34 = vld [vmem:[%s0] sm:$0xff]
    %v35 = vld [vmem:[%s0 + $0x8] sm:$0xff]
    %v36 = vpack.c.bf16 %v34, %v34
    %v37 = vpack.c.bf16 %v35, %v35
    %v38 = vld [vmem:[%s1] sm:$0xf]
    %v39 = vld [vmem:[%s1 + $0x4] sm:$0xf]
    %v40 = vld [vmem:[%s1 + $0x8] sm:$0xf]
    %v41 = vld [vmem:[%s1 + $0xc] sm:$0xf]
    %v42 = vld [vmem:[%s1 + $0x10] sm:$0xf]
    %v43 = vld [vmem:[%s1 + $0x14] sm:$0xf]
    %v44 = vld [vmem:[%s1 + $0x18] sm:$0xf]
    %v45 = vld [vmem:[%s1 + $0x1c] sm:$0xf]
    %v46 = vld [vmem:[%s1 + $0x20] sm:$0xf]
    %v47 = vld [vmem:[%s1 + $0x24] sm:$0xf]
    %v48 = vld [vmem:[%s1 + $0x28] sm:$0xf]
    %v49 = vld [vmem:[%s1 + $0x2c] sm:$0xf]
    %v50 = vld [vmem:[%s1 + $0x30] sm:$0xf]
    %v51 = vld [vmem:[%s1 + $0x34] sm:$0xf]
    %v52 = vld [vmem:[%s1 + $0x38] sm:$0xf]
    %v53 = vld [vmem:[%s1 + $0x3c] sm:$0xf]
    %v54 = vld [vmem:[%s2] sm:$0xff]
    %v55 = vld [vmem:[%s2 + $0x8] sm:$0xff]
    %v56 = vld [vmem:[%s2 + $0x10] sm:$0xff]
    %v57 = vld [vmem:[%s2 + $0x18] sm:$0xff]
    %v58 = vld [vmem:[%s2 + $0x20] sm:$0xff]
    %v59 = vld [vmem:[%s2 + $0x28] sm:$0xff]
    %v60 = vld [vmem:[%s2 + $0x30] sm:$0xff]
    %v61 = vld [vmem:[%s2 + $0x38] sm:$0xff]
    %v62 = vld [vmem:[%s2 + $0x40] sm:$0xff]
    %v63 = vld [vmem:[%s2 + $0x48] sm:$0xff]
    %v64 = vld [vmem:[%s2 + $0x50] sm:$0xff]
    %v65 = vld [vmem:[%s2 + $0x58] sm:$0xff]
    %v66 = vld [vmem:[%s2 + $0x60] sm:$0xff]
    %v67 = vld [vmem:[%s2 + $0x68] sm:$0xff]
    %v68 = vld [vmem:[%s2 + $0x70] sm:$0xff]
    %v69 = vld [vmem:[%s2 + $0x78] sm:$0xff]
    %71 = vset.pattern.permute.xlu0 0
    %72 = vperm.xlu0 %71, %v54
    %v73 = vpop.permute.xlu0 %72
    %76 = vset.pattern.permute.xlu0 0
    %77 = vperm.xlu0 %76, %v55
    %v78 = vpop.permute.xlu0 %77
    %81 = vset.pattern.permute.xlu0 0
    %82 = vperm.xlu0 %81, %v56
    %v83 = vpop.permute.xlu0 %82
    %86 = vset.pattern.permute.xlu0 0
    %87 = vperm.xlu0 %86, %v57
    %v88 = vpop.permute.xlu0 %87
    %91 = vset.pattern.permute.xlu0 0
    %92 = vperm.xlu0 %91, %v58
    %v93 = vpop.permute.xlu0 %92
    %96 = vset.pattern.permute.xlu0 0
    %97 = vperm.xlu0 %96, %v59
    %v98 = vpop.permute.xlu0 %97
    %101 = vset.pattern.permute.xlu0 0
    %102 = vperm.xlu0 %101, %v60
    %v103 = vpop.permute.xlu0 %102
    %106 = vset.pattern.permute.xlu0 0
    %107 = vperm.xlu0 %106, %v61
    %v108 = vpop.permute.xlu0 %107
    %111 = vset.pattern.permute.xlu0 0
    %112 = vperm.xlu0 %111, %v62
    %v113 = vpop.permute.xlu0 %112
    %116 = vset.pattern.permute.xlu0 0
    %117 = vperm.xlu0 %116, %v63
    %v118 = vpop.permute.xlu0 %117
    %121 = vset.pattern.permute.xlu0 0
    %122 = vperm.xlu0 %121, %v64
    %v123 = vpop.permute.xlu0 %122
    %126 = vset.pattern.permute.xlu0 0
    %127 = vperm.xlu0 %126, %v65
    %v128 = vpop.permute.xlu0 %127
    %131 = vset.pattern.permute.xlu0 0
    %132 = vperm.xlu0 %131, %v66
    %v133 = vpop.permute.xlu0 %132
    %136 = vset.pattern.permute.xlu0 0
    %137 = vperm.xlu0 %136, %v67
    %v138 = vpop.permute.xlu0 %137
    %141 = vset.pattern.permute.xlu0 0
    %142 = vperm.xlu0 %141, %v68
    %v143 = vpop.permute.xlu0 %142
    %146 = vset.pattern.permute.xlu0 0
    %147 = vperm.xlu0 %146, %v69
    %v148 = vpop.permute.xlu0 %147
    %v166 = vunpack.c.l.b16 %v38
    %v167 = vunpack.c.l.b16 %v39
    %v168 = vunpack.c.l.b16 %v40
    %v169 = vunpack.c.l.b16 %v41
    %v170 = vunpack.c.l.b16 %v42
    %v171 = vunpack.c.l.b16 %v43
    %v172 = vunpack.c.l.b16 %v44
    %v173 = vunpack.c.l.b16 %v45
    %v174 = vunpack.c.l.b16 %v46
    %v175 = vunpack.c.l.b16 %v47
    %v176 = vunpack.c.l.b16 %v48
    %v177 = vunpack.c.l.b16 %v49
    %v178 = vunpack.c.l.b16 %v50
    %v179 = vunpack.c.l.b16 %v51
    %v180 = vunpack.c.l.b16 %v52
    %v181 = vunpack.c.l.b16 %v53
    %v182 = vpack.c.b16 %v167, %v166
    %v183 = vpack.c.b16 %v169, %v168
    %v184 = vpack.c.b16 %v171, %v170
    %v185 = vpack.c.b16 %v173, %v172
    %v186 = vpack.c.b16 %v175, %v174
    %v187 = vpack.c.b16 %v177, %v176
    %v188 = vpack.c.b16 %v179, %v178
    %v189 = vpack.c.b16 %v181, %v180
    %vm190 = vcmask 64512
    %v192 = vsel %vm190, %v182, 0
    %v195 = vsel %vm190, %v183, 0
    %v198 = vsel %vm190, %v184, 0
    %v201 = vsel %vm190, %v185, 0
    %v204 = vsel %vm190, %v186, 0
    %v207 = vsel %vm190, %v187, 0
    %v210 = vsel %vm190, %v188, 0
    %v213 = vsel %vm190, %v189, 0
    %vm215 = vcmask 1043456
    %v217 = vsel %vm215, %v36, 0
    %v220 = vsel %vm215, %v37, 0
    %222 = vmatprep.subr.bf16.mxu0 %v220
    %223 = vmatpush1.bf16.msra.mxu0 %v217
    %224 = vmatprep.subr.bf16.mxu0 0
    %225 = vmatpush1.bf16.msra.mxu0 0
    %226 = vmatprep.subr.bf16.mxu0 0
    %227 = vmatpush1.bf16.msra.mxu0 0
    %228 = vmatprep.subr.bf16.mxu0 0
    %229 = vmatpush1.bf16.msra.mxu0 0
    %230 = vmatprep.subr.bf16.mxu0 0
    %231 = vmatpush1.bf16.msra.mxu0 0
    %232 = vmatprep.subr.bf16.mxu0 0
    %233 = vmatpush1.bf16.msra.mxu0 0
    %234 = vmatprep.subr.bf16.mxu0 0
    %235 = vmatpush1.bf16.msra.mxu0 0
    %236 = vmatprep.subr.bf16.mxu0 0
    %237 = vmatpush1.bf16.msra.mxu0 0
    %238 = vmatprep.subr.bf16.mxu0 0
    %239 = vmatpush1.bf16.msra.mxu0 0
    %240 = vmatprep.subr.bf16.mxu0 0
    %241 = vmatpush1.bf16.msra.mxu0 0
    %242 = vmatprep.subr.bf16.mxu0 0
    %243 = vmatpush1.bf16.msra.mxu0 0
    %244 = vmatprep.subr.bf16.mxu0 0
    %245 = vmatpush1.bf16.msra.mxu0 0
    %246 = vmatprep.subr.bf16.mxu0 0
    %247 = vmatpush1.bf16.msra.mxu0 0
    %248 = vmatprep.subr.bf16.mxu0 0
    %249 = vmatpush1.bf16.msra.mxu0 0
    %250 = vmatprep.subr.bf16.mxu0 0
    %251 = vmatpush1.bf16.msra.mxu0 0
    %252 = vmatprep.subr.bf16.mxu0 0
    %253 = vmatpush1.bf16.msra.mxu0 0
    %254 = vmatprep.mubr.bf16.mxu0 0
    %255 = vmatmul.mubr.bf16.gmra.mrb[0].mxu0 %v192
    %v256 = vpop.f32.mrb[0].mxu0
    %v257 = vadd.f32 %v73, %v256
    %v258 = vpop.f32.mrb[0].mxu0
    %v259 = vadd.f32 %v73, %v258
    %v260 = vpop.f32.mrb[0].mxu0
    %v261 = vadd.f32 %v78, %v260
    %v262 = vpop.f32.mrb[0].mxu0
    %v263 = vadd.f32 %v78, %v262
    %264 = vmatprep.mubr.bf16.mxu0 0
    %265 = vmatmul.mubr.bf16.gmra.mrb[0].mxu0 %v195
    %v266 = vpop.f32.mrb[0].mxu0
    %v267 = vadd.f32 %v83, %v266
    %v268 = vpop.f32.mrb[0].mxu0
    %v269 = vadd.f32 %v83, %v268
    %v270 = vpop.f32.mrb[0].mxu0
    %v271 = vadd.f32 %v88, %v270
    %v272 = vpop.f32.mrb[0].mxu0
    %v273 = vadd.f32 %v88, %v272
    %274 = vmatprep.mubr.bf16.mxu0 0
    %275 = vmatmul.mubr.bf16.gmra.mrb[0].mxu0 %v198
    %v276 = vpop.f32.mrb[0].mxu0
    %v277 = vadd.f32 %v93, %v276
    %v278 = vpop.f32.mrb[0].mxu0
    %v279 = vadd.f32 %v93, %v278
    %v280 = vpop.f32.mrb[0].mxu0
    %v281 = vadd.f32 %v98, %v280
    %v282 = vpop.f32.mrb[0].mxu0
    %v283 = vadd.f32 %v98, %v282
    %284 = vmatprep.mubr.bf16.mxu0 0
    %285 = vmatmul.mubr.bf16.gmra.mrb[0].mxu0 %v201
    %v286 = vpop.f32.mrb[0].mxu0
    %v287 = vadd.f32 %v103, %v286
    %v288 = vpop.f32.mrb[0].mxu0
    %v289 = vadd.f32 %v103, %v288
    %v290 = vpop.f32.mrb[0].mxu0
    %v291 = vadd.f32 %v108, %v290
    %v292 = vpop.f32.mrb[0].mxu0
    %v293 = vadd.f32 %v108, %v292
    %294 = vmatprep.mubr.bf16.mxu0 0
    %295 = vmatmul.mubr.bf16.gmra.mrb[0].mxu0 %v204
    %v296 = vpop.f32.mrb[0].mxu0
    %v297 = vadd.f32 %v113, %v296
    %v298 = vpop.f32.mrb[0].mxu0
    %v299 = vadd.f32 %v113, %v298
    %v300 = vpop.f32.mrb[0].mxu0
    %v301 = vadd.f32 %v118, %v300
    %v302 = vpop.f32.mrb[0].mxu0
    %v303 = vadd.f32 %v118, %v302
    %304 = vmatprep.mubr.bf16.mxu0 0
    %305 = vmatmul.mubr.bf16.gmra.mrb[0].mxu0 %v207
    %v306 = vpop.f32.mrb[0].mxu0
    %v307 = vadd.f32 %v123, %v306
    %v308 = vpop.f32.mrb[0].mxu0
    %v309 = vadd.f32 %v123, %v308
    %v310 = vpop.f32.mrb[0].mxu0
    %v311 = vadd.f32 %v128, %v310
    %v312 = vpop.f32.mrb[0].mxu0
    %v313 = vadd.f32 %v128, %v312
    %314 = vmatprep.mubr.bf16.mxu0 0
    %315 = vmatmul.mubr.bf16.gmra.mrb[0].mxu0 %v210
    %v316 = vpop.f32.mrb[0].mxu0
    %v317 = vadd.f32 %v133, %v316
    %v318 = vpop.f32.mrb[0].mxu0
    %v319 = vadd.f32 %v133, %v318
    %v320 = vpop.f32.mrb[0].mxu0
    %v321 = vadd.f32 %v138, %v320
    %v322 = vpop.f32.mrb[0].mxu0
    %v323 = vadd.f32 %v138, %v322
    %324 = vmatprep.mubr.bf16.mxu0 0
    %325 = vmatmul.mubr.bf16.gmra.mrb[0].mxu0 %v213
    %v326 = vpop.f32.mrb[0].mxu0
    %v327 = vadd.f32 %v143, %v326
    %v328 = vpop.f32.mrb[0].mxu0
    %v329 = vadd.f32 %v143, %v328
    %v330 = vpop.f32.mrb[0].mxu0
    %v331 = vadd.f32 %v148, %v330
    %v332 = vpop.f32.mrb[0].mxu0
    %v333 = vadd.f32 %v148, %v332
    %334 = vdwg.mxu0
    %v335 = vld [vmem:[%s4] sm:$0xff]
    %v336 = vld [vmem:[%s4 + $0x8] sm:$0xff]
    %v337 = vld [vmem:[%s4 + $0x10] sm:$0xff]
    %v338 = vld [vmem:[%s4 + $0x18] sm:$0xff]
    %v339 = vld [vmem:[%s4 + $0x20] sm:$0xff]
    %v340 = vld [vmem:[%s4 + $0x28] sm:$0xff]
    %v341 = vld [vmem:[%s4 + $0x30] sm:$0xff]
    %v342 = vld [vmem:[%s4 + $0x38] sm:$0xff]
    %v343 = vld [vmem:[%s4 + $0x40] sm:$0xff]
    %v344 = vld [vmem:[%s4 + $0x48] sm:$0xff]
    %v345 = vld [vmem:[%s4 + $0x50] sm:$0xff]
    %v346 = vld [vmem:[%s4 + $0x58] sm:$0xff]
    %v347 = vld [vmem:[%s4 + $0x60] sm:$0xff]
    %v348 = vld [vmem:[%s4 + $0x68] sm:$0xff]
    %v349 = vld [vmem:[%s4 + $0x70] sm:$0xff]
    %v350 = vld [vmem:[%s4 + $0x78] sm:$0xff]
    %v351 = vld [vmem:[%s4 + $0x80] sm:$0xff]
    %v352 = vld [vmem:[%s4 + $0x88] sm:$0xff]
    %v353 = vld [vmem:[%s4 + $0x90] sm:$0xff]
    %v354 = vld [vmem:[%s4 + $0x98] sm:$0xff]
    %v355 = vld [vmem:[%s4 + $0xa0] sm:$0xff]
    %v356 = vld [vmem:[%s4 + $0xa8] sm:$0xff]
    %v357 = vld [vmem:[%s4 + $0xb0] sm:$0xff]
    %v358 = vld [vmem:[%s4 + $0xb8] sm:$0xff]
    %v359 = vld [vmem:[%s4 + $0xc0] sm:$0xff]
    %v360 = vld [vmem:[%s4 + $0xc8] sm:$0xff]
    %v361 = vld [vmem:[%s4 + $0xd0] sm:$0xff]
    %v362 = vld [vmem:[%s4 + $0xd8] sm:$0xff]
    %v363 = vld [vmem:[%s4 + $0xe0] sm:$0xff]
    %v364 = vld [vmem:[%s4 + $0xe8] sm:$0xff]
    %v365 = vld [vmem:[%s4 + $0xf0] sm:$0xff]
    %v366 = vld [vmem:[%s4 + $0xf8] sm:$0xff]
    %v367 = vld [vmem:[%s4 + $0x100] sm:$0xff]
    %v368 = vld [vmem:[%s4 + $0x108] sm:$0xff]
    %v369 = vld [vmem:[%s4 + $0x110] sm:$0xff]
    %v370 = vld [vmem:[%s4 + $0x118] sm:$0xff]
    %v371 = vld [vmem:[%s4 + $0x120] sm:$0xff]
    %v372 = vld [vmem:[%s4 + $0x128] sm:$0xff]
    %v373 = vld [vmem:[%s4 + $0x130] sm:$0xff]
    %v374 = vld [vmem:[%s4 + $0x138] sm:$0xff]
    %v375 = vld [vmem:[%s4 + $0x140] sm:$0xff]
    %v376 = vld [vmem:[%s4 + $0x148] sm:$0xff]
    %v377 = vld [vmem:[%s4 + $0x150] sm:$0xff]
    %v378 = vld [vmem:[%s4 + $0x158] sm:$0xff]
    %v379 = vld [vmem:[%s4 + $0x160] sm:$0xff]
    %v380 = vld [vmem:[%s4 + $0x168] sm:$0xff]
    %v381 = vld [vmem:[%s4 + $0x170] sm:$0xff]
    %v382 = vld [vmem:[%s4 + $0x178] sm:$0xff]
    %v383 = vld [vmem:[%s4 + $0x180] sm:$0xff]
    %v384 = vld [vmem:[%s4 + $0x188] sm:$0xff]
    %v385 = vld [vmem:[%s4 + $0x190] sm:$0xff]
    %v386 = vld [vmem:[%s4 + $0x198] sm:$0xff]
    %v387 = vld [vmem:[%s4 + $0x1a0] sm:$0xff]
    %v388 = vld [vmem:[%s4 + $0x1a8] sm:$0xff]
    %v389 = vld [vmem:[%s4 + $0x1b0] sm:$0xff]
    %v390 = vld [vmem:[%s4 + $0x1b8] sm:$0xff]
    %v391 = vld [vmem:[%s4 + $0x1c0] sm:$0xff]
    %v392 = vld [vmem:[%s4 + $0x1c8] sm:$0xff]
    %v393 = vld [vmem:[%s4 + $0x1d0] sm:$0xff]
    %v394 = vld [vmem:[%s4 + $0x1d8] sm:$0xff]
    %v395 = vld [vmem:[%s4 + $0x1e0] sm:$0xff]
    %v396 = vld [vmem:[%s4 + $0x1e8] sm:$0xff]
    %v397 = vld [vmem:[%s4 + $0x1f0] sm:$0xff]
    %v398 = vld [vmem:[%s4 + $0x1f8] sm:$0xff]
    %v399 = vld [vmem:[%s6] sm:$0xff]
    %v400 = vld [vmem:[%s6 + $0x8] sm:$0xff]
    %v401 = vld [vmem:[%s6 + $0x10] sm:$0xff]
    %v402 = vld [vmem:[%s6 + $0x18] sm:$0xff]
    %v403 = vld [vmem:[%s6 + $0x20] sm:$0xff]
    %v404 = vld [vmem:[%s6 + $0x28] sm:$0xff]
    %v405 = vld [vmem:[%s6 + $0x30] sm:$0xff]
    %v406 = vld [vmem:[%s6 + $0x38] sm:$0xff]
    %v407 = vld [vmem:[%s6 + $0x40] sm:$0xff]
    %v408 = vld [vmem:[%s6 + $0x48] sm:$0xff]
    %v409 = vld [vmem:[%s6 + $0x50] sm:$0xff]
    %v410 = vld [vmem:[%s6 + $0x58] sm:$0xff]
    %v411 = vld [vmem:[%s6 + $0x60] sm:$0xff]
    %v412 = vld [vmem:[%s6 + $0x68] sm:$0xff]
    %v413 = vld [vmem:[%s6 + $0x70] sm:$0xff]
    %v414 = vld [vmem:[%s6 + $0x78] sm:$0xff]
    %v415 = vld [vmem:[%s6 + $0x80] sm:$0xff]
    %v416 = vld [vmem:[%s6 + $0x88] sm:$0xff]
    %v417 = vld [vmem:[%s6 + $0x90] sm:$0xff]
    %v418 = vld [vmem:[%s6 + $0x98] sm:$0xff]
    %v419 = vld [vmem:[%s6 + $0xa0] sm:$0xff]
    %v420 = vld [vmem:[%s6 + $0xa8] sm:$0xff]
    %v421 = vld [vmem:[%s6 + $0xb0] sm:$0xff]
    %v422 = vld [vmem:[%s6 + $0xb8] sm:$0xff]
    %v423 = vld [vmem:[%s6 + $0xc0] sm:$0xff]
    %v424 = vld [vmem:[%s6 + $0xc8] sm:$0xff]
    %v425 = vld [vmem:[%s6 + $0xd0] sm:$0xff]
    %v426 = vld [vmem:[%s6 + $0xd8] sm:$0xff]
    %v427 = vld [vmem:[%s6 + $0xe0] sm:$0xff]
    %v428 = vld [vmem:[%s6 + $0xe8] sm:$0xff]
    %v429 = vld [vmem:[%s6 + $0xf0] sm:$0xff]
    %v430 = vld [vmem:[%s6 + $0xf8] sm:$0xff]
    %v431 = vld [vmem:[%s6 + $0x100] sm:$0xff]
    %v432 = vld [vmem:[%s6 + $0x108] sm:$0xff]
    %v433 = vld [vmem:[%s6 + $0x110] sm:$0xff]
    %v434 = vld [vmem:[%s6 + $0x118] sm:$0xff]
    %v435 = vld [vmem:[%s6 + $0x120] sm:$0xff]
    %v436 = vld [vmem:[%s6 + $0x128] sm:$0xff]
    %v437 = vld [vmem:[%s6 + $0x130] sm:$0xff]
    %v438 = vld [vmem:[%s6 + $0x138] sm:$0xff]
    %v439 = vld [vmem:[%s6 + $0x140] sm:$0xff]
    %v440 = vld [vmem:[%s6 + $0x148] sm:$0xff]
    %v441 = vld [vmem:[%s6 + $0x150] sm:$0xff]
    %v442 = vld [vmem:[%s6 + $0x158] sm:$0xff]
    %v443 = vld [vmem:[%s6 + $0x160] sm:$0xff]
    %v444 = vld [vmem:[%s6 + $0x168] sm:$0xff]
    %v445 = vld [vmem:[%s6 + $0x170] sm:$0xff]
    %v446 = vld [vmem:[%s6 + $0x178] sm:$0xff]
    %v447 = vld [vmem:[%s6 + $0x180] sm:$0xff]
    %v448 = vld [vmem:[%s6 + $0x188] sm:$0xff]
    %v449 = vld [vmem:[%s6 + $0x190] sm:$0xff]
    %v450 = vld [vmem:[%s6 + $0x198] sm:$0xff]
    %v451 = vld [vmem:[%s6 + $0x1a0] sm:$0xff]
    %v452 = vld [vmem:[%s6 + $0x1a8] sm:$0xff]
    %v453 = vld [vmem:[%s6 + $0x1b0] sm:$0xff]
    %v454 = vld [vmem:[%s6 + $0x1b8] sm:$0xff]
    %v455 = vld [vmem:[%s6 + $0x1c0] sm:$0xff]
    %v456 = vld [vmem:[%s6 + $0x1c8] sm:$0xff]
    %v457 = vld [vmem:[%s6 + $0x1d0] sm:$0xff]
    %v458 = vld [vmem:[%s6 + $0x1d8] sm:$0xff]
    %v459 = vld [vmem:[%s6 + $0x1e0] sm:$0xff]
    %v460 = vld [vmem:[%s6 + $0x1e8] sm:$0xff]
    %v461 = vld [vmem:[%s6 + $0x1f0] sm:$0xff]
    %v462 = vld [vmem:[%s6 + $0x1f8] sm:$0xff]
    %v463 = vld [vmem:[%s3] sm:$0xf]
    %v464 = vld [vmem:[%s3 + $0x4] sm:$0xf]
    %v465 = vld [vmem:[%s3 + $0x8] sm:$0xf]
    %v466 = vld [vmem:[%s3 + $0xc] sm:$0xf]
    %v467 = vld [vmem:[%s3 + $0x10] sm:$0xf]
    %v468 = vld [vmem:[%s3 + $0x14] sm:$0xf]
    %v469 = vld [vmem:[%s3 + $0x18] sm:$0xf]
    %v470 = vld [vmem:[%s3 + $0x1c] sm:$0xf]
    %v471 = vld [vmem:[%s3 + $0x20] sm:$0xf]
    %v472 = vld [vmem:[%s3 + $0x24] sm:$0xf]
    %v473 = vld [vmem:[%s3 + $0x28] sm:$0xf]
    %v474 = vld [vmem:[%s3 + $0x2c] sm:$0xf]
    %v475 = vld [vmem:[%s3 + $0x30] sm:$0xf]
    %v476 = vld [vmem:[%s3 + $0x34] sm:$0xf]
    %v477 = vld [vmem:[%s3 + $0x38] sm:$0xf]
    %v478 = vld [vmem:[%s3 + $0x3c] sm:$0xf]
    %v479 = vpack.c.bf16 %v261, %v257
    %v480 = vpack.c.bf16 %v263, %v259
    %v481 = vpack.c.bf16 %v271, %v267
    %v482 = vpack.c.bf16 %v273, %v269
    %v483 = vpack.c.bf16 %v281, %v277
    %v484 = vpack.c.bf16 %v283, %v279
    %v485 = vpack.c.bf16 %v291, %v287
    %v486 = vpack.c.bf16 %v293, %v289
    %v487 = vpack.c.bf16 %v301, %v297
    %v488 = vpack.c.bf16 %v303, %v299
    %v489 = vpack.c.bf16 %v311, %v307
    %v490 = vpack.c.bf16 %v313, %v309
    %v491 = vpack.c.bf16 %v321, %v317
    %v492 = vpack.c.bf16 %v323, %v319
    %v493 = vpack.c.bf16 %v331, %v327
    %v494 = vpack.c.bf16 %v333, %v329
    %496 = vset.pattern.permute.xlu0 0
    %497 = vperm.xlu0 %496, %v335
    %v498 = vpop.permute.xlu0 %497
    %501 = vset.pattern.permute.xlu0 0
    %502 = vperm.xlu0 %501, %v336
    %v503 = vpop.permute.xlu0 %502
    %506 = vset.pattern.permute.xlu0 0
    %507 = vperm.xlu0 %506, %v337
    %v508 = vpop.permute.xlu0 %507
    %511 = vset.pattern.permute.xlu0 0
    %512 = vperm.xlu0 %511, %v338
    %v513 = vpop.permute.xlu0 %512
    %516 = vset.pattern.permute.xlu0 0
    %517 = vperm.xlu0 %516, %v339
    %v518 = vpop.permute.xlu0 %517
    %521 = vset.pattern.permute.xlu0 0
    %522 = vperm.xlu0 %521, %v340
    %v523 = vpop.permute.xlu0 %522
    %526 = vset.pattern.permute.xlu0 0
    %527 = vperm.xlu0 %526, %v341
    %v528 = vpop.permute.xlu0 %527
    %531 = vset.pattern.permute.xlu0 0
    %532 = vperm.xlu0 %531, %v342
    %v533 = vpop.permute.xlu0 %532
    %536 = vset.pattern.permute.xlu0 0
    %537 = vperm.xlu0 %536, %v343
    %v538 = vpop.permute.xlu0 %537
    %541 = vset.pattern.permute.xlu0 0
    %542 = vperm.xlu0 %541, %v344
    %v543 = vpop.permute.xlu0 %542
    %546 = vset.pattern.permute.xlu0 0
    %547 = vperm.xlu0 %546, %v345
    %v548 = vpop.permute.xlu0 %547
    %551 = vset.pattern.permute.xlu0 0
    %552 = vperm.xlu0 %551, %v346
    %v553 = vpop.permute.xlu0 %552
    %556 = vset.pattern.permute.xlu0 0
    %557 = vperm.xlu0 %556, %v347
    %v558 = vpop.permute.xlu0 %557
    %561 = vset.pattern.permute.xlu0 0
    %562 = vperm.xlu0 %561, %v348
    %v563 = vpop.permute.xlu0 %562
    %566 = vset.pattern.permute.xlu0 0
    %567 = vperm.xlu0 %566, %v349
    %v568 = vpop.permute.xlu0 %567
    %571 = vset.pattern.permute.xlu0 0
    %572 = vperm.xlu0 %571, %v350
    %v573 = vpop.permute.xlu0 %572
    %v591 = vunpack.c.l.b16 %v463
    %v592 = vunpack.c.l.b16 %v464
    %v593 = vunpack.c.l.b16 %v465
    %v594 = vunpack.c.l.b16 %v466
    %v595 = vunpack.c.l.b16 %v467
    %v596 = vunpack.c.l.b16 %v468
    %v597 = vunpack.c.l.b16 %v469
    %v598 = vunpack.c.l.b16 %v470
    %v599 = vunpack.c.l.b16 %v471
    %v600 = vunpack.c.l.b16 %v472
    %v601 = vunpack.c.l.b16 %v473
    %v602 = vunpack.c.l.b16 %v474
    %v603 = vunpack.c.l.b16 %v475
    %v604 = vunpack.c.l.b16 %v476
    %v605 = vunpack.c.l.b16 %v477
    %v606 = vunpack.c.l.b16 %v478
    %v607 = vpack.c.b16 %v592, %v591
    %v608 = vpack.c.b16 %v594, %v593
    %v609 = vpack.c.b16 %v596, %v595
    %v610 = vpack.c.b16 %v598, %v597
    %v611 = vpack.c.b16 %v600, %v599
    %v612 = vpack.c.b16 %v602, %v601
    %v613 = vpack.c.b16 %v604, %v603
    %v614 = vpack.c.b16 %v606, %v605
    %623 = vmatprep.subr.bf16.mxu0 %v480
    %624 = vmatpush1.bf16.msra.mxu0 %v479
    %625 = vmatprep.subr.bf16.mxu0 %v482
    %626 = vmatpush1.bf16.msra.mxu0 %v481
    %627 = vmatprep.subr.bf16.mxu0 %v484
    %628 = vmatpush1.bf16.msra.mxu0 %v483
    %629 = vmatprep.subr.bf16.mxu0 %v486
    %630 = vmatpush1.bf16.msra.mxu0 %v485
    %631 = vmatprep.subr.bf16.mxu0 %v488
    %632 = vmatpush1.bf16.msra.mxu0 %v487
    %633 = vmatprep.subr.bf16.mxu0 %v490
    %634 = vmatpush1.bf16.msra.mxu0 %v489
    %635 = vmatprep.subr.bf16.mxu0 %v492
    %636 = vmatpush1.bf16.msra.mxu0 %v491
    %637 = vmatprep.subr.bf16.mxu0 %v494
    %638 = vmatpush1.bf16.msra.mxu0 %v493
    %639 = vmatprep.subr.bf16.mxu0 0
    %640 = vmatpush1.bf16.msra.mxu0 0
    %641 = vmatprep.subr.bf16.mxu0 0
    %642 = vmatpush1.bf16.msra.mxu0 0
    %643 = vmatprep.subr.bf16.mxu0 0
    %644 = vmatpush1.bf16.msra.mxu0 0
    %645 = vmatprep.subr.bf16.mxu0 0
    %646 = vmatpush1.bf16.msra.mxu0 0
    %647 = vmatprep.subr.bf16.mxu0 0
    %648 = vmatpush1.bf16.msra.mxu0 0
    %649 = vmatprep.subr.bf16.mxu0 0
    %650 = vmatpush1.bf16.msra.mxu0 0
    %651 = vmatprep.subr.bf16.mxu0 0
    %652 = vmatpush1.bf16.msra.mxu0 0
    %653 = vmatprep.subr.bf16.mxu0 0
    %654 = vmatpush1.bf16.msra.mxu0 0
    %655 = vmatprep.mubr.bf16.mxu0 0
    %656 = vmatmul.mubr.bf16.gmra.mrb[0].mxu0 %v607
    %v657 = vpop.f32.mrb[0].mxu0
    %v658 = vadd.f32 %v498, %v657
    %v659 = vpop.f32.mrb[0].mxu0
    %v660 = vadd.f32 %v498, %v659
    %v661 = vpop.f32.mrb[0].mxu0
    %v662 = vadd.f32 %v503, %v661
    %v663 = vpop.f32.mrb[0].mxu0
    %v664 = vadd.f32 %v503, %v663
    %665 = vmatprep.mubr.bf16.mxu0 0
    %666 = vmatmul.mubr.bf16.gmra.mrb[0].mxu0 %v608
    %v667 = vpop.f32.mrb[0].mxu0
    %v668 = vadd.f32 %v508, %v667
    %v669 = vpop.f32.mrb[0].mxu0
    %v670 = vadd.f32 %v508, %v669
    %v671 = vpop.f32.mrb[0].mxu0
    %v672 = vadd.f32 %v513, %v671
    %v673 = vpop.f32.mrb[0].mxu0
    %v674 = vadd.f32 %v513, %v673
    %675 = vmatprep.mubr.bf16.mxu0 0
    %676 = vmatmul.mubr.bf16.gmra.mrb[0].mxu0 %v609
    %v677 = vpop.f32.mrb[0].mxu0
    %v678 = vadd.f32 %v518, %v677
    %v679 = vpop.f32.mrb[0].mxu0
    %v680 = vadd.f32 %v518, %v679
    %v681 = vpop.f32.mrb[0].mxu0
    %v682 = vadd.f32 %v523, %v681
    %v683 = vpop.f32.mrb[0].mxu0
    %v684 = vadd.f32 %v523, %v683
    %685 = vmatprep.mubr.bf16.mxu0 0
    %686 = vmatmul.mubr.bf16.gmra.mrb[0].mxu0 %v610
    %v687 = vpop.f32.mrb[0].mxu0
    %v688 = vadd.f32 %v528, %v687
    %v689 = vpop.f32.mrb[0].mxu0
    %v690 = vadd.f32 %v528, %v689
    %v691 = vpop.f32.mrb[0].mxu0
    %v692 = vadd.f32 %v533, %v691
    %v693 = vpop.f32.mrb[0].mxu0
    %v694 = vadd.f32 %v533, %v693
    %695 = vmatprep.mubr.bf16.mxu0 0
    %696 = vmatmul.mubr.bf16.gmra.mrb[0].mxu0 %v611
    %v697 = vpop.f32.mrb[0].mxu0
    %v698 = vadd.f32 %v538, %v697
    %v699 = vpop.f32.mrb[0].mxu0
    %v700 = vadd.f32 %v538, %v699
    %v701 = vpop.f32.mrb[0].mxu0
    %v702 = vadd.f32 %v543, %v701
    %v703 = vpop.f32.mrb[0].mxu0
    %v704 = vadd.f32 %v543, %v703
    %705 = vmatprep.mubr.bf16.mxu0 0
    %706 = vmatmul.mubr.bf16.gmra.mrb[0].mxu0 %v612
    %v707 = vpop.f32.mrb[0].mxu0
    %v708 = vadd.f32 %v548, %v707
    %v709 = vpop.f32.mrb[0].mxu0
    %v710 = vadd.f32 %v548, %v709
    %v711 = vpop.f32.mrb[0].mxu0
    %v712 = vadd.f32 %v553, %v711
    %v713 = vpop.f32.mrb[0].mxu0
    %v714 = vadd.f32 %v553, %v713
    %715 = vmatprep.mubr.bf16.mxu0 0
    %716 = vmatmul.mubr.bf16.gmra.mrb[0].mxu0 %v613
    %v717 = vpop.f32.mrb[0].mxu0
    %v718 = vadd.f32 %v558, %v717
    %v719 = vpop.f32.mrb[0].mxu0
    %v720 = vadd.f32 %v558, %v719
    %v721 = vpop.f32.mrb[0].mxu0
    %v722 = vadd.f32 %v563, %v721
    %v723 = vpop.f32.mrb[0].mxu0
    %v724 = vadd.f32 %v563, %v723
    %725 = vmatprep.mubr.bf16.mxu0 0
    %726 = vmatmul.mubr.bf16.gmra.mrb[0].mxu0 %v614
    %v727 = vpop.f32.mrb[0].mxu0
    %v728 = vadd.f32 %v568, %v727
    %v729 = vpop.f32.mrb[0].mxu0
    %v730 = vadd.f32 %v568, %v729
    %v731 = vpop.f32.mrb[0].mxu0
    %v732 = vadd.f32 %v573, %v731
    %v733 = vpop.f32.mrb[0].mxu0
    %v734 = vadd.f32 %v573, %v733
    %735 = vdwg.mxu0
    %v736 = vtanh.pop %v658
    %v737 = vtanh.pop %v660
    %v738 = vtanh.pop %v662
    %v739 = vtanh.pop %v664
    %v740 = vtanh.pop %v668
    %v741 = vtanh.pop %v670
    %v742 = vtanh.pop %v672
    %v743 = vtanh.pop %v674
    %v744 = vtanh.pop %v678
    %v745 = vtanh.pop %v680
    %v746 = vtanh.pop %v682
    %v747 = vtanh.pop %v684
    %v748 = vtanh.pop %v688
    %v749 = vtanh.pop %v690
    %v750 = vtanh.pop %v692
    %v751 = vtanh.pop %v694
    %v752 = vtanh.pop %v698
    %v753 = vtanh.pop %v700
    %v754 = vtanh.pop %v702
    %v755 = vtanh.pop %v704
    %v756 = vtanh.pop %v708
    %v757 = vtanh.pop %v710
    %v758 = vtanh.pop %v712
    %v759 = vtanh.pop %v714
    %v760 = vtanh.pop %v718
    %v761 = vtanh.pop %v720
    %v762 = vtanh.pop %v722
    %v763 = vtanh.pop %v724
    %v764 = vtanh.pop %v728
    %v765 = vtanh.pop %v730
    %v766 = vtanh.pop %v732
    %v767 = vtanh.pop %v734
    %v768 = vpack.c.bf16 %v738, %v736
    %v769 = vpack.c.bf16 %v739, %v737
    %v770 = vpack.c.bf16 %v742, %v740
    %v771 = vpack.c.bf16 %v743, %v741
    %v772 = vpack.c.bf16 %v746, %v744
    %v773 = vpack.c.bf16 %v747, %v745
    %v774 = vpack.c.bf16 %v750, %v748
    %v775 = vpack.c.bf16 %v751, %v749
    %v776 = vpack.c.bf16 %v754, %v752
    %v777 = vpack.c.bf16 %v755, %v753
    %v778 = vpack.c.bf16 %v758, %v756
    %v779 = vpack.c.bf16 %v759, %v757
    %v780 = vpack.c.bf16 %v762, %v760
    %v781 = vpack.c.bf16 %v763, %v761
    %v782 = vpack.c.bf16 %v766, %v764
    %v783 = vpack.c.bf16 %v767, %v765
    %v784 = vld [vmem:[%s5] sm:$0xf]
    %v785 = vld [vmem:[%s5 + $0x4] sm:$0xf]
    %v786 = vld [vmem:[%s5 + $0x8] sm:$0xf]
    %v787 = vld [vmem:[%s5 + $0xc] sm:$0xf]
    %v788 = vld [vmem:[%s5 + $0x10] sm:$0xf]
    %v789 = vld [vmem:[%s5 + $0x14] sm:$0xf]
    %v790 = vld [vmem:[%s5 + $0x18] sm:$0xf]
    %v791 = vld [vmem:[%s5 + $0x1c] sm:$0xf]
    %v792 = vld [vmem:[%s5 + $0x20] sm:$0xf]
    %v793 = vld [vmem:[%s5 + $0x24] sm:$0xf]
    %v794 = vld [vmem:[%s5 + $0x28] sm:$0xf]
    %v795 = vld [vmem:[%s5 + $0x2c] sm:$0xf]
    %v796 = vld [vmem:[%s5 + $0x30] sm:$0xf]
    %v797 = vld [vmem:[%s5 + $0x34] sm:$0xf]
    %v798 = vld [vmem:[%s5 + $0x38] sm:$0xf]
    %v799 = vld [vmem:[%s5 + $0x3c] sm:$0xf]
    %801 = vset.pattern.permute.xlu0 0
    %802 = vperm.xlu0 %801, %v399
    %v803 = vpop.permute.xlu0 %802
    %806 = vset.pattern.permute.xlu0 0
    %807 = vperm.xlu0 %806, %v400
    %v808 = vpop.permute.xlu0 %807
    %811 = vset.pattern.permute.xlu0 0
    %812 = vperm.xlu0 %811, %v401
    %v813 = vpop.permute.xlu0 %812
    %816 = vset.pattern.permute.xlu0 0
    %817 = vperm.xlu0 %816, %v402
    %v818 = vpop.permute.xlu0 %817
    %821 = vset.pattern.permute.xlu0 0
    %822 = vperm.xlu0 %821, %v403
    %v823 = vpop.permute.xlu0 %822
    %826 = vset.pattern.permute.xlu0 0
    %827 = vperm.xlu0 %826, %v404
    %v828 = vpop.permute.xlu0 %827
    %831 = vset.pattern.permute.xlu0 0
    %832 = vperm.xlu0 %831, %v405
    %v833 = vpop.permute.xlu0 %832
    %836 = vset.pattern.permute.xlu0 0
    %837 = vperm.xlu0 %836, %v406
    %v838 = vpop.permute.xlu0 %837
    %841 = vset.pattern.permute.xlu0 0
    %842 = vperm.xlu0 %841, %v407
    %v843 = vpop.permute.xlu0 %842
    %846 = vset.pattern.permute.xlu0 0
    %847 = vperm.xlu0 %846, %v408
    %v848 = vpop.permute.xlu0 %847
    %851 = vset.pattern.permute.xlu0 0
    %852 = vperm.xlu0 %851, %v409
    %v853 = vpop.permute.xlu0 %852
    %856 = vset.pattern.permute.xlu0 0
    %857 = vperm.xlu0 %856, %v410
    %v858 = vpop.permute.xlu0 %857
    %861 = vset.pattern.permute.xlu0 0
    %862 = vperm.xlu0 %861, %v411
    %v863 = vpop.permute.xlu0 %862
    %866 = vset.pattern.permute.xlu0 0
    %867 = vperm.xlu0 %866, %v412
    %v868 = vpop.permute.xlu0 %867
    %871 = vset.pattern.permute.xlu0 0
    %872 = vperm.xlu0 %871, %v413
    %v873 = vpop.permute.xlu0 %872
    %876 = vset.pattern.permute.xlu0 0
    %877 = vperm.xlu0 %876, %v414
    %v878 = vpop.permute.xlu0 %877
    %v896 = vunpack.c.l.b16 %v784
    %v897 = vunpack.c.l.b16 %v785
    %v898 = vunpack.c.l.b16 %v786
    %v899 = vunpack.c.l.b16 %v787
    %v900 = vunpack.c.l.b16 %v788
    %v901 = vunpack.c.l.b16 %v789
    %v902 = vunpack.c.l.b16 %v790
    %v903 = vunpack.c.l.b16 %v791
    %v904 = vunpack.c.l.b16 %v792
    %v905 = vunpack.c.l.b16 %v793
    %v906 = vunpack.c.l.b16 %v794
    %v907 = vunpack.c.l.b16 %v795
    %v908 = vunpack.c.l.b16 %v796
    %v909 = vunpack.c.l.b16 %v797
    %v910 = vunpack.c.l.b16 %v798
    %v911 = vunpack.c.l.b16 %v799
    %v912 = vpack.c.b16 %v897, %v896
    %v913 = vpack.c.b16 %v899, %v898
    %v914 = vpack.c.b16 %v901, %v900
    %v915 = vpack.c.b16 %v903, %v902
    %v916 = vpack.c.b16 %v905, %v904
    %v917 = vpack.c.b16 %v907, %v906
    %v918 = vpack.c.b16 %v909, %v908
    %v919 = vpack.c.b16 %v911, %v910
    %928 = vmatprep.subr.bf16.mxu0 %v769
    %929 = vmatpush1.bf16.msra.mxu0 %v768
    %930 = vmatprep.subr.bf16.mxu0 %v771
    %931 = vmatpush1.bf16.msra.mxu0 %v770
    %932 = vmatprep.subr.bf16.mxu0 %v773
    %933 = vmatpush1.bf16.msra.mxu0 %v772
    %934 = vmatprep.subr.bf16.mxu0 %v775
    %935 = vmatpush1.bf16.msra.mxu0 %v774
    %936 = vmatprep.subr.bf16.mxu0 %v777
    %937 = vmatpush1.bf16.msra.mxu0 %v776
    %938 = vmatprep.subr.bf16.mxu0 %v779
    %939 = vmatpush1.bf16.msra.mxu0 %v778
    %940 = vmatprep.subr.bf16.mxu0 %v781
    %941 = vmatpush1.bf16.msra.mxu0 %v780
    %942 = vmatprep.subr.bf16.mxu0 %v783
    %943 = vmatpush1.bf16.msra.mxu0 %v782
    %944 = vmatprep.subr.bf16.mxu0 0
    %945 = vmatpush1.bf16.msra.mxu0 0
    %946 = vmatprep.subr.bf16.mxu0 0
    %947 = vmatpush1.bf16.msra.mxu0 0
    %948 = vmatprep.subr.bf16.mxu0 0
    %949 = vmatpush1.bf16.msra.mxu0 0
    %950 = vmatprep.subr.bf16.mxu0 0
    %951 = vmatpush1.bf16.msra.mxu0 0
    %952 = vmatprep.subr.bf16.mxu0 0
    %953 = vmatpush1.bf16.msra.mxu0 0
    %954 = vmatprep.subr.bf16.mxu0 0
    %955 = vmatpush1.bf16.msra.mxu0 0
    %956 = vmatprep.subr.bf16.mxu0 0
    %957 = vmatpush1.bf16.msra.mxu0 0
    %958 = vmatprep.subr.bf16.mxu0 0
    %959 = vmatpush1.bf16.msra.mxu0 0
    %960 = vmatprep.mubr.bf16.mxu0 0
    %961 = vmatmul.mubr.bf16.gmra.mrb[0].mxu0 %v912
    %v962 = vpop.f32.mrb[0].mxu0
    %v963 = vadd.f32 %v803, %v962
    %v964 = vpop.f32.mrb[0].mxu0
    %v965 = vadd.f32 %v803, %v964
    %v966 = vpop.f32.mrb[0].mxu0
    %v967 = vadd.f32 %v808, %v966
    %v968 = vpop.f32.mrb[0].mxu0
    %v969 = vadd.f32 %v808, %v968
    %970 = vmatprep.mubr.bf16.mxu0 0
    %971 = vmatmul.mubr.bf16.gmra.mrb[0].mxu0 %v913
    %v972 = vpop.f32.mrb[0].mxu0
    %v973 = vadd.f32 %v813, %v972
    %v974 = vpop.f32.mrb[0].mxu0
    %v975 = vadd.f32 %v813, %v974
    %v976 = vpop.f32.mrb[0].mxu0
    %v977 = vadd.f32 %v818, %v976
    %v978 = vpop.f32.mrb[0].mxu0
    %v979 = vadd.f32 %v818, %v978
    %980 = vmatprep.mubr.bf16.mxu0 0
    %981 = vmatmul.mubr.bf16.gmra.mrb[0].mxu0 %v914
    %v982 = vpop.f32.mrb[0].mxu0
    %v983 = vadd.f32 %v823, %v982
    %v984 = vpop.f32.mrb[0].mxu0
    %v985 = vadd.f32 %v823, %v984
    %v986 = vpop.f32.mrb[0].mxu0
    %v987 = vadd.f32 %v828, %v986
    %v988 = vpop.f32.mrb[0].mxu0
    %v989 = vadd.f32 %v828, %v988
    %990 = vmatprep.mubr.bf16.mxu0 0
    %991 = vmatmul.mubr.bf16.gmra.mrb[0].mxu0 %v915
    %v992 = vpop.f32.mrb[0].mxu0
    %v993 = vadd.f32 %v833, %v992
    %v994 = vpop.f32.mrb[0].mxu0
    %v995 = vadd.f32 %v833, %v994
    %v996 = vpop.f32.mrb[0].mxu0
    %v997 = vadd.f32 %v838, %v996
    %v998 = vpop.f32.mrb[0].mxu0
    %v999 = vadd.f32 %v838, %v998
    %1000 = vmatprep.mubr.bf16.mxu0 0
    %1001 = vmatmul.mubr.bf16.gmra.mrb[0].mxu0 %v916
    %v1002 = vpop.f32.mrb[0].mxu0
    %v1003 = vadd.f32 %v843, %v1002
    %v1004 = vpop.f32.mrb[0].mxu0
    %v1005 = vadd.f32 %v843, %v1004
    %v1006 = vpop.f32.mrb[0].mxu0
    %v1007 = vadd.f32 %v848, %v1006
    %v1008 = vpop.f32.mrb[0].mxu0
    %v1009 = vadd.f32 %v848, %v1008
    %1010 = vmatprep.mubr.bf16.mxu0 0
    %1011 = vmatmul.mubr.bf16.gmra.mrb[0].mxu0 %v917
    %v1012 = vpop.f32.mrb[0].mxu0
    %v1013 = vadd.f32 %v853, %v1012
    %v1014 = vpop.f32.mrb[0].mxu0
    %v1015 = vadd.f32 %v853, %v1014
    %v1016 = vpop.f32.mrb[0].mxu0
    %v1017 = vadd.f32 %v858, %v1016
    %v1018 = vpop.f32.mrb[0].mxu0
    %v1019 = vadd.f32 %v858, %v1018
    %1020 = vmatprep.mubr.bf16.mxu0 0
    %1021 = vmatmul.mubr.bf16.gmra.mrb[0].mxu0 %v918
    %v1022 = vpop.f32.mrb[0].mxu0
    %v1023 = vadd.f32 %v863, %v1022
    %v1024 = vpop.f32.mrb[0].mxu0
    %v1025 = vadd.f32 %v863, %v1024
    %v1026 = vpop.f32.mrb[0].mxu0
    %v1027 = vadd.f32 %v868, %v1026
    %v1028 = vpop.f32.mrb[0].mxu0
    %v1029 = vadd.f32 %v868, %v1028
    %1030 = vmatprep.mubr.bf16.mxu0 0
    %1031 = vmatmul.mubr.bf16.gmra.mrb[0].mxu0 %v919
    %v1032 = vpop.f32.mrb[0].mxu0
    %v1033 = vadd.f32 %v873, %v1032
    %v1034 = vpop.f32.mrb[0].mxu0
    %v1035 = vadd.f32 %v873, %v1034
    %v1036 = vpop.f32.mrb[0].mxu0
    %v1037 = vadd.f32 %v878, %v1036
    %v1038 = vpop.f32.mrb[0].mxu0
    %v1039 = vadd.f32 %v878, %v1038
    %1040 = vdwg.mxu0
    %v1041 = vtanh.pop %v963
    %v1042 = vtanh.pop %v965
    %v1043 = vtanh.pop %v967
    %v1044 = vtanh.pop %v969
    %v1045 = vtanh.pop %v973
    %v1046 = vtanh.pop %v975
    %v1047 = vtanh.pop %v977
    %v1048 = vtanh.pop %v979
    %v1049 = vtanh.pop %v983
    %v1050 = vtanh.pop %v985
    %v1051 = vtanh.pop %v987
    %v1052 = vtanh.pop %v989
    %v1053 = vtanh.pop %v993
    %v1054 = vtanh.pop %v995
    %v1055 = vtanh.pop %v997
    %v1056 = vtanh.pop %v999
    %v1057 = vtanh.pop %v1003
    %v1058 = vtanh.pop %v1005
    %v1059 = vtanh.pop %v1007
    %v1060 = vtanh.pop %v1009
    %v1061 = vtanh.pop %v1013
    %v1062 = vtanh.pop %v1015
    %v1063 = vtanh.pop %v1017
    %v1064 = vtanh.pop %v1019
    %v1065 = vtanh.pop %v1023
    %v1066 = vtanh.pop %v1025
    %v1067 = vtanh.pop %v1027
    %v1068 = vtanh.pop %v1029
    %v1069 = vtanh.pop %v1033
    %v1070 = vtanh.pop %v1035
    %v1071 = vtanh.pop %v1037
    %v1072 = vtanh.pop %v1039
    %v1073 = vadd.f32 %v1041, %v257
    %v1074 = vadd.f32 %v1042, %v259
    %v1075 = vadd.f32 %v1043, %v261
    %v1076 = vadd.f32 %v1044, %v263
    %v1077 = vadd.f32 %v1045, %v267
    %v1078 = vadd.f32 %v1046, %v269
    %v1079 = vadd.f32 %v1047, %v271
    %v1080 = vadd.f32 %v1048, %v273
    %v1081 = vadd.f32 %v1049, %v277
    %v1082 = vadd.f32 %v1050, %v279
    %v1083 = vadd.f32 %v1051, %v281
    %v1084 = vadd.f32 %v1052, %v283
    %v1085 = vadd.f32 %v1053, %v287
    %v1086 = vadd.f32 %v1054, %v289
    %v1087 = vadd.f32 %v1055, %v291
    %v1088 = vadd.f32 %v1056, %v293
    %v1089 = vadd.f32 %v1057, %v297
    %v1090 = vadd.f32 %v1058, %v299
    %v1091 = vadd.f32 %v1059, %v301
    %v1092 = vadd.f32 %v1060, %v303
    %v1093 = vadd.f32 %v1061, %v307
    %v1094 = vadd.f32 %v1062, %v309
    %v1095 = vadd.f32 %v1063, %v311
    %v1096 = vadd.f32 %v1064, %v313
    %v1097 = vadd.f32 %v1065, %v317
    %v1098 = vadd.f32 %v1066, %v319
    %v1099 = vadd.f32 %v1067, %v321
    %v1100 = vadd.f32 %v1068, %v323
    %v1101 = vadd.f32 %v1069, %v327
    %v1102 = vadd.f32 %v1070, %v329
    %v1103 = vadd.f32 %v1071, %v331
    %v1104 = vadd.f32 %v1072, %v333
    %s1105 = scalar_lea.vmem %s3, 64
    %v1106 = vld [vmem:[%s1105] sm:$0xf]
    %v1107 = vld [vmem:[%s1105 + $0x4] sm:$0xf]
    %v1108 = vld [vmem:[%s1105 + $0x8] sm:$0xf]
    %v1109 = vld [vmem:[%s1105 + $0xc] sm:$0xf]
    %v1110 = vld [vmem:[%s1105 + $0x10] sm:$0xf]
    %v1111 = vld [vmem:[%s1105 + $0x14] sm:$0xf]
    %v1112 = vld [vmem:[%s1105 + $0x18] sm:$0xf]
    %v1113 = vld [vmem:[%s1105 + $0x1c] sm:$0xf]
    %v1114 = vld [vmem:[%s1105 + $0x20] sm:$0xf]
    %v1115 = vld [vmem:[%s1105 + $0x24] sm:$0xf]
    %v1116 = vld [vmem:[%s1105 + $0x28] sm:$0xf]
    %v1117 = vld [vmem:[%s1105 + $0x2c] sm:$0xf]
    %v1118 = vld [vmem:[%s1105 + $0x30] sm:$0xf]
    %v1119 = vld [vmem:[%s1105 + $0x34] sm:$0xf]
    %v1120 = vld [vmem:[%s1105 + $0x38] sm:$0xf]
    %v1121 = vld [vmem:[%s1105 + $0x3c] sm:$0xf]
    %v1122 = vpack.c.bf16 %v1075, %v1073
    %v1123 = vpack.c.bf16 %v1076, %v1074
    %v1124 = vpack.c.bf16 %v1079, %v1077
    %v1125 = vpack.c.bf16 %v1080, %v1078
    %v1126 = vpack.c.bf16 %v1083, %v1081
    %v1127 = vpack.c.bf16 %v1084, %v1082
    %v1128 = vpack.c.bf16 %v1087, %v1085
    %v1129 = vpack.c.bf16 %v1088, %v1086
    %v1130 = vpack.c.bf16 %v1091, %v1089
    %v1131 = vpack.c.bf16 %v1092, %v1090
    %v1132 = vpack.c.bf16 %v1095, %v1093
    %v1133 = vpack.c.bf16 %v1096, %v1094
    %v1134 = vpack.c.bf16 %v1099, %v1097
    %v1135 = vpack.c.bf16 %v1100, %v1098
    %v1136 = vpack.c.bf16 %v1103, %v1101
    %v1137 = vpack.c.bf16 %v1104, %v1102
    %1139 = vset.pattern.permute.xlu0 0
    %1140 = vperm.xlu0 %1139, %v351
    %v1141 = vpop.permute.xlu0 %1140
    %1144 = vset.pattern.permute.xlu0 0
    %1145 = vperm.xlu0 %1144, %v352
    %v1146 = vpop.permute.xlu0 %1145
    %1149 = vset.pattern.permute.xlu0 0
    %1150 = vperm.xlu0 %1149, %v353
    %v1151 = vpop.permute.xlu0 %1150
    %1154 = vset.pattern.permute.xlu0 0
    %1155 = vperm.xlu0 %1154, %v354
    %v1156 = vpop.permute.xlu0 %1155
    %1159 = vset.pattern.permute.xlu0 0
    %1160 = vperm.xlu0 %1159, %v355
    %v1161 = vpop.permute.xlu0 %1160
    %1164 = vset.pattern.permute.xlu0 0
    %1165 = vperm.xlu0 %1164, %v356
    %v1166 = vpop.permute.xlu0 %1165
    %1169 = vset.pattern.permute.xlu0 0
    %1170 = vperm.xlu0 %1169, %v357
    %v1171 = vpop.permute.xlu0 %1170
    %1174 = vset.pattern.permute.xlu0 0
    %1175 = vperm.xlu0 %1174, %v358
    %v1176 = vpop.permute.xlu0 %1175
    %1179 = vset.pattern.permute.xlu0 0
    %1180 = vperm.xlu0 %1179, %v359
    %v1181 = vpop.permute.xlu0 %1180
    %1184 = vset.pattern.permute.xlu0 0
    %1185 = vperm.xlu0 %1184, %v360
    %v1186 = vpop.permute.xlu0 %1185
    %1189 = vset.pattern.permute.xlu0 0
    %1190 = vperm.xlu0 %1189, %v361
    %v1191 = vpop.permute.xlu0 %1190
    %1194 = vset.pattern.permute.xlu0 0
    %1195 = vperm.xlu0 %1194, %v362
    %v1196 = vpop.permute.xlu0 %1195
    %1199 = vset.pattern.permute.xlu0 0
    %1200 = vperm.xlu0 %1199, %v363
    %v1201 = vpop.permute.xlu0 %1200
    %1204 = vset.pattern.permute.xlu0 0
    %1205 = vperm.xlu0 %1204, %v364
    %v1206 = vpop.permute.xlu0 %1205
    %1209 = vset.pattern.permute.xlu0 0
    %1210 = vperm.xlu0 %1209, %v365
    %v1211 = vpop.permute.xlu0 %1210
    %1214 = vset.pattern.permute.xlu0 0
    %1215 = vperm.xlu0 %1214, %v366
    %v1216 = vpop.permute.xlu0 %1215
    %v1234 = vunpack.c.l.b16 %v1106
    %v1235 = vunpack.c.l.b16 %v1107
    %v1236 = vunpack.c.l.b16 %v1108
    %v1237 = vunpack.c.l.b16 %v1109
    %v1238 = vunpack.c.l.b16 %v1110
    %v1239 = vunpack.c.l.b16 %v1111
    %v1240 = vunpack.c.l.b16 %v1112
    %v1241 = vunpack.c.l.b16 %v1113
    %v1242 = vunpack.c.l.b16 %v1114
    %v1243 = vunpack.c.l.b16 %v1115
    %v1244 = vunpack.c.l.b16 %v1116
    %v1245 = vunpack.c.l.b16 %v1117
    %v1246 = vunpack.c.l.b16 %v1118
    %v1247 = vunpack.c.l.b16 %v1119
    %v1248 = vunpack.c.l.b16 %v1120
    %v1249 = vunpack.c.l.b16 %v1121
    %v1250 = vpack.c.b16 %v1235, %v1234
    %v1251 = vpack.c.b16 %v1237, %v1236
    %v1252 = vpack.c.b16 %v1239, %v1238
    %v1253 = vpack.c.b16 %v1241, %v1240
    %v1254 = vpack.c.b16 %v1243, %v1242
    %v1255 = vpack.c.b16 %v1245, %v1244
    %v1256 = vpack.c.b16 %v1247, %v1246
    %v1257 = vpack.c.b16 %v1249, %v1248
    %1266 = vmatprep.subr.bf16.mxu0 %v1123
    %1267 = vmatpush1.bf16.msra.mxu0 %v1122
    %1268 = vmatprep.subr.bf16.mxu0 %v1125
    %1269 = vmatpush1.bf16.msra.mxu0 %v1124
    %1270 = vmatprep.subr.bf16.mxu0 %v1127
    %1271 = vmatpush1.bf16.msra.mxu0 %v1126
    %1272 = vmatprep.subr.bf16.mxu0 %v1129
    %1273 = vmatpush1.bf16.msra.mxu0 %v1128
    %1274 = vmatprep.subr.bf16.mxu0 %v1131
    %1275 = vmatpush1.bf16.msra.mxu0 %v1130
    %1276 = vmatprep.subr.bf16.mxu0 %v1133
    %1277 = vmatpush1.bf16.msra.mxu0 %v1132
    %1278 = vmatprep.subr.bf16.mxu0 %v1135
    %1279 = vmatpush1.bf16.msra.mxu0 %v1134
    %1280 = vmatprep.subr.bf16.mxu0 %v1137
    %1281 = vmatpush1.bf16.msra.mxu0 %v1136
    %1282 = vmatprep.subr.bf16.mxu0 0
    %1283 = vmatpush1.bf16.msra.mxu0 0
    %1284 = vmatprep.subr.bf16.mxu0 0
    %1285 = vmatpush1.bf16.msra.mxu0 0
    %1286 = vmatprep.subr.bf16.mxu0 0
    %1287 = vmatpush1.bf16.msra.mxu0 0
    %1288 = vmatprep.subr.bf16.mxu0 0
    %1289 = vmatpush1.bf16.msra.mxu0 0
    %1290 = vmatprep.subr.bf16.mxu0 0
    %1291 = vmatpush1.bf16.msra.mxu0 0
    %1292 = vmatprep.subr.bf16.mxu0 0
    %1293 = vmatpush1.bf16.msra.mxu0 0
    %1294 = vmatprep.subr.bf16.mxu0 0
    %1295 = vmatpush1.bf16.msra.mxu0 0
    %1296 = vmatprep.subr.bf16.mxu0 0
    %1297 = vmatpush1.bf16.msra.mxu0 0
    %1298 = vmatprep.mubr.bf16.mxu0 0
    %1299 = vmatmul.mubr.bf16.gmra.mrb[0].mxu0 %v1250
    %v1300 = vpop.f32.mrb[0].mxu0
    %v1301 = vadd.f32 %v1141, %v1300
    %v1302 = vpop.f32.mrb[0].mxu0
    %v1303 = vadd.f32 %v1141, %v1302
    %v1304 = vpop.f32.mrb[0].mxu0
    %v1305 = vadd.f32 %v1146, %v1304
    %v1306 = vpop.f32.mrb[0].mxu0
    %v1307 = vadd.f32 %v1146, %v1306
    %1308 = vmatprep.mubr.bf16.mxu0 0
    %1309 = vmatmul.mubr.bf16.gmra.mrb[0].mxu0 %v1251
    %v1310 = vpop.f32.mrb[0].mxu0
    %v1311 = vadd.f32 %v1151, %v1310
    %v1312 = vpop.f32.mrb[0].mxu0
    %v1313 = vadd.f32 %v1151, %v1312
    %v1314 = vpop.f32.mrb[0].mxu0
    %v1315 = vadd.f32 %v1156, %v1314
    %v1316 = vpop.f32.mrb[0].mxu0
    %v1317 = vadd.f32 %v1156, %v1316
    %1318 = vmatprep.mubr.bf16.mxu0 0
    %1319 = vmatmul.mubr.bf16.gmra.mrb[0].mxu0 %v1252
    %v1320 = vpop.f32.mrb[0].mxu0
    %v1321 = vadd.f32 %v1161, %v1320
    %v1322 = vpop.f32.mrb[0].mxu0
    %v1323 = vadd.f32 %v1161, %v1322
    %v1324 = vpop.f32.mrb[0].mxu0
    %v1325 = vadd.f32 %v1166, %v1324
    %v1326 = vpop.f32.mrb[0].mxu0
    %v1327 = vadd.f32 %v1166, %v1326
    %1328 = vmatprep.mubr.bf16.mxu0 0
    %1329 = vmatmul.mubr.bf16.gmra.mrb[0].mxu0 %v1253
    %v1330 = vpop.f32.mrb[0].mxu0
    %v1331 = vadd.f32 %v1171, %v1330
    %v1332 = vpop.f32.mrb[0].mxu0
    %v1333 = vadd.f32 %v1171, %v1332
    %v1334 = vpop.f32.mrb[0].mxu0
    %v1335 = vadd.f32 %v1176, %v1334
    %v1336 = vpop.f32.mrb[0].mxu0
    %v1337 = vadd.f32 %v1176, %v1336
    %1338 = vmatprep.mubr.bf16.mxu0 0
    %1339 = vmatmul.mubr.bf16.gmra.mrb[0].mxu0 %v1254
    %v1340 = vpop.f32.mrb[0].mxu0
    %v1341 = vadd.f32 %v1181, %v1340
    %v1342 = vpop.f32.mrb[0].mxu0
    %v1343 = vadd.f32 %v1181, %v1342
    %v1344 = vpop.f32.mrb[0].mxu0
    %v1345 = vadd.f32 %v1186, %v1344
    %v1346 = vpop.f32.mrb[0].mxu0
    %v1347 = vadd.f32 %v1186, %v1346
    %1348 = vmatprep.mubr.bf16.mxu0 0
    %1349 = vmatmul.mubr.bf16.gmra.mrb[0].mxu0 %v1255
    %v1350 = vpop.f32.mrb[0].mxu0
    %v1351 = vadd.f32 %v1191, %v1350
    %v1352 = vpop.f32.mrb[0].mxu0
    %v1353 = vadd.f32 %v1191, %v1352
    %v1354 = vpop.f32.mrb[0].mxu0
    %v1355 = vadd.f32 %v1196, %v1354
    %v1356 = vpop.f32.mrb[0].mxu0
    %v1357 = vadd.f32 %v1196, %v1356
    %1358 = vmatprep.mubr.bf16.mxu0 0
    %1359 = vmatmul.mubr.bf16.gmra.mrb[0].mxu0 %v1256
    %v1360 = vpop.f32.mrb[0].mxu0
    %v1361 = vadd.f32 %v1201, %v1360
    %v1362 = vpop.f32.mrb[0].mxu0
    %v1363 = vadd.f32 %v1201, %v1362
    %v1364 = vpop.f32.mrb[0].mxu0
    %v1365 = vadd.f32 %v1206, %v1364
    %v1366 = vpop.f32.mrb[0].mxu0
    %v1367 = vadd.f32 %v1206, %v1366
    %1368 = vmatprep.mubr.bf16.mxu0 0
    %1369 = vmatmul.mubr.bf16.gmra.mrb[0].mxu0 %v1257
    %v1370 = vpop.f32.mrb[0].mxu0
    %v1371 = vadd.f32 %v1211, %v1370
    %v1372 = vpop.f32.mrb[0].mxu0
    %v1373 = vadd.f32 %v1211, %v1372
    %v1374 = vpop.f32.mrb[0].mxu0
    %v1375 = vadd.f32 %v1216, %v1374
    %v1376 = vpop.f32.mrb[0].mxu0
    %v1377 = vadd.f32 %v1216, %v1376
    %1378 = vdwg.mxu0
    %v1379 = vtanh.pop %v1301
    %v1380 = vtanh.pop %v1303
    %v1381 = vtanh.pop %v1305
    %v1382 = vtanh.pop %v1307
    %v1383 = vtanh.pop %v1311
    %v1384 = vtanh.pop %v1313
    %v1385 = vtanh.pop %v1315
    %v1386 = vtanh.pop %v1317
    %v1387 = vtanh.pop %v1321
    %v1388 = vtanh.pop %v1323
    %v1389 = vtanh.pop %v1325
    %v1390 = vtanh.pop %v1327
    %v1391 = vtanh.pop %v1331
    %v1392 = vtanh.pop %v1333
    %v1393 = vtanh.pop %v1335
    %v1394 = vtanh.pop %v1337
    %v1395 = vtanh.pop %v1341
    %v1396 = vtanh.pop %v1343
    %v1397 = vtanh.pop %v1345
    %v1398 = vtanh.pop %v1347
    %v1399 = vtanh.pop %v1351
    %v1400 = vtanh.pop %v1353
    %v1401 = vtanh.pop %v1355
    %v1402 = vtanh.pop %v1357
    %v1403 = vtanh.pop %v1361
    %v1404 = vtanh.pop %v1363
    %v1405 = vtanh.pop %v1365
    %v1406 = vtanh.pop %v1367
    %v1407 = vtanh.pop %v1371
    %v1408 = vtanh.pop %v1373
    %v1409 = vtanh.pop %v1375
    %v1410 = vtanh.pop %v1377
    %v1411 = vpack.c.bf16 %v1381, %v1379
    %v1412 = vpack.c.bf16 %v1382, %v1380
    %v1413 = vpack.c.bf16 %v1385, %v1383
    %v1414 = vpack.c.bf16 %v1386, %v1384
    %v1415 = vpack.c.bf16 %v1389, %v1387
    %v1416 = vpack.c.bf16 %v1390, %v1388
    %v1417 = vpack.c.bf16 %v1393, %v1391
    %v1418 = vpack.c.bf16 %v1394, %v1392
    %v1419 = vpack.c.bf16 %v1397, %v1395
    %v1420 = vpack.c.bf16 %v1398, %v1396
    %v1421 = vpack.c.bf16 %v1401, %v1399
    %v1422 = vpack.c.bf16 %v1402, %v1400
    %v1423 = vpack.c.bf16 %v1405, %v1403
    %v1424 = vpack.c.bf16 %v1406, %v1404
    %v1425 = vpack.c.bf16 %v1409, %v1407
    %v1426 = vpack.c.bf16 %v1410, %v1408
    %s1427 = scalar_lea.vmem %s5, 64
    %v1428 = vld [vmem:[%s1427] sm:$0xf]
    %v1429 = vld [vmem:[%s1427 + $0x4] sm:$0xf]
    %v1430 = vld [vmem:[%s1427 + $0x8] sm:$0xf]
    %v1431 = vld [vmem:[%s1427 + $0xc] sm:$0xf]
    %v1432 = vld [vmem:[%s1427 + $0x10] sm:$0xf]
    %v1433 = vld [vmem:[%s1427 + $0x14] sm:$0xf]
    %v1434 = vld [vmem:[%s1427 + $0x18] sm:$0xf]
    %v1435 = vld [vmem:[%s1427 + $0x1c] sm:$0xf]
    %v1436 = vld [vmem:[%s1427 + $0x20] sm:$0xf]
    %v1437 = vld [vmem:[%s1427 + $0x24] sm:$0xf]
    %v1438 = vld [vmem:[%s1427 + $0x28] sm:$0xf]
    %v1439 = vld [vmem:[%s1427 + $0x2c] sm:$0xf]
    %v1440 = vld [vmem:[%s1427 + $0x30] sm:$0xf]
    %v1441 = vld [vmem:[%s1427 + $0x34] sm:$0xf]
    %v1442 = vld [vmem:[%s1427 + $0x38] sm:$0xf]
    %v1443 = vld [vmem:[%s1427 + $0x3c] sm:$0xf]
    %1445 = vset.pattern.permute.xlu0 0
    %1446 = vperm.xlu0 %1445, %v415
    %v1447 = vpop.permute.xlu0 %1446
    %1450 = vset.pattern.permute.xlu0 0
    %1451 = vperm.xlu0 %1450, %v416
    %v1452 = vpop.permute.xlu0 %1451
    %1455 = vset.pattern.permute.xlu0 0
    %1456 = vperm.xlu0 %1455, %v417
    %v1457 = vpop.permute.xlu0 %1456
    %1460 = vset.pattern.permute.xlu0 0
    %1461 = vperm.xlu0 %1460, %v418
    %v1462 = vpop.permute.xlu0 %1461
    %1465 = vset.pattern.permute.xlu0 0
    %1466 = vperm.xlu0 %1465, %v419
    %v1467 = vpop.permute.xlu0 %1466
    %1470 = vset.pattern.permute.xlu0 0
    %1471 = vperm.xlu0 %1470, %v420
    %v1472 = vpop.permute.xlu0 %1471
    %1475 = vset.pattern.permute.xlu0 0
    %1476 = vperm.xlu0 %1475, %v421
    %v1477 = vpop.permute.xlu0 %1476
    %1480 = vset.pattern.permute.xlu0 0
    %1481 = vperm.xlu0 %1480, %v422
    %v1482 = vpop.permute.xlu0 %1481
    %1485 = vset.pattern.permute.xlu0 0
    %1486 = vperm.xlu0 %1485, %v423
    %v1487 = vpop.permute.xlu0 %1486
    %1490 = vset.pattern.permute.xlu0 0
    %1491 = vperm.xlu0 %1490, %v424
    %v1492 = vpop.permute.xlu0 %1491
    %1495 = vset.pattern.permute.xlu0 0
    %1496 = vperm.xlu0 %1495, %v425
    %v1497 = vpop.permute.xlu0 %1496
    %1500 = vset.pattern.permute.xlu0 0
    %1501 = vperm.xlu0 %1500, %v426
    %v1502 = vpop.permute.xlu0 %1501
    %1505 = vset.pattern.permute.xlu0 0
    %1506 = vperm.xlu0 %1505, %v427
    %v1507 = vpop.permute.xlu0 %1506
    %1510 = vset.pattern.permute.xlu0 0
    %1511 = vperm.xlu0 %1510, %v428
    %v1512 = vpop.permute.xlu0 %1511
    %1515 = vset.pattern.permute.xlu0 0
    %1516 = vperm.xlu0 %1515, %v429
    %v1517 = vpop.permute.xlu0 %1516
    %1520 = vset.pattern.permute.xlu0 0
    %1521 = vperm.xlu0 %1520, %v430
    %v1522 = vpop.permute.xlu0 %1521
    %v1540 = vunpack.c.l.b16 %v1428
    %v1541 = vunpack.c.l.b16 %v1429
    %v1542 = vunpack.c.l.b16 %v1430
    %v1543 = vunpack.c.l.b16 %v1431
    %v1544 = vunpack.c.l.b16 %v1432
    %v1545 = vunpack.c.l.b16 %v1433
    %v1546 = vunpack.c.l.b16 %v1434
    %v1547 = vunpack.c.l.b16 %v1435
    %v1548 = vunpack.c.l.b16 %v1436
    %v1549 = vunpack.c.l.b16 %v1437
    %v1550 = vunpack.c.l.b16 %v1438
    %v1551 = vunpack.c.l.b16 %v1439
    %v1552 = vunpack.c.l.b16 %v1440
    %v1553 = vunpack.c.l.b16 %v1441
    %v1554 = vunpack.c.l.b16 %v1442
    %v1555 = vunpack.c.l.b16 %v1443
    %v1556 = vpack.c.b16 %v1541, %v1540
    %v1557 = vpack.c.b16 %v1543, %v1542
    %v1558 = vpack.c.b16 %v1545, %v1544
    %v1559 = vpack.c.b16 %v1547, %v1546
    %v1560 = vpack.c.b16 %v1549, %v1548
    %v1561 = vpack.c.b16 %v1551, %v1550
    %v1562 = vpack.c.b16 %v1553, %v1552
    %v1563 = vpack.c.b16 %v1555, %v1554
    %1572 = vmatprep.subr.bf16.mxu0 %v1412
    %1573 = vmatpush1.bf16.msra.mxu0 %v1411
    %1574 = vmatprep.subr.bf16.mxu0 %v1414
    %1575 = vmatpush1.bf16.msra.mxu0 %v1413
    %1576 = vmatprep.subr.bf16.mxu0 %v1416
    %1577 = vmatpush1.bf16.msra.mxu0 %v1415
    %1578 = vmatprep.subr.bf16.mxu0 %v1418
    %1579 = vmatpush1.bf16.msra.mxu0 %v1417
    %1580 = vmatprep.subr.bf16.mxu0 %v1420
    %1581 = vmatpush1.bf16.msra.mxu0 %v1419
    %1582 = vmatprep.subr.bf16.mxu0 %v1422
    %1583 = vmatpush1.bf16.msra.mxu0 %v1421
    %1584 = vmatprep.subr.bf16.mxu0 %v1424
    %1585 = vmatpush1.bf16.msra.mxu0 %v1423
    %1586 = vmatprep.subr.bf16.mxu0 %v1426
    %1587 = vmatpush1.bf16.msra.mxu0 %v1425
    %1588 = vmatprep.subr.bf16.mxu0 0
    %1589 = vmatpush1.bf16.msra.mxu0 0
    %1590 = vmatprep.subr.bf16.mxu0 0
    %1591 = vmatpush1.bf16.msra.mxu0 0
    %1592 = vmatprep.subr.bf16.mxu0 0
    %1593 = vmatpush1.bf16.msra.mxu0 0
    %1594 = vmatprep.subr.bf16.mxu0 0
    %1595 = vmatpush1.bf16.msra.mxu0 0
    %1596 = vmatprep.subr.bf16.mxu0 0
    %1597 = vmatpush1.bf16.msra.mxu0 0
    %1598 = vmatprep.subr.bf16.mxu0 0
    %1599 = vmatpush1.bf16.msra.mxu0 0
    %1600 = vmatprep.subr.bf16.mxu0 0
    %1601 = vmatpush1.bf16.msra.mxu0 0
    %1602 = vmatprep.subr.bf16.mxu0 0
    %1603 = vmatpush1.bf16.msra.mxu0 0
    %1604 = vmatprep.mubr.bf16.mxu0 0
    %1605 = vmatmul.mubr.bf16.gmra.mrb[0].mxu0 %v1556
    %v1606 = vpop.f32.mrb[0].mxu0
    %v1607 = vadd.f32 %v1447, %v1606
    %v1608 = vpop.f32.mrb[0].mxu0
    %v1609 = vadd.f32 %v1447, %v1608
    %v1610 = vpop.f32.mrb[0].mxu0
    %v1611 = vadd.f32 %v1452, %v1610
    %v1612 = vpop.f32.mrb[0].mxu0
    %v1613 = vadd.f32 %v1452, %v1612
    %1614 = vmatprep.mubr.bf16.mxu0 0
    %1615 = vmatmul.mubr.bf16.gmra.mrb[0].mxu0 %v1557
    %v1616 = vpop.f32.mrb[0].mxu0
    %v1617 = vadd.f32 %v1457, %v1616
    %v1618 = vpop.f32.mrb[0].mxu0
    %v1619 = vadd.f32 %v1457, %v1618
    %v1620 = vpop.f32.mrb[0].mxu0
    %v1621 = vadd.f32 %v1462, %v1620
    %v1622 = vpop.f32.mrb[0].mxu0
    %v1623 = vadd.f32 %v1462, %v1622
    %1624 = vmatprep.mubr.bf16.mxu0 0
    %1625 = vmatmul.mubr.bf16.gmra.mrb[0].mxu0 %v1558
    %v1626 = vpop.f32.mrb[0].mxu0
    %v1627 = vadd.f32 %v1467, %v1626
    %v1628 = vpop.f32.mrb[0].mxu0
    %v1629 = vadd.f32 %v1467, %v1628
    %v1630 = vpop.f32.mrb[0].mxu0
    %v1631 = vadd.f32 %v1472, %v1630
    %v1632 = vpop.f32.mrb[0].mxu0
    %v1633 = vadd.f32 %v1472, %v1632
    %1634 = vmatprep.mubr.bf16.mxu0 0
    %1635 = vmatmul.mubr.bf16.gmra.mrb[0].mxu0 %v1559
    %v1636 = vpop.f32.mrb[0].mxu0
    %v1637 = vadd.f32 %v1477, %v1636
    %v1638 = vpop.f32.mrb[0].mxu0
    %v1639 = vadd.f32 %v1477, %v1638
    %v1640 = vpop.f32.mrb[0].mxu0
    %v1641 = vadd.f32 %v1482, %v1640
    %v1642 = vpop.f32.mrb[0].mxu0
    %v1643 = vadd.f32 %v1482, %v1642
    %1644 = vmatprep.mubr.bf16.mxu0 0
    %1645 = vmatmul.mubr.bf16.gmra.mrb[0].mxu0 %v1560
    %v1646 = vpop.f32.mrb[0].mxu0
    %v1647 = vadd.f32 %v1487, %v1646
    %v1648 = vpop.f32.mrb[0].mxu0
    %v1649 = vadd.f32 %v1487, %v1648
    %v1650 = vpop.f32.mrb[0].mxu0
    %v1651 = vadd.f32 %v1492, %v1650
    %v1652 = vpop.f32.mrb[0].mxu0
    %v1653 = vadd.f32 %v1492, %v1652
    %1654 = vmatprep.mubr.bf16.mxu0 0
    %1655 = vmatmul.mubr.bf16.gmra.mrb[0].mxu0 %v1561
    %v1656 = vpop.f32.mrb[0].mxu0
    %v1657 = vadd.f32 %v1497, %v1656
    %v1658 = vpop.f32.mrb[0].mxu0
    %v1659 = vadd.f32 %v1497, %v1658
    %v1660 = vpop.f32.mrb[0].mxu0
    %v1661 = vadd.f32 %v1502, %v1660
    %v1662 = vpop.f32.mrb[0].mxu0
    %v1663 = vadd.f32 %v1502, %v1662
    %1664 = vmatprep.mubr.bf16.mxu0 0
    %1665 = vmatmul.mubr.bf16.gmra.mrb[0].mxu0 %v1562
    %v1666 = vpop.f32.mrb[0].mxu0
    %v1667 = vadd.f32 %v1507, %v1666
    %v1668 = vpop.f32.mrb[0].mxu0
    %v1669 = vadd.f32 %v1507, %v1668
    %v1670 = vpop.f32.mrb[0].mxu0
    %v1671 = vadd.f32 %v1512, %v1670
    %v1672 = vpop.f32.mrb[0].mxu0
    %v1673 = vadd.f32 %v1512, %v1672
    %1674 = vmatprep.mubr.bf16.mxu0 0
    %1675 = vmatmul.mubr.bf16.gmra.mrb[0].mxu0 %v1563
    %v1676 = vpop.f32.mrb[0].mxu0
    %v1677 = vadd.f32 %v1517, %v1676
    %v1678 = vpop.f32.mrb[0].mxu0
    %v1679 = vadd.f32 %v1517, %v1678
    %v1680 = vpop.f32.mrb[0].mxu0
    %v1681 = vadd.f32 %v1522, %v1680
    %v1682 = vpop.f32.mrb[0].mxu0
    %v1683 = vadd.f32 %v1522, %v1682
    %1684 = vdwg.mxu0
    %v1685 = vtanh.pop %v1607
    %v1686 = vtanh.pop %v1609
    %v1687 = vtanh.pop %v1611
    %v1688 = vtanh.pop %v1613
    %v1689 = vtanh.pop %v1617
    %v1690 = vtanh.pop %v1619
    %v1691 = vtanh.pop %v1621
    %v1692 = vtanh.pop %v1623
    %v1693 = vtanh.pop %v1627
    %v1694 = vtanh.pop %v1629
    %v1695 = vtanh.pop %v1631
    %v1696 = vtanh.pop %v1633
    %v1697 = vtanh.pop %v1637
    %v1698 = vtanh.pop %v1639
    %v1699 = vtanh.pop %v1641
    %v1700 = vtanh.pop %v1643
    %v1701 = vtanh.pop %v1647
    %v1702 = vtanh.pop %v1649
    %v1703 = vtanh.pop %v1651
    %v1704 = vtanh.pop %v1653
    %v1705 = vtanh.pop %v1657
    %v1706 = vtanh.pop %v1659
    %v1707 = vtanh.pop %v1661
    %v1708 = vtanh.pop %v1663
    %v1709 = vtanh.pop %v1667
    %v1710 = vtanh.pop %v1669
    %v1711 = vtanh.pop %v1671
    %v1712 = vtanh.pop %v1673
    %v1713 = vtanh.pop %v1677
    %v1714 = vtanh.pop %v1679
    %v1715 = vtanh.pop %v1681
    %v1716 = vtanh.pop %v1683
    %v1717 = vadd.f32 %v1685, %v1073
    %v1718 = vadd.f32 %v1686, %v1074
    %v1719 = vadd.f32 %v1687, %v1075
    %v1720 = vadd.f32 %v1688, %v1076
    %v1721 = vadd.f32 %v1689, %v1077
    %v1722 = vadd.f32 %v1690, %v1078
    %v1723 = vadd.f32 %v1691, %v1079
    %v1724 = vadd.f32 %v1692, %v1080
    %v1725 = vadd.f32 %v1693, %v1081
    %v1726 = vadd.f32 %v1694, %v1082
    %v1727 = vadd.f32 %v1695, %v1083
    %v1728 = vadd.f32 %v1696, %v1084
    %v1729 = vadd.f32 %v1697, %v1085
    %v1730 = vadd.f32 %v1698, %v1086
    %v1731 = vadd.f32 %v1699, %v1087
    %v1732 = vadd.f32 %v1700, %v1088
    %v1733 = vadd.f32 %v1701, %v1089
    %v1734 = vadd.f32 %v1702, %v1090
    %v1735 = vadd.f32 %v1703, %v1091
    %v1736 = vadd.f32 %v1704, %v1092
    %v1737 = vadd.f32 %v1705, %v1093
    %v1738 = vadd.f32 %v1706, %v1094
    %v1739 = vadd.f32 %v1707, %v1095
    %v1740 = vadd.f32 %v1708, %v1096
    %v1741 = vadd.f32 %v1709, %v1097
    %v1742 = vadd.f32 %v1710, %v1098
    %v1743 = vadd.f32 %v1711, %v1099
    %v1744 = vadd.f32 %v1712, %v1100
    %v1745 = vadd.f32 %v1713, %v1101
    %v1746 = vadd.f32 %v1714, %v1102
    %v1747 = vadd.f32 %v1715, %v1103
    %v1748 = vadd.f32 %v1716, %v1104
    %s1749 = scalar_lea.vmem %s3, 128
    %v1750 = vld [vmem:[%s1749] sm:$0xf]
    %v1751 = vld [vmem:[%s1749 + $0x4] sm:$0xf]
    %v1752 = vld [vmem:[%s1749 + $0x8] sm:$0xf]
    %v1753 = vld [vmem:[%s1749 + $0xc] sm:$0xf]
    %v1754 = vld [vmem:[%s1749 + $0x10] sm:$0xf]
    %v1755 = vld [vmem:[%s1749 + $0x14] sm:$0xf]
    %v1756 = vld [vmem:[%s1749 + $0x18] sm:$0xf]
    %v1757 = vld [vmem:[%s1749 + $0x1c] sm:$0xf]
    %v1758 = vld [vmem:[%s1749 + $0x20] sm:$0xf]
    %v1759 = vld [vmem:[%s1749 + $0x24] sm:$0xf]
    %v1760 = vld [vmem:[%s1749 + $0x28] sm:$0xf]
    %v1761 = vld [vmem:[%s1749 + $0x2c] sm:$0xf]
    %v1762 = vld [vmem:[%s1749 + $0x30] sm:$0xf]
    %v1763 = vld [vmem:[%s1749 + $0x34] sm:$0xf]
    %v1764 = vld [vmem:[%s1749 + $0x38] sm:$0xf]
    %v1765 = vld [vmem:[%s1749 + $0x3c] sm:$0xf]
    %v1766 = vpack.c.bf16 %v1719, %v1717
    %v1767 = vpack.c.bf16 %v1720, %v1718
    %v1768 = vpack.c.bf16 %v1723, %v1721
    %v1769 = vpack.c.bf16 %v1724, %v1722
    %v1770 = vpack.c.bf16 %v1727, %v1725
    %v1771 = vpack.c.bf16 %v1728, %v1726
    %v1772 = vpack.c.bf16 %v1731, %v1729
    %v1773 = vpack.c.bf16 %v1732, %v1730
    %v1774 = vpack.c.bf16 %v1735, %v1733
    %v1775 = vpack.c.bf16 %v1736, %v1734
    %v1776 = vpack.c.bf16 %v1739, %v1737
    %v1777 = vpack.c.bf16 %v1740, %v1738
    %v1778 = vpack.c.bf16 %v1743, %v1741
    %v1779 = vpack.c.bf16 %v1744, %v1742
    %v1780 = vpack.c.bf16 %v1747, %v1745
    %v1781 = vpack.c.bf16 %v1748, %v1746
    %1783 = vset.pattern.permute.xlu0 0
    %1784 = vperm.xlu0 %1783, %v367
    %v1785 = vpop.permute.xlu0 %1784
    %1788 = vset.pattern.permute.xlu0 0
    %1789 = vperm.xlu0 %1788, %v368
    %v1790 = vpop.permute.xlu0 %1789
    %1793 = vset.pattern.permute.xlu0 0
    %1794 = vperm.xlu0 %1793, %v369
    %v1795 = vpop.permute.xlu0 %1794
    %1798 = vset.pattern.permute.xlu0 0
    %1799 = vperm.xlu0 %1798, %v370
    %v1800 = vpop.permute.xlu0 %1799
    %1803 = vset.pattern.permute.xlu0 0
    %1804 = vperm.xlu0 %1803, %v371
    %v1805 = vpop.permute.xlu0 %1804
    %1808 = vset.pattern.permute.xlu0 0
    %1809 = vperm.xlu0 %1808, %v372
    %v1810 = vpop.permute.xlu0 %1809
    %1813 = vset.pattern.permute.xlu0 0
    %1814 = vperm.xlu0 %1813, %v373
    %v1815 = vpop.permute.xlu0 %1814
    %1818 = vset.pattern.permute.xlu0 0
    %1819 = vperm.xlu0 %1818, %v374
    %v1820 = vpop.permute.xlu0 %1819
    %1823 = vset.pattern.permute.xlu0 0
    %1824 = vperm.xlu0 %1823, %v375
    %v1825 = vpop.permute.xlu0 %1824
    %1828 = vset.pattern.permute.xlu0 0
    %1829 = vperm.xlu0 %1828, %v376
    %v1830 = vpop.permute.xlu0 %1829
    %1833 = vset.pattern.permute.xlu0 0
    %1834 = vperm.xlu0 %1833, %v377
    %v1835 = vpop.permute.xlu0 %1834
    %1838 = vset.pattern.permute.xlu0 0
    %1839 = vperm.xlu0 %1838, %v378
    %v1840 = vpop.permute.xlu0 %1839
    %1843 = vset.pattern.permute.xlu0 0
    %1844 = vperm.xlu0 %1843, %v379
    %v1845 = vpop.permute.xlu0 %1844
    %1848 = vset.pattern.permute.xlu0 0
    %1849 = vperm.xlu0 %1848, %v380
    %v1850 = vpop.permute.xlu0 %1849
    %1853 = vset.pattern.permute.xlu0 0
    %1854 = vperm.xlu0 %1853, %v381
    %v1855 = vpop.permute.xlu0 %1854
    %1858 = vset.pattern.permute.xlu0 0
    %1859 = vperm.xlu0 %1858, %v382
    %v1860 = vpop.permute.xlu0 %1859
    %v1878 = vunpack.c.l.b16 %v1750
    %v1879 = vunpack.c.l.b16 %v1751
    %v1880 = vunpack.c.l.b16 %v1752
    %v1881 = vunpack.c.l.b16 %v1753
    %v1882 = vunpack.c.l.b16 %v1754
    %v1883 = vunpack.c.l.b16 %v1755
    %v1884 = vunpack.c.l.b16 %v1756
    %v1885 = vunpack.c.l.b16 %v1757
    %v1886 = vunpack.c.l.b16 %v1758
    %v1887 = vunpack.c.l.b16 %v1759
    %v1888 = vunpack.c.l.b16 %v1760
    %v1889 = vunpack.c.l.b16 %v1761
    %v1890 = vunpack.c.l.b16 %v1762
    %v1891 = vunpack.c.l.b16 %v1763
    %v1892 = vunpack.c.l.b16 %v1764
    %v1893 = vunpack.c.l.b16 %v1765
    %v1894 = vpack.c.b16 %v1879, %v1878
    %v1895 = vpack.c.b16 %v1881, %v1880
    %v1896 = vpack.c.b16 %v1883, %v1882
    %v1897 = vpack.c.b16 %v1885, %v1884
    %v1898 = vpack.c.b16 %v1887, %v1886
    %v1899 = vpack.c.b16 %v1889, %v1888
    %v1900 = vpack.c.b16 %v1891, %v1890
    %v1901 = vpack.c.b16 %v1893, %v1892
    %1910 = vmatprep.subr.bf16.mxu0 %v1767
    %1911 = vmatpush1.bf16.msra.mxu0 %v1766
    %1912 = vmatprep.subr.bf16.mxu0 %v1769
    %1913 = vmatpush1.bf16.msra.mxu0 %v1768
    %1914 = vmatprep.subr.bf16.mxu0 %v1771
    %1915 = vmatpush1.bf16.msra.mxu0 %v1770
    %1916 = vmatprep.subr.bf16.mxu0 %v1773
    %1917 = vmatpush1.bf16.msra.mxu0 %v1772
    %1918 = vmatprep.subr.bf16.mxu0 %v1775
    %1919 = vmatpush1.bf16.msra.mxu0 %v1774
    %1920 = vmatprep.subr.bf16.mxu0 %v1777
    %1921 = vmatpush1.bf16.msra.mxu0 %v1776
    %1922 = vmatprep.subr.bf16.mxu0 %v1779
    %1923 = vmatpush1.bf16.msra.mxu0 %v1778
    %1924 = vmatprep.subr.bf16.mxu0 %v1781
    %1925 = vmatpush1.bf16.msra.mxu0 %v1780
    %1926 = vmatprep.subr.bf16.mxu0 0
    %1927 = vmatpush1.bf16.msra.mxu0 0
    %1928 = vmatprep.subr.bf16.mxu0 0
    %1929 = vmatpush1.bf16.msra.mxu0 0
    %1930 = vmatprep.subr.bf16.mxu0 0
    %1931 = vmatpush1.bf16.msra.mxu0 0
    %1932 = vmatprep.subr.bf16.mxu0 0
    %1933 = vmatpush1.bf16.msra.mxu0 0
    %1934 = vmatprep.subr.bf16.mxu0 0
    %1935 = vmatpush1.bf16.msra.mxu0 0
    %1936 = vmatprep.subr.bf16.mxu0 0
    %1937 = vmatpush1.bf16.msra.mxu0 0
    %1938 = vmatprep.subr.bf16.mxu0 0
    %1939 = vmatpush1.bf16.msra.mxu0 0
    %1940 = vmatprep.subr.bf16.mxu0 0
    %1941 = vmatpush1.bf16.msra.mxu0 0
    %1942 = vmatprep.mubr.bf16.mxu0 0
    %1943 = vmatmul.mubr.bf16.gmra.mrb[0].mxu0 %v1894
    %v1944 = vpop.f32.mrb[0].mxu0
    %v1945 = vadd.f32 %v1785, %v1944
    %v1946 = vpop.f32.mrb[0].mxu0
    %v1947 = vadd.f32 %v1785, %v1946
    %v1948 = vpop.f32.mrb[0].mxu0
    %v1949 = vadd.f32 %v1790, %v1948
    %v1950 = vpop.f32.mrb[0].mxu0
    %v1951 = vadd.f32 %v1790, %v1950
    %1952 = vmatprep.mubr.bf16.mxu0 0
    %1953 = vmatmul.mubr.bf16.gmra.mrb[0].mxu0 %v1895
    %v1954 = vpop.f32.mrb[0].mxu0
    %v1955 = vadd.f32 %v1795, %v1954
    %v1956 = vpop.f32.mrb[0].mxu0
    %v1957 = vadd.f32 %v1795, %v1956
    %v1958 = vpop.f32.mrb[0].mxu0
    %v1959 = vadd.f32 %v1800, %v1958
    %v1960 = vpop.f32.mrb[0].mxu0
    %v1961 = vadd.f32 %v1800, %v1960
    %1962 = vmatprep.mubr.bf16.mxu0 0
    %1963 = vmatmul.mubr.bf16.gmra.mrb[0].mxu0 %v1896
    %v1964 = vpop.f32.mrb[0].mxu0
    %v1965 = vadd.f32 %v1805, %v1964
    %v1966 = vpop.f32.mrb[0].mxu0
    %v1967 = vadd.f32 %v1805, %v1966
    %v1968 = vpop.f32.mrb[0].mxu0
    %v1969 = vadd.f32 %v1810, %v1968
    %v1970 = vpop.f32.mrb[0].mxu0
    %v1971 = vadd.f32 %v1810, %v1970
    %1972 = vmatprep.mubr.bf16.mxu0 0
    %1973 = vmatmul.mubr.bf16.gmra.mrb[0].mxu0 %v1897
    %v1974 = vpop.f32.mrb[0].mxu0
    %v1975 = vadd.f32 %v1815, %v1974
    %v1976 = vpop.f32.mrb[0].mxu0
    %v1977 = vadd.f32 %v1815, %v1976
    %v1978 = vpop.f32.mrb[0].mxu0
    %v1979 = vadd.f32 %v1820, %v1978
    %v1980 = vpop.f32.mrb[0].mxu0
    %v1981 = vadd.f32 %v1820, %v1980
    %1982 = vmatprep.mubr.bf16.mxu0 0
    %1983 = vmatmul.mubr.bf16.gmra.mrb[0].mxu0 %v1898
    %v1984 = vpop.f32.mrb[0].mxu0
    %v1985 = vadd.f32 %v1825, %v1984
    %v1986 = vpop.f32.mrb[0].mxu0
    %v1987 = vadd.f32 %v1825, %v1986
    %v1988 = vpop.f32.mrb[0].mxu0
    %v1989 = vadd.f32 %v1830, %v1988
    %v1990 = vpop.f32.mrb[0].mxu0
    %v1991 = vadd.f32 %v1830, %v1990
    %1992 = vmatprep.mubr.bf16.mxu0 0
    %1993 = vmatmul.mubr.bf16.gmra.mrb[0].mxu0 %v1899
    %v1994 = vpop.f32.mrb[0].mxu0
    %v1995 = vadd.f32 %v1835, %v1994
    %v1996 = vpop.f32.mrb[0].mxu0
    %v1997 = vadd.f32 %v1835, %v1996
    %v1998 = vpop.f32.mrb[0].mxu0
    %v1999 = vadd.f32 %v1840, %v1998
    %v2000 = vpop.f32.mrb[0].mxu0
    %v2001 = vadd.f32 %v1840, %v2000
    %2002 = vmatprep.mubr.bf16.mxu0 0
    %2003 = vmatmul.mubr.bf16.gmra.mrb[0].mxu0 %v1900
    %v2004 = vpop.f32.mrb[0].mxu0
    %v2005 = vadd.f32 %v1845, %v2004
    %v2006 = vpop.f32.mrb[0].mxu0
    %v2007 = vadd.f32 %v1845, %v2006
    %v2008 = vpop.f32.mrb[0].mxu0
    %v2009 = vadd.f32 %v1850, %v2008
    %v2010 = vpop.f32.mrb[0].mxu0
    %v2011 = vadd.f32 %v1850, %v2010
    %2012 = vmatprep.mubr.bf16.mxu0 0
    %2013 = vmatmul.mubr.bf16.gmra.mrb[0].mxu0 %v1901
    %v2014 = vpop.f32.mrb[0].mxu0
    %v2015 = vadd.f32 %v1855, %v2014
    %v2016 = vpop.f32.mrb[0].mxu0
    %v2017 = vadd.f32 %v1855, %v2016
    %v2018 = vpop.f32.mrb[0].mxu0
    %v2019 = vadd.f32 %v1860, %v2018
    %v2020 = vpop.f32.mrb[0].mxu0
    %v2021 = vadd.f32 %v1860, %v2020
    %2022 = vdwg.mxu0
    %v2023 = vtanh.pop %v1945
    %v2024 = vtanh.pop %v1947
    %v2025 = vtanh.pop %v1949
    %v2026 = vtanh.pop %v1951
    %v2027 = vtanh.pop %v1955
    %v2028 = vtanh.pop %v1957
    %v2029 = vtanh.pop %v1959
    %v2030 = vtanh.pop %v1961
    %v2031 = vtanh.pop %v1965
    %v2032 = vtanh.pop %v1967
    %v2033 = vtanh.pop %v1969
    %v2034 = vtanh.pop %v1971
    %v2035 = vtanh.pop %v1975
    %v2036 = vtanh.pop %v1977
    %v2037 = vtanh.pop %v1979
    %v2038 = vtanh.pop %v1981
    %v2039 = vtanh.pop %v1985
    %v2040 = vtanh.pop %v1987
    %v2041 = vtanh.pop %v1989
    %v2042 = vtanh.pop %v1991
    %v2043 = vtanh.pop %v1995
    %v2044 = vtanh.pop %v1997
    %v2045 = vtanh.pop %v1999
    %v2046 = vtanh.pop %v2001
    %v2047 = vtanh.pop %v2005
    %v2048 = vtanh.pop %v2007
    %v2049 = vtanh.pop %v2009
    %v2050 = vtanh.pop %v2011
    %v2051 = vtanh.pop %v2015
    %v2052 = vtanh.pop %v2017
    %v2053 = vtanh.pop %v2019
    %v2054 = vtanh.pop %v2021
    %v2055 = vpack.c.bf16 %v2025, %v2023
    %v2056 = vpack.c.bf16 %v2026, %v2024
    %v2057 = vpack.c.bf16 %v2029, %v2027
    %v2058 = vpack.c.bf16 %v2030, %v2028
    %v2059 = vpack.c.bf16 %v2033, %v2031
    %v2060 = vpack.c.bf16 %v2034, %v2032
    %v2061 = vpack.c.bf16 %v2037, %v2035
    %v2062 = vpack.c.bf16 %v2038, %v2036
    %v2063 = vpack.c.bf16 %v2041, %v2039
    %v2064 = vpack.c.bf16 %v2042, %v2040
    %v2065 = vpack.c.bf16 %v2045, %v2043
    %v2066 = vpack.c.bf16 %v2046, %v2044
    %v2067 = vpack.c.bf16 %v2049, %v2047
    %v2068 = vpack.c.bf16 %v2050, %v2048
    %v2069 = vpack.c.bf16 %v2053, %v2051
    %v2070 = vpack.c.bf16 %v2054, %v2052
    %s2071 = scalar_lea.vmem %s5, 128
    %v2072 = vld [vmem:[%s2071] sm:$0xf]
    %v2073 = vld [vmem:[%s2071 + $0x4] sm:$0xf]
    %v2074 = vld [vmem:[%s2071 + $0x8] sm:$0xf]
    %v2075 = vld [vmem:[%s2071 + $0xc] sm:$0xf]
    %v2076 = vld [vmem:[%s2071 + $0x10] sm:$0xf]
    %v2077 = vld [vmem:[%s2071 + $0x14] sm:$0xf]
    %v2078 = vld [vmem:[%s2071 + $0x18] sm:$0xf]
    %v2079 = vld [vmem:[%s2071 + $0x1c] sm:$0xf]
    %v2080 = vld [vmem:[%s2071 + $0x20] sm:$0xf]
    %v2081 = vld [vmem:[%s2071 + $0x24] sm:$0xf]
    %v2082 = vld [vmem:[%s2071 + $0x28] sm:$0xf]
    %v2083 = vld [vmem:[%s2071 + $0x2c] sm:$0xf]
    %v2084 = vld [vmem:[%s2071 + $0x30] sm:$0xf]
    %v2085 = vld [vmem:[%s2071 + $0x34] sm:$0xf]
    %v2086 = vld [vmem:[%s2071 + $0x38] sm:$0xf]
    %v2087 = vld [vmem:[%s2071 + $0x3c] sm:$0xf]
    %2089 = vset.pattern.permute.xlu0 0
    %2090 = vperm.xlu0 %2089, %v431
    %v2091 = vpop.permute.xlu0 %2090
    %2094 = vset.pattern.permute.xlu0 0
    %2095 = vperm.xlu0 %2094, %v432
    %v2096 = vpop.permute.xlu0 %2095
    %2099 = vset.pattern.permute.xlu0 0
    %2100 = vperm.xlu0 %2099, %v433
    %v2101 = vpop.permute.xlu0 %2100
    %2104 = vset.pattern.permute.xlu0 0
    %2105 = vperm.xlu0 %2104, %v434
    %v2106 = vpop.permute.xlu0 %2105
    %2109 = vset.pattern.permute.xlu0 0
    %2110 = vperm.xlu0 %2109, %v435
    %v2111 = vpop.permute.xlu0 %2110
    %2114 = vset.pattern.permute.xlu0 0
    %2115 = vperm.xlu0 %2114, %v436
    %v2116 = vpop.permute.xlu0 %2115
    %2119 = vset.pattern.permute.xlu0 0
    %2120 = vperm.xlu0 %2119, %v437
    %v2121 = vpop.permute.xlu0 %2120
    %2124 = vset.pattern.permute.xlu0 0
    %2125 = vperm.xlu0 %2124, %v438
    %v2126 = vpop.permute.xlu0 %2125
    %2129 = vset.pattern.permute.xlu0 0
    %2130 = vperm.xlu0 %2129, %v439
    %v2131 = vpop.permute.xlu0 %2130
    %2134 = vset.pattern.permute.xlu0 0
    %2135 = vperm.xlu0 %2134, %v440
    %v2136 = vpop.permute.xlu0 %2135
    %2139 = vset.pattern.permute.xlu0 0
    %2140 = vperm.xlu0 %2139, %v441
    %v2141 = vpop.permute.xlu0 %2140
    %2144 = vset.pattern.permute.xlu0 0
    %2145 = vperm.xlu0 %2144, %v442
    %v2146 = vpop.permute.xlu0 %2145
    %2149 = vset.pattern.permute.xlu0 0
    %2150 = vperm.xlu0 %2149, %v443
    %v2151 = vpop.permute.xlu0 %2150
    %2154 = vset.pattern.permute.xlu0 0
    %2155 = vperm.xlu0 %2154, %v444
    %v2156 = vpop.permute.xlu0 %2155
    %2159 = vset.pattern.permute.xlu0 0
    %2160 = vperm.xlu0 %2159, %v445
    %v2161 = vpop.permute.xlu0 %2160
    %2164 = vset.pattern.permute.xlu0 0
    %2165 = vperm.xlu0 %2164, %v446
    %v2166 = vpop.permute.xlu0 %2165
    %v2184 = vunpack.c.l.b16 %v2072
    %v2185 = vunpack.c.l.b16 %v2073
    %v2186 = vunpack.c.l.b16 %v2074
    %v2187 = vunpack.c.l.b16 %v2075
    %v2188 = vunpack.c.l.b16 %v2076
    %v2189 = vunpack.c.l.b16 %v2077
    %v2190 = vunpack.c.l.b16 %v2078
    %v2191 = vunpack.c.l.b16 %v2079
    %v2192 = vunpack.c.l.b16 %v2080
    %v2193 = vunpack.c.l.b16 %v2081
    %v2194 = vunpack.c.l.b16 %v2082
    %v2195 = vunpack.c.l.b16 %v2083
    %v2196 = vunpack.c.l.b16 %v2084
    %v2197 = vunpack.c.l.b16 %v2085
    %v2198 = vunpack.c.l.b16 %v2086
    %v2199 = vunpack.c.l.b16 %v2087
    %v2200 = vpack.c.b16 %v2185, %v2184
    %v2201 = vpack.c.b16 %v2187, %v2186
    %v2202 = vpack.c.b16 %v2189, %v2188
    %v2203 = vpack.c.b16 %v2191, %v2190
    %v2204 = vpack.c.b16 %v2193, %v2192
    %v2205 = vpack.c.b16 %v2195, %v2194
    %v2206 = vpack.c.b16 %v2197, %v2196
    %v2207 = vpack.c.b16 %v2199, %v2198
    %2216 = vmatprep.subr.bf16.mxu0 %v2056
    %2217 = vmatpush1.bf16.msra.mxu0 %v2055
    %2218 = vmatprep.subr.bf16.mxu0 %v2058
    %2219 = vmatpush1.bf16.msra.mxu0 %v2057
    %2220 = vmatprep.subr.bf16.mxu0 %v2060
    %2221 = vmatpush1.bf16.msra.mxu0 %v2059
    %2222 = vmatprep.subr.bf16.mxu0 %v2062
    %2223 = vmatpush1.bf16.msra.mxu0 %v2061
    %2224 = vmatprep.subr.bf16.mxu0 %v2064
    %2225 = vmatpush1.bf16.msra.mxu0 %v2063
    %2226 = vmatprep.subr.bf16.mxu0 %v2066
    %2227 = vmatpush1.bf16.msra.mxu0 %v2065
    %2228 = vmatprep.subr.bf16.mxu0 %v2068
    %2229 = vmatpush1.bf16.msra.mxu0 %v2067
    %2230 = vmatprep.subr.bf16.mxu0 %v2070
    %2231 = vmatpush1.bf16.msra.mxu0 %v2069
    %2232 = vmatprep.subr.bf16.mxu0 0
    %2233 = vmatpush1.bf16.msra.mxu0 0
    %2234 = vmatprep.subr.bf16.mxu0 0
    %2235 = vmatpush1.bf16.msra.mxu0 0
    %2236 = vmatprep.subr.bf16.mxu0 0
    %2237 = vmatpush1.bf16.msra.mxu0 0
    %2238 = vmatprep.subr.bf16.mxu0 0
    %2239 = vmatpush1.bf16.msra.mxu0 0
    %2240 = vmatprep.subr.bf16.mxu0 0
    %2241 = vmatpush1.bf16.msra.mxu0 0
    %2242 = vmatprep.subr.bf16.mxu0 0
    %2243 = vmatpush1.bf16.msra.mxu0 0
    %2244 = vmatprep.subr.bf16.mxu0 0
    %2245 = vmatpush1.bf16.msra.mxu0 0
    %2246 = vmatprep.subr.bf16.mxu0 0
    %2247 = vmatpush1.bf16.msra.mxu0 0
    %2248 = vmatprep.mubr.bf16.mxu0 0
    %2249 = vmatmul.mubr.bf16.gmra.mrb[0].mxu0 %v2200
    %v2250 = vpop.f32.mrb[0].mxu0
    %v2251 = vadd.f32 %v2091, %v2250
    %v2252 = vpop.f32.mrb[0].mxu0
    %v2253 = vadd.f32 %v2091, %v2252
    %v2254 = vpop.f32.mrb[0].mxu0
    %v2255 = vadd.f32 %v2096, %v2254
    %v2256 = vpop.f32.mrb[0].mxu0
    %v2257 = vadd.f32 %v2096, %v2256
    %2258 = vmatprep.mubr.bf16.mxu0 0
    %2259 = vmatmul.mubr.bf16.gmra.mrb[0].mxu0 %v2201
    %v2260 = vpop.f32.mrb[0].mxu0
    %v2261 = vadd.f32 %v2101, %v2260
    %v2262 = vpop.f32.mrb[0].mxu0
    %v2263 = vadd.f32 %v2101, %v2262
    %v2264 = vpop.f32.mrb[0].mxu0
    %v2265 = vadd.f32 %v2106, %v2264
    %v2266 = vpop.f32.mrb[0].mxu0
    %v2267 = vadd.f32 %v2106, %v2266
    %2268 = vmatprep.mubr.bf16.mxu0 0
    %2269 = vmatmul.mubr.bf16.gmra.mrb[0].mxu0 %v2202
    %v2270 = vpop.f32.mrb[0].mxu0
    %v2271 = vadd.f32 %v2111, %v2270
    %v2272 = vpop.f32.mrb[0].mxu0
    %v2273 = vadd.f32 %v2111, %v2272
    %v2274 = vpop.f32.mrb[0].mxu0
    %v2275 = vadd.f32 %v2116, %v2274
    %v2276 = vpop.f32.mrb[0].mxu0
    %v2277 = vadd.f32 %v2116, %v2276
    %2278 = vmatprep.mubr.bf16.mxu0 0
    %2279 = vmatmul.mubr.bf16.gmra.mrb[0].mxu0 %v2203
    %v2280 = vpop.f32.mrb[0].mxu0
    %v2281 = vadd.f32 %v2121, %v2280
    %v2282 = vpop.f32.mrb[0].mxu0
    %v2283 = vadd.f32 %v2121, %v2282
    %v2284 = vpop.f32.mrb[0].mxu0
    %v2285 = vadd.f32 %v2126, %v2284
    %v2286 = vpop.f32.mrb[0].mxu0
    %v2287 = vadd.f32 %v2126, %v2286
    %2288 = vmatprep.mubr.bf16.mxu0 0
    %2289 = vmatmul.mubr.bf16.gmra.mrb[0].mxu0 %v2204
    %v2290 = vpop.f32.mrb[0].mxu0
    %v2291 = vadd.f32 %v2131, %v2290
    %v2292 = vpop.f32.mrb[0].mxu0
    %v2293 = vadd.f32 %v2131, %v2292
    %v2294 = vpop.f32.mrb[0].mxu0
    %v2295 = vadd.f32 %v2136, %v2294
    %v2296 = vpop.f32.mrb[0].mxu0
    %v2297 = vadd.f32 %v2136, %v2296
    %2298 = vmatprep.mubr.bf16.mxu0 0
    %2299 = vmatmul.mubr.bf16.gmra.mrb[0].mxu0 %v2205
    %v2300 = vpop.f32.mrb[0].mxu0
    %v2301 = vadd.f32 %v2141, %v2300
    %v2302 = vpop.f32.mrb[0].mxu0
    %v2303 = vadd.f32 %v2141, %v2302
    %v2304 = vpop.f32.mrb[0].mxu0
    %v2305 = vadd.f32 %v2146, %v2304
    %v2306 = vpop.f32.mrb[0].mxu0
    %v2307 = vadd.f32 %v2146, %v2306
    %2308 = vmatprep.mubr.bf16.mxu0 0
    %2309 = vmatmul.mubr.bf16.gmra.mrb[0].mxu0 %v2206
    %v2310 = vpop.f32.mrb[0].mxu0
    %v2311 = vadd.f32 %v2151, %v2310
    %v2312 = vpop.f32.mrb[0].mxu0
    %v2313 = vadd.f32 %v2151, %v2312
    %v2314 = vpop.f32.mrb[0].mxu0
    %v2315 = vadd.f32 %v2156, %v2314
    %v2316 = vpop.f32.mrb[0].mxu0
    %v2317 = vadd.f32 %v2156, %v2316
    %2318 = vmatprep.mubr.bf16.mxu0 0
    %2319 = vmatmul.mubr.bf16.gmra.mrb[0].mxu0 %v2207
    %v2320 = vpop.f32.mrb[0].mxu0
    %v2321 = vadd.f32 %v2161, %v2320
    %v2322 = vpop.f32.mrb[0].mxu0
    %v2323 = vadd.f32 %v2161, %v2322
    %v2324 = vpop.f32.mrb[0].mxu0
    %v2325 = vadd.f32 %v2166, %v2324
    %v2326 = vpop.f32.mrb[0].mxu0
    %v2327 = vadd.f32 %v2166, %v2326
    %2328 = vdwg.mxu0
    %v2329 = vtanh.pop %v2251
    %v2330 = vtanh.pop %v2253
    %v2331 = vtanh.pop %v2255
    %v2332 = vtanh.pop %v2257
    %v2333 = vtanh.pop %v2261
    %v2334 = vtanh.pop %v2263
    %v2335 = vtanh.pop %v2265
    %v2336 = vtanh.pop %v2267
    %v2337 = vtanh.pop %v2271
    %v2338 = vtanh.pop %v2273
    %v2339 = vtanh.pop %v2275
    %v2340 = vtanh.pop %v2277
    %v2341 = vtanh.pop %v2281
    %v2342 = vtanh.pop %v2283
    %v2343 = vtanh.pop %v2285
    %v2344 = vtanh.pop %v2287
    %v2345 = vtanh.pop %v2291
    %v2346 = vtanh.pop %v2293
    %v2347 = vtanh.pop %v2295
    %v2348 = vtanh.pop %v2297
    %v2349 = vtanh.pop %v2301
    %v2350 = vtanh.pop %v2303
    %v2351 = vtanh.pop %v2305
    %v2352 = vtanh.pop %v2307
    %v2353 = vtanh.pop %v2311
    %v2354 = vtanh.pop %v2313
    %v2355 = vtanh.pop %v2315
    %v2356 = vtanh.pop %v2317
    %v2357 = vtanh.pop %v2321
    %v2358 = vtanh.pop %v2323
    %v2359 = vtanh.pop %v2325
    %v2360 = vtanh.pop %v2327
    %v2361 = vadd.f32 %v2329, %v1717
    %v2362 = vadd.f32 %v2330, %v1718
    %v2363 = vadd.f32 %v2331, %v1719
    %v2364 = vadd.f32 %v2332, %v1720
    %v2365 = vadd.f32 %v2333, %v1721
    %v2366 = vadd.f32 %v2334, %v1722
    %v2367 = vadd.f32 %v2335, %v1723
    %v2368 = vadd.f32 %v2336, %v1724
    %v2369 = vadd.f32 %v2337, %v1725
    %v2370 = vadd.f32 %v2338, %v1726
    %v2371 = vadd.f32 %v2339, %v1727
    %v2372 = vadd.f32 %v2340, %v1728
    %v2373 = vadd.f32 %v2341, %v1729
    %v2374 = vadd.f32 %v2342, %v1730
    %v2375 = vadd.f32 %v2343, %v1731
    %v2376 = vadd.f32 %v2344, %v1732
    %v2377 = vadd.f32 %v2345, %v1733
    %v2378 = vadd.f32 %v2346, %v1734
    %v2379 = vadd.f32 %v2347, %v1735
    %v2380 = vadd.f32 %v2348, %v1736
    %v2381 = vadd.f32 %v2349, %v1737
    %v2382 = vadd.f32 %v2350, %v1738
    %v2383 = vadd.f32 %v2351, %v1739
    %v2384 = vadd.f32 %v2352, %v1740
    %v2385 = vadd.f32 %v2353, %v1741
    %v2386 = vadd.f32 %v2354, %v1742
    %v2387 = vadd.f32 %v2355, %v1743
    %v2388 = vadd.f32 %v2356, %v1744
    %v2389 = vadd.f32 %v2357, %v1745
    %v2390 = vadd.f32 %v2358, %v1746
    %v2391 = vadd.f32 %v2359, %v1747
    %v2392 = vadd.f32 %v2360, %v1748
    %s2393 = scalar_lea.vmem %s3, 192
    %v2394 = vld [vmem:[%s2393] sm:$0xf]
    %v2395 = vld [vmem:[%s2393 + $0x4] sm:$0xf]
    %v2396 = vld [vmem:[%s2393 + $0x8] sm:$0xf]
    %v2397 = vld [vmem:[%s2393 + $0xc] sm:$0xf]
    %v2398 = vld [vmem:[%s2393 + $0x10] sm:$0xf]
    %v2399 = vld [vmem:[%s2393 + $0x14] sm:$0xf]
    %v2400 = vld [vmem:[%s2393 + $0x18] sm:$0xf]
    %v2401 = vld [vmem:[%s2393 + $0x1c] sm:$0xf]
    %v2402 = vld [vmem:[%s2393 + $0x20] sm:$0xf]
    %v2403 = vld [vmem:[%s2393 + $0x24] sm:$0xf]
    %v2404 = vld [vmem:[%s2393 + $0x28] sm:$0xf]
    %v2405 = vld [vmem:[%s2393 + $0x2c] sm:$0xf]
    %v2406 = vld [vmem:[%s2393 + $0x30] sm:$0xf]
    %v2407 = vld [vmem:[%s2393 + $0x34] sm:$0xf]
    %v2408 = vld [vmem:[%s2393 + $0x38] sm:$0xf]
    %v2409 = vld [vmem:[%s2393 + $0x3c] sm:$0xf]
    %v2410 = vpack.c.bf16 %v2363, %v2361
    %v2411 = vpack.c.bf16 %v2364, %v2362
    %v2412 = vpack.c.bf16 %v2367, %v2365
    %v2413 = vpack.c.bf16 %v2368, %v2366
    %v2414 = vpack.c.bf16 %v2371, %v2369
    %v2415 = vpack.c.bf16 %v2372, %v2370
    %v2416 = vpack.c.bf16 %v2375, %v2373
    %v2417 = vpack.c.bf16 %v2376, %v2374
    %v2418 = vpack.c.bf16 %v2379, %v2377
    %v2419 = vpack.c.bf16 %v2380, %v2378
    %v2420 = vpack.c.bf16 %v2383, %v2381
    %v2421 = vpack.c.bf16 %v2384, %v2382
    %v2422 = vpack.c.bf16 %v2387, %v2385
    %v2423 = vpack.c.bf16 %v2388, %v2386
    %v2424 = vpack.c.bf16 %v2391, %v2389
    %v2425 = vpack.c.bf16 %v2392, %v2390
    %2427 = vset.pattern.permute.xlu0 0
    %2428 = vperm.xlu0 %2427, %v383
    %v2429 = vpop.permute.xlu0 %2428
    %2432 = vset.pattern.permute.xlu0 0
    %2433 = vperm.xlu0 %2432, %v384
    %v2434 = vpop.permute.xlu0 %2433
    %2437 = vset.pattern.permute.xlu0 0
    %2438 = vperm.xlu0 %2437, %v385
    %v2439 = vpop.permute.xlu0 %2438
    %2442 = vset.pattern.permute.xlu0 0
    %2443 = vperm.xlu0 %2442, %v386
    %v2444 = vpop.permute.xlu0 %2443
    %2447 = vset.pattern.permute.xlu0 0
    %2448 = vperm.xlu0 %2447, %v387
    %v2449 = vpop.permute.xlu0 %2448
    %2452 = vset.pattern.permute.xlu0 0
    %2453 = vperm.xlu0 %2452, %v388
    %v2454 = vpop.permute.xlu0 %2453
    %2457 = vset.pattern.permute.xlu0 0
    %2458 = vperm.xlu0 %2457, %v389
    %v2459 = vpop.permute.xlu0 %2458
    %2462 = vset.pattern.permute.xlu0 0
    %2463 = vperm.xlu0 %2462, %v390
    %v2464 = vpop.permute.xlu0 %2463
    %2467 = vset.pattern.permute.xlu0 0
    %2468 = vperm.xlu0 %2467, %v391
    %v2469 = vpop.permute.xlu0 %2468
    %2472 = vset.pattern.permute.xlu0 0
    %2473 = vperm.xlu0 %2472, %v392
    %v2474 = vpop.permute.xlu0 %2473
    %2477 = vset.pattern.permute.xlu0 0
    %2478 = vperm.xlu0 %2477, %v393
    %v2479 = vpop.permute.xlu0 %2478
    %2482 = vset.pattern.permute.xlu0 0
    %2483 = vperm.xlu0 %2482, %v394
    %v2484 = vpop.permute.xlu0 %2483
    %2487 = vset.pattern.permute.xlu0 0
    %2488 = vperm.xlu0 %2487, %v395
    %v2489 = vpop.permute.xlu0 %2488
    %2492 = vset.pattern.permute.xlu0 0
    %2493 = vperm.xlu0 %2492, %v396
    %v2494 = vpop.permute.xlu0 %2493
    %2497 = vset.pattern.permute.xlu0 0
    %2498 = vperm.xlu0 %2497, %v397
    %v2499 = vpop.permute.xlu0 %2498
    %2502 = vset.pattern.permute.xlu0 0
    %2503 = vperm.xlu0 %2502, %v398
    %v2504 = vpop.permute.xlu0 %2503
    %v2522 = vunpack.c.l.b16 %v2394
    %v2523 = vunpack.c.l.b16 %v2395
    %v2524 = vunpack.c.l.b16 %v2396
    %v2525 = vunpack.c.l.b16 %v2397
    %v2526 = vunpack.c.l.b16 %v2398
    %v2527 = vunpack.c.l.b16 %v2399
    %v2528 = vunpack.c.l.b16 %v2400
    %v2529 = vunpack.c.l.b16 %v2401
    %v2530 = vunpack.c.l.b16 %v2402
    %v2531 = vunpack.c.l.b16 %v2403
    %v2532 = vunpack.c.l.b16 %v2404
    %v2533 = vunpack.c.l.b16 %v2405
    %v2534 = vunpack.c.l.b16 %v2406
    %v2535 = vunpack.c.l.b16 %v2407
    %v2536 = vunpack.c.l.b16 %v2408
    %v2537 = vunpack.c.l.b16 %v2409
    %v2538 = vpack.c.b16 %v2523, %v2522
    %v2539 = vpack.c.b16 %v2525, %v2524
    %v2540 = vpack.c.b16 %v2527, %v2526
    %v2541 = vpack.c.b16 %v2529, %v2528
    %v2542 = vpack.c.b16 %v2531, %v2530
    %v2543 = vpack.c.b16 %v2533, %v2532
    %v2544 = vpack.c.b16 %v2535, %v2534
    %v2545 = vpack.c.b16 %v2537, %v2536
    %2554 = vmatprep.subr.bf16.mxu0 %v2411
    %2555 = vmatpush1.bf16.msra.mxu0 %v2410
    %2556 = vmatprep.subr.bf16.mxu0 %v2413
    %2557 = vmatpush1.bf16.msra.mxu0 %v2412
    %2558 = vmatprep.subr.bf16.mxu0 %v2415
    %2559 = vmatpush1.bf16.msra.mxu0 %v2414
    %2560 = vmatprep.subr.bf16.mxu0 %v2417
    %2561 = vmatpush1.bf16.msra.mxu0 %v2416
    %2562 = vmatprep.subr.bf16.mxu0 %v2419
    %2563 = vmatpush1.bf16.msra.mxu0 %v2418
    %2564 = vmatprep.subr.bf16.mxu0 %v2421
    %2565 = vmatpush1.bf16.msra.mxu0 %v2420
    %2566 = vmatprep.subr.bf16.mxu0 %v2423
    %2567 = vmatpush1.bf16.msra.mxu0 %v2422
    %2568 = vmatprep.subr.bf16.mxu0 %v2425
    %2569 = vmatpush1.bf16.msra.mxu0 %v2424
    %2570 = vmatprep.subr.bf16.mxu0 0
    %2571 = vmatpush1.bf16.msra.mxu0 0
    %2572 = vmatprep.subr.bf16.mxu0 0
    %2573 = vmatpush1.bf16.msra.mxu0 0
    %2574 = vmatprep.subr.bf16.mxu0 0
    %2575 = vmatpush1.bf16.msra.mxu0 0
    %2576 = vmatprep.subr.bf16.mxu0 0
    %2577 = vmatpush1.bf16.msra.mxu0 0
    %2578 = vmatprep.subr.bf16.mxu0 0
    %2579 = vmatpush1.bf16.msra.mxu0 0
    %2580 = vmatprep.subr.bf16.mxu0 0
    %2581 = vmatpush1.bf16.msra.mxu0 0
    %2582 = vmatprep.subr.bf16.mxu0 0
    %2583 = vmatpush1.bf16.msra.mxu0 0
    %2584 = vmatprep.subr.bf16.mxu0 0
    %2585 = vmatpush1.bf16.msra.mxu0 0
    %2586 = vmatprep.mubr.bf16.mxu0 0
    %2587 = vmatmul.mubr.bf16.gmra.mrb[0].mxu0 %v2538
    %v2588 = vpop.f32.mrb[0].mxu0
    %v2589 = vadd.f32 %v2429, %v2588
    %v2590 = vpop.f32.mrb[0].mxu0
    %v2591 = vadd.f32 %v2429, %v2590
    %v2592 = vpop.f32.mrb[0].mxu0
    %v2593 = vadd.f32 %v2434, %v2592
    %v2594 = vpop.f32.mrb[0].mxu0
    %v2595 = vadd.f32 %v2434, %v2594
    %2596 = vmatprep.mubr.bf16.mxu0 0
    %2597 = vmatmul.mubr.bf16.gmra.mrb[0].mxu0 %v2539
    %v2598 = vpop.f32.mrb[0].mxu0
    %v2599 = vadd.f32 %v2439, %v2598
    %v2600 = vpop.f32.mrb[0].mxu0
    %v2601 = vadd.f32 %v2439, %v2600
    %v2602 = vpop.f32.mrb[0].mxu0
    %v2603 = vadd.f32 %v2444, %v2602
    %v2604 = vpop.f32.mrb[0].mxu0
    %v2605 = vadd.f32 %v2444, %v2604
    %2606 = vmatprep.mubr.bf16.mxu0 0
    %2607 = vmatmul.mubr.bf16.gmra.mrb[0].mxu0 %v2540
    %v2608 = vpop.f32.mrb[0].mxu0
    %v2609 = vadd.f32 %v2449, %v2608
    %v2610 = vpop.f32.mrb[0].mxu0
    %v2611 = vadd.f32 %v2449, %v2610
    %v2612 = vpop.f32.mrb[0].mxu0
    %v2613 = vadd.f32 %v2454, %v2612
    %v2614 = vpop.f32.mrb[0].mxu0
    %v2615 = vadd.f32 %v2454, %v2614
    %2616 = vmatprep.mubr.bf16.mxu0 0
    %2617 = vmatmul.mubr.bf16.gmra.mrb[0].mxu0 %v2541
    %v2618 = vpop.f32.mrb[0].mxu0
    %v2619 = vadd.f32 %v2459, %v2618
    %v2620 = vpop.f32.mrb[0].mxu0
    %v2621 = vadd.f32 %v2459, %v2620
    %v2622 = vpop.f32.mrb[0].mxu0
    %v2623 = vadd.f32 %v2464, %v2622
    %v2624 = vpop.f32.mrb[0].mxu0
    %v2625 = vadd.f32 %v2464, %v2624
    %2626 = vmatprep.mubr.bf16.mxu0 0
    %2627 = vmatmul.mubr.bf16.gmra.mrb[0].mxu0 %v2542
    %v2628 = vpop.f32.mrb[0].mxu0
    %v2629 = vadd.f32 %v2469, %v2628
    %v2630 = vpop.f32.mrb[0].mxu0
    %v2631 = vadd.f32 %v2469, %v2630
    %v2632 = vpop.f32.mrb[0].mxu0
    %v2633 = vadd.f32 %v2474, %v2632
    %v2634 = vpop.f32.mrb[0].mxu0
    %v2635 = vadd.f32 %v2474, %v2634
    %2636 = vmatprep.mubr.bf16.mxu0 0
    %2637 = vmatmul.mubr.bf16.gmra.mrb[0].mxu0 %v2543
    %v2638 = vpop.f32.mrb[0].mxu0
    %v2639 = vadd.f32 %v2479, %v2638
    %v2640 = vpop.f32.mrb[0].mxu0
    %v2641 = vadd.f32 %v2479, %v2640
    %v2642 = vpop.f32.mrb[0].mxu0
    %v2643 = vadd.f32 %v2484, %v2642
    %v2644 = vpop.f32.mrb[0].mxu0
    %v2645 = vadd.f32 %v2484, %v2644
    %2646 = vmatprep.mubr.bf16.mxu0 0
    %2647 = vmatmul.mubr.bf16.gmra.mrb[0].mxu0 %v2544
    %v2648 = vpop.f32.mrb[0].mxu0
    %v2649 = vadd.f32 %v2489, %v2648
    %v2650 = vpop.f32.mrb[0].mxu0
    %v2651 = vadd.f32 %v2489, %v2650
    %v2652 = vpop.f32.mrb[0].mxu0
    %v2653 = vadd.f32 %v2494, %v2652
    %v2654 = vpop.f32.mrb[0].mxu0
    %v2655 = vadd.f32 %v2494, %v2654
    %2656 = vmatprep.mubr.bf16.mxu0 0
    %2657 = vmatmul.mubr.bf16.gmra.mrb[0].mxu0 %v2545
    %v2658 = vpop.f32.mrb[0].mxu0
    %v2659 = vadd.f32 %v2499, %v2658
    %v2660 = vpop.f32.mrb[0].mxu0
    %v2661 = vadd.f32 %v2499, %v2660
    %v2662 = vpop.f32.mrb[0].mxu0
    %v2663 = vadd.f32 %v2504, %v2662
    %v2664 = vpop.f32.mrb[0].mxu0
    %v2665 = vadd.f32 %v2504, %v2664
    %2666 = vdwg.mxu0
    %v2667 = vtanh.pop %v2589
    %v2668 = vtanh.pop %v2591
    %v2669 = vtanh.pop %v2593
    %v2670 = vtanh.pop %v2595
    %v2671 = vtanh.pop %v2599
    %v2672 = vtanh.pop %v2601
    %v2673 = vtanh.pop %v2603
    %v2674 = vtanh.pop %v2605
    %v2675 = vtanh.pop %v2609
    %v2676 = vtanh.pop %v2611
    %v2677 = vtanh.pop %v2613
    %v2678 = vtanh.pop %v2615
    %v2679 = vtanh.pop %v2619
    %v2680 = vtanh.pop %v2621
    %v2681 = vtanh.pop %v2623
    %v2682 = vtanh.pop %v2625
    %v2683 = vtanh.pop %v2629
    %v2684 = vtanh.pop %v2631
    %v2685 = vtanh.pop %v2633
    %v2686 = vtanh.pop %v2635
    %v2687 = vtanh.pop %v2639
    %v2688 = vtanh.pop %v2641
    %v2689 = vtanh.pop %v2643
    %v2690 = vtanh.pop %v2645
    %v2691 = vtanh.pop %v2649
    %v2692 = vtanh.pop %v2651
    %v2693 = vtanh.pop %v2653
    %v2694 = vtanh.pop %v2655
    %v2695 = vtanh.pop %v2659
    %v2696 = vtanh.pop %v2661
    %v2697 = vtanh.pop %v2663
    %v2698 = vtanh.pop %v2665
    %v2699 = vpack.c.bf16 %v2669, %v2667
    %v2700 = vpack.c.bf16 %v2670, %v2668
    %v2701 = vpack.c.bf16 %v2673, %v2671
    %v2702 = vpack.c.bf16 %v2674, %v2672
    %v2703 = vpack.c.bf16 %v2677, %v2675
    %v2704 = vpack.c.bf16 %v2678, %v2676
    %v2705 = vpack.c.bf16 %v2681, %v2679
    %v2706 = vpack.c.bf16 %v2682, %v2680
    %v2707 = vpack.c.bf16 %v2685, %v2683
    %v2708 = vpack.c.bf16 %v2686, %v2684
    %v2709 = vpack.c.bf16 %v2689, %v2687
    %v2710 = vpack.c.bf16 %v2690, %v2688
    %v2711 = vpack.c.bf16 %v2693, %v2691
    %v2712 = vpack.c.bf16 %v2694, %v2692
    %v2713 = vpack.c.bf16 %v2697, %v2695
    %v2714 = vpack.c.bf16 %v2698, %v2696
    %s2715 = scalar_lea.vmem %s5, 192
    %v2716 = vld [vmem:[%s2715] sm:$0xf]
    %v2717 = vld [vmem:[%s2715 + $0x4] sm:$0xf]
    %v2718 = vld [vmem:[%s2715 + $0x8] sm:$0xf]
    %v2719 = vld [vmem:[%s2715 + $0xc] sm:$0xf]
    %v2720 = vld [vmem:[%s2715 + $0x10] sm:$0xf]
    %v2721 = vld [vmem:[%s2715 + $0x14] sm:$0xf]
    %v2722 = vld [vmem:[%s2715 + $0x18] sm:$0xf]
    %v2723 = vld [vmem:[%s2715 + $0x1c] sm:$0xf]
    %v2724 = vld [vmem:[%s2715 + $0x20] sm:$0xf]
    %v2725 = vld [vmem:[%s2715 + $0x24] sm:$0xf]
    %v2726 = vld [vmem:[%s2715 + $0x28] sm:$0xf]
    %v2727 = vld [vmem:[%s2715 + $0x2c] sm:$0xf]
    %v2728 = vld [vmem:[%s2715 + $0x30] sm:$0xf]
    %v2729 = vld [vmem:[%s2715 + $0x34] sm:$0xf]
    %v2730 = vld [vmem:[%s2715 + $0x38] sm:$0xf]
    %v2731 = vld [vmem:[%s2715 + $0x3c] sm:$0xf]
    %2733 = vset.pattern.permute.xlu0 0
    %2734 = vperm.xlu0 %2733, %v447
    %v2735 = vpop.permute.xlu0 %2734
    %2738 = vset.pattern.permute.xlu0 0
    %2739 = vperm.xlu0 %2738, %v448
    %v2740 = vpop.permute.xlu0 %2739
    %2743 = vset.pattern.permute.xlu0 0
    %2744 = vperm.xlu0 %2743, %v449
    %v2745 = vpop.permute.xlu0 %2744
    %2748 = vset.pattern.permute.xlu0 0
    %2749 = vperm.xlu0 %2748, %v450
    %v2750 = vpop.permute.xlu0 %2749
    %2753 = vset.pattern.permute.xlu0 0
    %2754 = vperm.xlu0 %2753, %v451
    %v2755 = vpop.permute.xlu0 %2754
    %2758 = vset.pattern.permute.xlu0 0
    %2759 = vperm.xlu0 %2758, %v452
    %v2760 = vpop.permute.xlu0 %2759
    %2763 = vset.pattern.permute.xlu0 0
    %2764 = vperm.xlu0 %2763, %v453
    %v2765 = vpop.permute.xlu0 %2764
    %2768 = vset.pattern.permute.xlu0 0
    %2769 = vperm.xlu0 %2768, %v454
    %v2770 = vpop.permute.xlu0 %2769
    %2773 = vset.pattern.permute.xlu0 0
    %2774 = vperm.xlu0 %2773, %v455
    %v2775 = vpop.permute.xlu0 %2774
    %2778 = vset.pattern.permute.xlu0 0
    %2779 = vperm.xlu0 %2778, %v456
    %v2780 = vpop.permute.xlu0 %2779
    %2783 = vset.pattern.permute.xlu0 0
    %2784 = vperm.xlu0 %2783, %v457
    %v2785 = vpop.permute.xlu0 %2784
    %2788 = vset.pattern.permute.xlu0 0
    %2789 = vperm.xlu0 %2788, %v458
    %v2790 = vpop.permute.xlu0 %2789
    %2793 = vset.pattern.permute.xlu0 0
    %2794 = vperm.xlu0 %2793, %v459
    %v2795 = vpop.permute.xlu0 %2794
    %2798 = vset.pattern.permute.xlu0 0
    %2799 = vperm.xlu0 %2798, %v460
    %v2800 = vpop.permute.xlu0 %2799
    %2803 = vset.pattern.permute.xlu0 0
    %2804 = vperm.xlu0 %2803, %v461
    %v2805 = vpop.permute.xlu0 %2804
    %2808 = vset.pattern.permute.xlu0 0
    %2809 = vperm.xlu0 %2808, %v462
    %v2810 = vpop.permute.xlu0 %2809
    %v2828 = vunpack.c.l.b16 %v2716
    %v2829 = vunpack.c.l.b16 %v2717
    %v2830 = vunpack.c.l.b16 %v2718
    %v2831 = vunpack.c.l.b16 %v2719
    %v2832 = vunpack.c.l.b16 %v2720
    %v2833 = vunpack.c.l.b16 %v2721
    %v2834 = vunpack.c.l.b16 %v2722
    %v2835 = vunpack.c.l.b16 %v2723
    %v2836 = vunpack.c.l.b16 %v2724
    %v2837 = vunpack.c.l.b16 %v2725
    %v2838 = vunpack.c.l.b16 %v2726
    %v2839 = vunpack.c.l.b16 %v2727
    %v2840 = vunpack.c.l.b16 %v2728
    %v2841 = vunpack.c.l.b16 %v2729
    %v2842 = vunpack.c.l.b16 %v2730
    %v2843 = vunpack.c.l.b16 %v2731
    %v2844 = vpack.c.b16 %v2829, %v2828
    %v2845 = vpack.c.b16 %v2831, %v2830
    %v2846 = vpack.c.b16 %v2833, %v2832
    %v2847 = vpack.c.b16 %v2835, %v2834
    %v2848 = vpack.c.b16 %v2837, %v2836
    %v2849 = vpack.c.b16 %v2839, %v2838
    %v2850 = vpack.c.b16 %v2841, %v2840
    %v2851 = vpack.c.b16 %v2843, %v2842
    %2860 = vmatprep.subr.bf16.mxu0 %v2700
    %2861 = vmatpush1.bf16.msra.mxu0 %v2699
    %2862 = vmatprep.subr.bf16.mxu0 %v2702
    %2863 = vmatpush1.bf16.msra.mxu0 %v2701
    %2864 = vmatprep.subr.bf16.mxu0 %v2704
    %2865 = vmatpush1.bf16.msra.mxu0 %v2703
    %2866 = vmatprep.subr.bf16.mxu0 %v2706
    %2867 = vmatpush1.bf16.msra.mxu0 %v2705
    %2868 = vmatprep.subr.bf16.mxu0 %v2708
    %2869 = vmatpush1.bf16.msra.mxu0 %v2707
    %2870 = vmatprep.subr.bf16.mxu0 %v2710
    %2871 = vmatpush1.bf16.msra.mxu0 %v2709
    %2872 = vmatprep.subr.bf16.mxu0 %v2712
    %2873 = vmatpush1.bf16.msra.mxu0 %v2711
    %2874 = vmatprep.subr.bf16.mxu0 %v2714
    %2875 = vmatpush1.bf16.msra.mxu0 %v2713
    %2876 = vmatprep.subr.bf16.mxu0 0
    %2877 = vmatpush1.bf16.msra.mxu0 0
    %2878 = vmatprep.subr.bf16.mxu0 0
    %2879 = vmatpush1.bf16.msra.mxu0 0
    %2880 = vmatprep.subr.bf16.mxu0 0
    %2881 = vmatpush1.bf16.msra.mxu0 0
    %2882 = vmatprep.subr.bf16.mxu0 0
    %2883 = vmatpush1.bf16.msra.mxu0 0
    %2884 = vmatprep.subr.bf16.mxu0 0
    %2885 = vmatpush1.bf16.msra.mxu0 0
    %2886 = vmatprep.subr.bf16.mxu0 0
    %2887 = vmatpush1.bf16.msra.mxu0 0
    %2888 = vmatprep.subr.bf16.mxu0 0
    %2889 = vmatpush1.bf16.msra.mxu0 0
    %2890 = vmatprep.subr.bf16.mxu0 0
    %2891 = vmatpush1.bf16.msra.mxu0 0
    %2892 = vmatprep.mubr.bf16.mxu0 0
    %2893 = vmatmul.mubr.bf16.gmra.mrb[0].mxu0 %v2844
    %v2894 = vpop.f32.mrb[0].mxu0
    %v2895 = vadd.f32 %v2735, %v2894
    %v2896 = vpop.f32.mrb[0].mxu0
    %v2897 = vadd.f32 %v2735, %v2896
    %v2898 = vpop.f32.mrb[0].mxu0
    %v2899 = vadd.f32 %v2740, %v2898
    %v2900 = vpop.f32.mrb[0].mxu0
    %v2901 = vadd.f32 %v2740, %v2900
    %2902 = vmatprep.mubr.bf16.mxu0 0
    %2903 = vmatmul.mubr.bf16.gmra.mrb[0].mxu0 %v2845
    %v2904 = vpop.f32.mrb[0].mxu0
    %v2905 = vadd.f32 %v2745, %v2904
    %v2906 = vpop.f32.mrb[0].mxu0
    %v2907 = vadd.f32 %v2745, %v2906
    %v2908 = vpop.f32.mrb[0].mxu0
    %v2909 = vadd.f32 %v2750, %v2908
    %v2910 = vpop.f32.mrb[0].mxu0
    %v2911 = vadd.f32 %v2750, %v2910
    %2912 = vmatprep.mubr.bf16.mxu0 0
    %2913 = vmatmul.mubr.bf16.gmra.mrb[0].mxu0 %v2846
    %v2914 = vpop.f32.mrb[0].mxu0
    %v2915 = vadd.f32 %v2755, %v2914
    %v2916 = vpop.f32.mrb[0].mxu0
    %v2917 = vadd.f32 %v2755, %v2916
    %v2918 = vpop.f32.mrb[0].mxu0
    %v2919 = vadd.f32 %v2760, %v2918
    %v2920 = vpop.f32.mrb[0].mxu0
    %v2921 = vadd.f32 %v2760, %v2920
    %2922 = vmatprep.mubr.bf16.mxu0 0
    %2923 = vmatmul.mubr.bf16.gmra.mrb[0].mxu0 %v2847
    %v2924 = vpop.f32.mrb[0].mxu0
    %v2925 = vadd.f32 %v2765, %v2924
    %v2926 = vpop.f32.mrb[0].mxu0
    %v2927 = vadd.f32 %v2765, %v2926
    %v2928 = vpop.f32.mrb[0].mxu0
    %v2929 = vadd.f32 %v2770, %v2928
    %v2930 = vpop.f32.mrb[0].mxu0
    %v2931 = vadd.f32 %v2770, %v2930
    %2932 = vmatprep.mubr.bf16.mxu0 0
    %2933 = vmatmul.mubr.bf16.gmra.mrb[0].mxu0 %v2848
    %v2934 = vpop.f32.mrb[0].mxu0
    %v2935 = vadd.f32 %v2775, %v2934
    %v2936 = vpop.f32.mrb[0].mxu0
    %v2937 = vadd.f32 %v2775, %v2936
    %v2938 = vpop.f32.mrb[0].mxu0
    %v2939 = vadd.f32 %v2780, %v2938
    %v2940 = vpop.f32.mrb[0].mxu0
    %v2941 = vadd.f32 %v2780, %v2940
    %2942 = vmatprep.mubr.bf16.mxu0 0
    %2943 = vmatmul.mubr.bf16.gmra.mrb[0].mxu0 %v2849
    %v2944 = vpop.f32.mrb[0].mxu0
    %v2945 = vadd.f32 %v2785, %v2944
    %v2946 = vpop.f32.mrb[0].mxu0
    %v2947 = vadd.f32 %v2785, %v2946
    %v2948 = vpop.f32.mrb[0].mxu0
    %v2949 = vadd.f32 %v2790, %v2948
    %v2950 = vpop.f32.mrb[0].mxu0
    %v2951 = vadd.f32 %v2790, %v2950
    %2952 = vmatprep.mubr.bf16.mxu0 0
    %2953 = vmatmul.mubr.bf16.gmra.mrb[0].mxu0 %v2850
    %v2954 = vpop.f32.mrb[0].mxu0
    %v2955 = vadd.f32 %v2795, %v2954
    %v2956 = vpop.f32.mrb[0].mxu0
    %v2957 = vadd.f32 %v2795, %v2956
    %v2958 = vpop.f32.mrb[0].mxu0
    %v2959 = vadd.f32 %v2800, %v2958
    %v2960 = vpop.f32.mrb[0].mxu0
    %v2961 = vadd.f32 %v2800, %v2960
    %2962 = vmatprep.mubr.bf16.mxu0 0
    %2963 = vmatmul.mubr.bf16.gmra.mrb[0].mxu0 %v2851
    %v2964 = vpop.f32.mrb[0].mxu0
    %v2965 = vadd.f32 %v2805, %v2964
    %v2966 = vpop.f32.mrb[0].mxu0
    %v2967 = vadd.f32 %v2805, %v2966
    %v2968 = vpop.f32.mrb[0].mxu0
    %v2969 = vadd.f32 %v2810, %v2968
    %v2970 = vpop.f32.mrb[0].mxu0
    %v2971 = vadd.f32 %v2810, %v2970
    %2972 = vdwg.mxu0
    %v2973 = vtanh.pop %v2895
    %v2974 = vtanh.pop %v2897
    %v2975 = vtanh.pop %v2899
    %v2976 = vtanh.pop %v2901
    %v2977 = vtanh.pop %v2905
    %v2978 = vtanh.pop %v2907
    %v2979 = vtanh.pop %v2909
    %v2980 = vtanh.pop %v2911
    %v2981 = vtanh.pop %v2915
    %v2982 = vtanh.pop %v2917
    %v2983 = vtanh.pop %v2919
    %v2984 = vtanh.pop %v2921
    %v2985 = vtanh.pop %v2925
    %v2986 = vtanh.pop %v2927
    %v2987 = vtanh.pop %v2929
    %v2988 = vtanh.pop %v2931
    %v2989 = vtanh.pop %v2935
    %v2990 = vtanh.pop %v2937
    %v2991 = vtanh.pop %v2939
    %v2992 = vtanh.pop %v2941
    %v2993 = vtanh.pop %v2945
    %v2994 = vtanh.pop %v2947
    %v2995 = vtanh.pop %v2949
    %v2996 = vtanh.pop %v2951
    %v2997 = vtanh.pop %v2955
    %v2998 = vtanh.pop %v2957
    %v2999 = vtanh.pop %v2959
    %v3000 = vtanh.pop %v2961
    %v3001 = vtanh.pop %v2965
    %v3002 = vtanh.pop %v2967
    %v3003 = vtanh.pop %v2969
    %v3004 = vtanh.pop %v2971
    %v3005 = vadd.f32 %v2973, %v2361
    %v3006 = vadd.f32 %v2974, %v2362
    %v3007 = vadd.f32 %v2975, %v2363
    %v3008 = vadd.f32 %v2976, %v2364
    %v3009 = vadd.f32 %v2977, %v2365
    %v3010 = vadd.f32 %v2978, %v2366
    %v3011 = vadd.f32 %v2979, %v2367
    %v3012 = vadd.f32 %v2980, %v2368
    %v3013 = vadd.f32 %v2981, %v2369
    %v3014 = vadd.f32 %v2982, %v2370
    %v3015 = vadd.f32 %v2983, %v2371
    %v3016 = vadd.f32 %v2984, %v2372
    %v3017 = vadd.f32 %v2985, %v2373
    %v3018 = vadd.f32 %v2986, %v2374
    %v3019 = vadd.f32 %v2987, %v2375
    %v3020 = vadd.f32 %v2988, %v2376
    %v3021 = vadd.f32 %v2989, %v2377
    %v3022 = vadd.f32 %v2990, %v2378
    %v3023 = vadd.f32 %v2991, %v2379
    %v3024 = vadd.f32 %v2992, %v2380
    %v3025 = vadd.f32 %v2993, %v2381
    %v3026 = vadd.f32 %v2994, %v2382
    %v3027 = vadd.f32 %v2995, %v2383
    %v3028 = vadd.f32 %v2996, %v2384
    %v3029 = vadd.f32 %v2997, %v2385
    %v3030 = vadd.f32 %v2998, %v2386
    %v3031 = vadd.f32 %v2999, %v2387
    %v3032 = vadd.f32 %v3000, %v2388
    %v3033 = vadd.f32 %v3001, %v2389
    %v3034 = vadd.f32 %v3002, %v2390
    %v3035 = vadd.f32 %v3003, %v2391
    %v3036 = vadd.f32 %v3004, %v2392
    %v3037 = vld [vmem:[%s7] sm:$0x3]
    %v3038 = vpack.c.bf16 %v3007, %v3005
    %v3039 = vpack.c.bf16 %v3008, %v3006
    %v3040 = vpack.c.bf16 %v3011, %v3009
    %v3041 = vpack.c.bf16 %v3012, %v3010
    %v3042 = vpack.c.bf16 %v3015, %v3013
    %v3043 = vpack.c.bf16 %v3016, %v3014
    %v3044 = vpack.c.bf16 %v3019, %v3017
    %v3045 = vpack.c.bf16 %v3020, %v3018
    %v3046 = vpack.c.bf16 %v3023, %v3021
    %v3047 = vpack.c.bf16 %v3024, %v3022
    %v3048 = vpack.c.bf16 %v3027, %v3025
    %v3049 = vpack.c.bf16 %v3028, %v3026
    %v3050 = vpack.c.bf16 %v3031, %v3029
    %v3051 = vpack.c.bf16 %v3032, %v3030
    %v3052 = vpack.c.bf16 %v3035, %v3033
    %v3053 = vpack.c.bf16 %v3036, %v3034
    %v3054 = vld [vmem:[%s8] sm:$0xf]
    %3056 = vset.pattern.permute.xlu0 0
    %3057 = vperm.xlu0 %3056, %v3054
    %v3058 = vpop.permute.xlu0 %3057
    %3060 = vmatprep.subr.bf16.mxu0 %v3039
    %3061 = vmatpush1.bf16.msra.mxu0 %v3038
    %3062 = vmatprep.subr.bf16.mxu0 %v3041
    %3063 = vmatpush1.bf16.msra.mxu0 %v3040
    %3064 = vmatprep.subr.bf16.mxu0 %v3043
    %3065 = vmatpush1.bf16.msra.mxu0 %v3042
    %3066 = vmatprep.subr.bf16.mxu0 %v3045
    %3067 = vmatpush1.bf16.msra.mxu0 %v3044
    %3068 = vmatprep.subr.bf16.mxu0 %v3047
    %3069 = vmatpush1.bf16.msra.mxu0 %v3046
    %3070 = vmatprep.subr.bf16.mxu0 %v3049
    %3071 = vmatpush1.bf16.msra.mxu0 %v3048
    %3072 = vmatprep.subr.bf16.mxu0 %v3051
    %3073 = vmatpush1.bf16.msra.mxu0 %v3050
    %3074 = vmatprep.subr.bf16.mxu0 %v3053
    %3075 = vmatpush1.bf16.msra.mxu0 %v3052
    %3076 = vmatprep.subr.bf16.mxu0 0
    %3077 = vmatpush1.bf16.msra.mxu0 0
    %3078 = vmatprep.subr.bf16.mxu0 0
    %3079 = vmatpush1.bf16.msra.mxu0 0
    %3080 = vmatprep.subr.bf16.mxu0 0
    %3081 = vmatpush1.bf16.msra.mxu0 0
    %3082 = vmatprep.subr.bf16.mxu0 0
    %3083 = vmatpush1.bf16.msra.mxu0 0
    %3084 = vmatprep.subr.bf16.mxu0 0
    %3085 = vmatpush1.bf16.msra.mxu0 0
    %3086 = vmatprep.subr.bf16.mxu0 0
    %3087 = vmatpush1.bf16.msra.mxu0 0
    %3088 = vmatprep.subr.bf16.mxu0 0
    %3089 = vmatpush1.bf16.msra.mxu0 0
    %3090 = vmatprep.subr.bf16.mxu0 0
    %3091 = vmatpush1.bf16.msra.mxu0 0
    %3092 = vmatprep.mubr.bf16.mxu0 0
    %3093 = vmatmul.mubr.bf16.gmra.mrb[0].mxu0 %v3037
    %v3094 = vpop.f32.mrb[0].mxu0
    %v3095 = vadd.f32 %v3058, %v3094
    %v3096 = vpop.f32.mrb[0].mxu0
    %v3097 = vadd.f32 %v3058, %v3096
    %v3098 = vpop.f32.mrb[0].mxu0
    %v3099 = vpop.f32.mrb[0].mxu0
    %3100 = vdwg.mxu0
    %v3103 = vcombine.low %v3095, %v3097
    %3105 = vst [vmem:[#allocation2] sm:$0xff] %v3103
    // Predicated region
    $region38: #{tpu_custom_call.1} parent=1 // pred_check
      _
    $region39: #{tpu_custom_call.1} parent=1 // pred_check_branch
      %3107 = sbr.rel (0) target = $region41
    $region40: #{tpu_custom_call.1} parent=1 // pred_region
      %s3109 = ssub.s32 128, 128
      %3110 = vsyncadd [#allocation3], %s3109
      %s3112 = sshll.u32 [#allocation2], 4
      %s3113 = int_to_ptr.vmem [resolvable:$true] %s3112
      %3115 = dma.vmem_to_hbm [thread:$0]  %s3113, 128, %s9, [#allocation3]
    $region41: #{tpu_custom_call.1} parent=1 // pred_fallthru
      _
    // Predicated region
    $region42: #{tpu_custom_call.1} parent=1 // pred_check
      _
    $region43: #{tpu_custom_call.1} parent=1 // pred_check_branch
      %3117 = sbr.rel (0) target = $region45
    $region44: #{tpu_custom_call.1} parent=1 // pred_region
      %3118 = dma.done [#allocation3], 128
    $region45: #{tpu_custom_call.1} parent=1 // pred_fallthru
      _
    %3119 = vsyncpa [#allocation3], 1

</llo_original>
